<compile_context>
chip_gen: v7x
topology: tpu7x:2x2x1
jax: 0.10.0
libtpu: 0.0.40
codegen_flags: <defaults>
</compile_context>

<pallas_src>
import functools

import jax
import jax.numpy as jnp
from jax.experimental import pallas as pl
from jax.experimental.pallas import tpu as pltpu

# Small, TPU-friendly sizes consistent with the module's forward
# (module defaults N=512, M=256 scaled down for the demo).
C, H, W = 4, 16, 16
D_IN = C * H * W          # 1024 flattened observation features
H1 = 256                  # encoder hidden width
N = 128                   # encoder output / GRU input size
M = 128                   # GRU hidden size (lane-dense outputs)
B = 8                     # batched environments (fills vreg sublanes)
T = 16                    # rollout length
TS = 8                    # timesteps folded into one grid step (encoder batching)


def _world_model_kernel(x_ref, w1_ref, b1_ref, w2_ref, b2_ref,
                        wih_ref, whh_ref, bih_ref, bhh_ref, h0_ref,
                        out_ref, h_sc, *, ts, b):
    s = pl.program_id(0)

    @pl.when(s == 0)
    def _():
        h_sc[...] = h0_ref[...]                           # self.reset() / incoming h0

    inv255 = jnp.float32(1.0 / 255.0)

    # ---- encoder + GRU input projection, batched over the whole TS*B tile ----
    # x holds exact integer values 0..255 in bf16; the /255 is applied to the
    # f32 matmul accumulator, which is algebraically identical to (x/255) @ W1.
    x = x_ref[...]                                        # (TS*B, D_IN) bf16
    h1 = jnp.dot(x, w1_ref[...], preferred_element_type=jnp.float32)
    h1 = jnp.maximum(h1 * inv255 + b1_ref[...], 0.0)      # (TS*B, H1)
    z = jnp.dot(h1.astype(jnp.bfloat16), w2_ref[...],
                preferred_element_type=jnp.float32) + b2_ref[...]
    z = jnp.maximum(z, 0.0)                               # (TS*B, N) == z.view(1,1,N) per env

    # GRU input projection for all TS steps in one MXU matmul (not recurrent).
    gi_all = jnp.dot(z.astype(jnp.bfloat16), wih_ref[...],
                     preferred_element_type=jnp.float32) + bih_ref[...]   # (TS*B, 3M)

    # ---- serial GRU recurrence over the TS timesteps of this block ----
    # PyTorch gate order (r, z, n); gate elementwise math stays f32.
    for t in range(ts):
        h_prev = h_sc[...]                                # (B, M) f32
        gi = gi_all[t * b:(t + 1) * b, :]                 # static, sublane-aligned slice
        gh = jnp.dot(h_prev.astype(jnp.bfloat16), whh_ref[...],
                     preferred_element_type=jnp.float32) + bhh_ref[...]   # (B, 3M)
        r = jax.nn.sigmoid(gi[:, 0:M] + gh[:, 0:M])
        u = jax.nn.sigmoid(gi[:, M:2 * M] + gh[:, M:2 * M])
        n = jnp.tanh(gi[:, 2 * M:3 * M] + r * gh[:, 2 * M:3 * M])
        h_new = (1.0 - u) * n + u * h_prev                # (B, M)

        h_sc[...] = h_new                                 # recurrent carry (VMEM)
        out_ref[t * b:(t + 1) * b, :] = h_new             # GRU output for seq_len=1


@jax.jit
def sampling_world_model_rollout(x_u8, params, h0):
    """T steps of the module over B envs. Returns (outs[T,B,M], h_final[B,M])."""
    assert x_u8.dtype == jnp.uint8, "Observations have to be uint8."
    Tn, Bn = x_u8.shape[0], x_u8.shape[1]
    ts = TS if Tn % TS == 0 else 1                        # timesteps per grid step

    # glue: flatten time*batch and cast once (0..255 are exact in bf16;
    # the /255 happens inside the kernel on the f32 accumulator).
    xf = x_u8.reshape(Tn * Bn, -1).astype(jnp.bfloat16)   # (T*B, D_IN)

    (w1, b1, w2, b2, wih, whh, bih, bhh) = params
    const2d = lambda s: (0, 0)                            # weight blocks stay VMEM-resident

    kernel = functools.partial(_world_model_kernel, ts=ts, b=Bn)

    out_flat = pl.pallas_call(
        kernel,
        out_shape=jax.ShapeDtypeStruct((Tn * Bn, M), jnp.float32),
        grid_spec=pltpu.PrefetchScalarGridSpec(
            num_scalar_prefetch=0,
            grid=(Tn // ts,),
            in_specs=[
                pl.BlockSpec((ts * Bn, D_IN), lambda s: (s, 0)),   # per-block observations
                pl.BlockSpec(w1.shape, const2d),
                pl.BlockSpec(b1.shape, const2d),
                pl.BlockSpec(w2.shape, const2d),
                pl.BlockSpec(b2.shape, const2d),
                pl.BlockSpec(wih.shape, const2d),
                pl.BlockSpec(whh.shape, const2d),
                pl.BlockSpec(bih.shape, const2d),
                pl.BlockSpec(bhh.shape, const2d),
                pl.BlockSpec(h0.shape, const2d),
            ],
            out_specs=pl.BlockSpec((ts * Bn, M), lambda s: (s, 0)),
            scratch_shapes=[pltpu.VMEM((Bn, M), jnp.float32)],     # hidden carry
        ),
        compiler_params=pltpu.CompilerParams(
            dimension_semantics=("arbitrary",)),                   # recurrence axis
    )(xf, w1, b1, w2, b2, wih, whh, bih, bhh, h0)

    outs = out_flat.reshape(Tn, Bn, M)
    h_final = outs[-1]                                    # GRU out == new hidden (seq=1)
    return outs, h_final


def init_params(key):
    """Deterministic synthetic params (PyTorch-style uniform(-1/sqrt(fan), ...)).
    Matmul weights in bf16 (halves HBM bytes), biases in f32."""
    ks = jax.random.split(key, 8)

    def u(k, shape, fan_in, dtype):
        bound = 1.0 / (fan_in ** 0.5)
        return jax.random.uniform(k, shape, jnp.float32, -bound, bound).astype(dtype)

    w1 = u(ks[0], (D_IN, H1), D_IN, jnp.bfloat16)
    b1 = u(ks[1], (1, H1), D_IN, jnp.float32)
    w2 = u(ks[2], (H1, N), H1, jnp.bfloat16)
    b2 = u(ks[3], (1, N), H1, jnp.float32)
    # GRU weights in PyTorch gate order (r, z, n), stored transposed: (in, 3M)
    wih = u(ks[4], (N, 3 * M), M, jnp.bfloat16)
    whh = u(ks[5], (M, 3 * M), M, jnp.bfloat16)
    bih = u(ks[6], (1, 3 * M), M, jnp.float32)
    bhh = u(ks[7], (1, 3 * M), M, jnp.float32)
    return (w1, b1, w2, b2, wih, whh, bih, bhh)


if __name__ == "__main__":
    root = jax.random.PRNGKey(0)
    k_par, k_obs = jax.random.split(root)
    params = init_params(k_par)

    # deterministic uint8 observations: T rollout steps x B environments
    x = jax.random.randint(k_obs, (T, B, C, H, W), 0, 256,
                           dtype=jnp.int32).astype(jnp.uint8)
    h0 = jnp.zeros((B, M), jnp.float32)                  # equivalent of self.reset()

    outs, h_state = sampling_world_model_rollout(x, params, h0)
    outs = jax.block_until_ready(outs)
    h_state = jax.block_until_ready(h_state)

    assert outs.shape == (T, B, M) and h_state.shape == (B, M)
    assert bool(jnp.all(jnp.isfinite(outs)))

    # continue the rollout by threading the recurrent state (the module's self.h0)
    outs2, h_state2 = sampling_world_model_rollout(x, params, h_state)
    jax.block_until_ready(outs2)

    # TODO(synk): load_checkpoint_ (torch.load file I/O) has no in-kernel equivalent.
    print("KERNEL_OK")
</pallas_src>

<mosaic_0001>
module attributes {stable_mosaic.version = 11 : i64} {
  func.func @_world_model_kernel(%arg0: i32, %arg1: memref<64x1024xbf16, #tpu.memory_space<vmem>>, %arg2: memref<1024x256xbf16, #tpu.memory_space<vmem>>, %arg3: memref<1x256xf32, #tpu.memory_space<vmem>>, %arg4: memref<256x128xbf16, #tpu.memory_space<vmem>>, %arg5: memref<1x128xf32, #tpu.memory_space<vmem>>, %arg6: memref<128x384xbf16, #tpu.memory_space<vmem>>, %arg7: memref<128x384xbf16, #tpu.memory_space<vmem>>, %arg8: memref<1x384xf32, #tpu.memory_space<vmem>>, %arg9: memref<1x384xf32, #tpu.memory_space<vmem>>, %arg10: memref<8x128xf32, #tpu.memory_space<vmem>>, %arg11: memref<64x128xf32, #tpu.memory_space<vmem>>, %arg12: memref<8x128xf32, #tpu.memory_space<vmem>>) attributes {dimension_semantics = [#tpu.dimension_semantics<arbitrary>], iteration_bounds = array<i64: 2>, scalar_prefetch = 0 : i64, scratch_operands = 1 : i64, tpu.core_type = #tpu.core_type<tc>, window_params = [{transform_indices = @transform_0, window_bounds = array<i64: 64, 1024>}, {pipeline_mode = #tpu.pipeline_mode<synchronous>, transform_indices = @transform_1, window_bounds = array<i64: 1024, 256>}, {pipeline_mode = #tpu.pipeline_mode<synchronous>, transform_indices = @transform_2, window_bounds = array<i64: 1, 256>}, {pipeline_mode = #tpu.pipeline_mode<synchronous>, transform_indices = @transform_3, window_bounds = array<i64: 256, 128>}, {pipeline_mode = #tpu.pipeline_mode<synchronous>, transform_indices = @transform_4, window_bounds = array<i64: 1, 128>}, {pipeline_mode = #tpu.pipeline_mode<synchronous>, transform_indices = @transform_5, window_bounds = array<i64: 128, 384>}, {pipeline_mode = #tpu.pipeline_mode<synchronous>, transform_indices = @transform_6, window_bounds = array<i64: 128, 384>}, {pipeline_mode = #tpu.pipeline_mode<synchronous>, transform_indices = @transform_7, window_bounds = array<i64: 1, 384>}, {pipeline_mode = #tpu.pipeline_mode<synchronous>, transform_indices = @transform_8, window_bounds = array<i64: 1, 384>}, {pipeline_mode = #tpu.pipeline_mode<synchronous>, transform_indices = @transform_9, window_bounds = array<i64: 8, 128>}, {transform_indices = @transform_10, window_bounds = array<i64: 64, 128>}]} {
    %c0_i32 = arith.constant 0 : i32
    %0 = arith.cmpi eq, %arg0, %c0_i32 : i32
    %1 = arith.extui %0 : i1 to i32
    %c0_i32_0 = arith.constant 0 : i32
    %2 = arith.cmpi ne, %1, %c0_i32_0 : i32
    scf.if %2 {
      %c0_124 = arith.constant 0 : index
      %c0_125 = arith.constant 0 : index
      %315 = vector.load %arg10[%c0_124, %c0_125] : memref<8x128xf32, #tpu.memory_space<vmem>>, vector<8x128xf32>
      %c0_126 = arith.constant 0 : index
      %c0_127 = arith.constant 0 : index
      %316 = vector.load %arg12[%c0_126, %c0_127] : memref<8x128xf32, #tpu.memory_space<vmem>>, vector<8x128xf32>
      tpu.vector_store %arg12[%c0_126, %c0_127], %315 {strides = array<i32>} : memref<8x128xf32, #tpu.memory_space<vmem>>, vector<8x128xf32>,
    } else {
    }
    %c0 = arith.constant 0 : index
    %c0_1 = arith.constant 0 : index
    %3 = vector.load %arg1[%c0, %c0_1] : memref<64x1024xbf16, #tpu.memory_space<vmem>>, vector<64x1024xbf16>
    %c0_2 = arith.constant 0 : index
    %c0_3 = arith.constant 0 : index
    %4 = vector.load %arg2[%c0_2, %c0_3] : memref<1024x256xbf16, #tpu.memory_space<vmem>>, vector<1024x256xbf16>
    %cst = arith.constant dense<0.000000e+00> : vector<64x256xf32>
    %5 = tpu.matmul %3, %4, %cst {dimension_numbers = #tpu.dot_dimension_numbers<[1], [0], [0], [1], [0, 0, 1, 1], [], []>} : vector<64x1024xbf16>, vector<1024x256xbf16>, vector<64x256xf32> -> vector<64x256xf32>
    %cst_4 = arith.constant 0.00392156886 : f32
    %6 = vector.broadcast %cst_4 : f32 to vector<64x256xf32>
    %7 = arith.mulf %5, %6 : vector<64x256xf32>
    %c0_5 = arith.constant 0 : index
    %c0_6 = arith.constant 0 : index
    %8 = vector.load %arg3[%c0_5, %c0_6] : memref<1x256xf32, #tpu.memory_space<vmem>>, vector<1x256xf32>
    %9 = vector.broadcast %8 : vector<1x256xf32> to vector<64x256xf32>
    %10 = arith.addf %7, %9 : vector<64x256xf32>
    %cst_7 = arith.constant 0.000000e+00 : f32
    %11 = vector.broadcast %cst_7 : f32 to vector<64x256xf32>
    %12 = arith.maximumf %10, %11 : vector<64x256xf32>
    %13 = arith.truncf %12 : vector<64x256xf32> to vector<64x256xbf16>
    %c0_8 = arith.constant 0 : index
    %c0_9 = arith.constant 0 : index
    %14 = vector.load %arg4[%c0_8, %c0_9] : memref<256x128xbf16, #tpu.memory_space<vmem>>, vector<256x128xbf16>
    %cst_10 = arith.constant dense<0.000000e+00> : vector<64x128xf32>
    %15 = tpu.matmul %13, %14, %cst_10 {dimension_numbers = #tpu.dot_dimension_numbers<[1], [0], [0], [1], [0, 0, 1, 1], [], []>} : vector<64x256xbf16>, vector<256x128xbf16>, vector<64x128xf32> -> vector<64x128xf32>
    %c0_11 = arith.constant 0 : index
    %c0_12 = arith.constant 0 : index
    %16 = vector.load %arg5[%c0_11, %c0_12] : memref<1x128xf32, #tpu.memory_space<vmem>>, vector<1x128xf32>
    %17 = vector.broadcast %16 : vector<1x128xf32> to vector<64x128xf32>
    %18 = arith.addf %15, %17 : vector<64x128xf32>
    %cst_13 = arith.constant 0.000000e+00 : f32
    %19 = vector.broadcast %cst_13 : f32 to vector<64x128xf32>
    %20 = arith.maximumf %18, %19 : vector<64x128xf32>
    %21 = arith.truncf %20 : vector<64x128xf32> to vector<64x128xbf16>
    %c0_14 = arith.constant 0 : index
    %c0_15 = arith.constant 0 : index
    %22 = vector.load %arg6[%c0_14, %c0_15] : memref<128x384xbf16, #tpu.memory_space<vmem>>, vector<128x384xbf16>
    %cst_16 = arith.constant dense<0.000000e+00> : vector<64x384xf32>
    %23 = tpu.matmul %21, %22, %cst_16 {dimension_numbers = #tpu.dot_dimension_numbers<[1], [0], [0], [1], [0, 0, 1, 1], [], []>} : vector<64x128xbf16>, vector<128x384xbf16>, vector<64x384xf32> -> vector<64x384xf32>
    %c0_17 = arith.constant 0 : index
    %c0_18 = arith.constant 0 : index
    %24 = vector.load %arg8[%c0_17, %c0_18] : memref<1x384xf32, #tpu.memory_space<vmem>>, vector<1x384xf32>
    %25 = vector.broadcast %24 : vector<1x384xf32> to vector<64x384xf32>
    %26 = arith.addf %23, %25 : vector<64x384xf32>
    %c0_19 = arith.constant 0 : index
    %c0_20 = arith.constant 0 : index
    %27 = vector.load %arg12[%c0_19, %c0_20] : memref<8x128xf32, #tpu.memory_space<vmem>>, vector<8x128xf32>
    %28 = vector.extract_strided_slice %26 {offsets = [0, 0], sizes = [8, 384], strides = [1, 1]} : vector<64x384xf32> to vector<8x384xf32>
    %29 = arith.truncf %27 : vector<8x128xf32> to vector<8x128xbf16>
    %c0_21 = arith.constant 0 : index
    %c0_22 = arith.constant 0 : index
    %30 = vector.load %arg7[%c0_21, %c0_22] : memref<128x384xbf16, #tpu.memory_space<vmem>>, vector<128x384xbf16>
    %cst_23 = arith.constant dense<0.000000e+00> : vector<8x384xf32>
    %31 = tpu.matmul %29, %30, %cst_23 {dimension_numbers = #tpu.dot_dimension_numbers<[1], [0], [0], [1], [0, 0, 1, 1], [], []>} : vector<8x128xbf16>, vector<128x384xbf16>, vector<8x384xf32> -> vector<8x384xf32>
    %c0_24 = arith.constant 0 : index
    %c0_25 = arith.constant 0 : index
    %32 = vector.load %arg9[%c0_24, %c0_25] : memref<1x384xf32, #tpu.memory_space<vmem>>, vector<1x384xf32>
    %33 = vector.broadcast %32 : vector<1x384xf32> to vector<8x384xf32>
    %34 = arith.addf %31, %33 : vector<8x384xf32>
    %35 = vector.extract_strided_slice %28 {offsets = [0, 0], sizes = [8, 128], strides = [1, 1]} : vector<8x384xf32> to vector<8x128xf32>
    %36 = vector.extract_strided_slice %34 {offsets = [0, 0], sizes = [8, 128], strides = [1, 1]} : vector<8x384xf32> to vector<8x128xf32>
    %37 = arith.addf %35, %36 : vector<8x128xf32>
    %38 = arith.negf %37 : vector<8x128xf32>
    %39 = math.exp %38 : vector<8x128xf32>
    %cst_26 = arith.constant 1.000000e+00 : f32
    %40 = vector.broadcast %cst_26 : f32 to vector<8x128xf32>
    %41 = arith.addf %40, %39 : vector<8x128xf32>
    %42 = arith.divf %40, %41 : vector<8x128xf32>
    %43 = vector.extract_strided_slice %28 {offsets = [0, 128], sizes = [8, 128], strides = [1, 1]} : vector<8x384xf32> to vector<8x128xf32>
    %44 = vector.extract_strided_slice %34 {offsets = [0, 128], sizes = [8, 128], strides = [1, 1]} : vector<8x384xf32> to vector<8x128xf32>
    %45 = arith.addf %43, %44 : vector<8x128xf32>
    %46 = arith.negf %45 : vector<8x128xf32>
    %47 = math.exp %46 : vector<8x128xf32>
    %cst_27 = arith.constant 1.000000e+00 : f32
    %48 = vector.broadcast %cst_27 : f32 to vector<8x128xf32>
    %49 = arith.addf %48, %47 : vector<8x128xf32>
    %50 = arith.divf %48, %49 : vector<8x128xf32>
    %51 = vector.extract_strided_slice %28 {offsets = [0, 256], sizes = [8, 128], strides = [1, 1]} : vector<8x384xf32> to vector<8x128xf32>
    %52 = vector.extract_strided_slice %34 {offsets = [0, 256], sizes = [8, 128], strides = [1, 1]} : vector<8x384xf32> to vector<8x128xf32>
    %53 = arith.mulf %42, %52 : vector<8x128xf32>
    %54 = arith.addf %51, %53 : vector<8x128xf32>
    %55 = math.tanh %54 : vector<8x128xf32>
    %cst_28 = arith.constant 1.000000e+00 : f32
    %56 = vector.broadcast %cst_28 : f32 to vector<8x128xf32>
    %57 = arith.subf %56, %50 : vector<8x128xf32>
    %58 = arith.mulf %57, %55 : vector<8x128xf32>
    %59 = arith.mulf %50, %27 : vector<8x128xf32>
    %60 = arith.addf %58, %59 : vector<8x128xf32>
    %c0_29 = arith.constant 0 : index
    %c0_30 = arith.constant 0 : index
    %61 = vector.load %arg12[%c0_29, %c0_30] : memref<8x128xf32, #tpu.memory_space<vmem>>, vector<8x128xf32>
    tpu.vector_store %arg12[%c0_29, %c0_30], %60 {strides = array<i32>} : memref<8x128xf32, #tpu.memory_space<vmem>>, vector<8x128xf32>,
    %c0_31 = arith.constant 0 : index
    %c0_32 = arith.constant 0 : index
    %62 = vector.load %arg11[%c0_31, %c0_32] : memref<64x128xf32, #tpu.memory_space<vmem>>, vector<8x128xf32>
    tpu.vector_store %arg11[%c0_31, %c0_32], %60 {strides = array<i32>} : memref<64x128xf32, #tpu.memory_space<vmem>>, vector<8x128xf32>,
    %c0_33 = arith.constant 0 : index
    %c0_34 = arith.constant 0 : index
    %63 = vector.load %arg12[%c0_33, %c0_34] : memref<8x128xf32, #tpu.memory_space<vmem>>, vector<8x128xf32>
    %64 = vector.extract_strided_slice %26 {offsets = [8, 0], sizes = [8, 384], strides = [1, 1]} : vector<64x384xf32> to vector<8x384xf32>
    %65 = arith.truncf %63 : vector<8x128xf32> to vector<8x128xbf16>
    %c0_35 = arith.constant 0 : index
    %c0_36 = arith.constant 0 : index
    %66 = vector.load %arg7[%c0_35, %c0_36] : memref<128x384xbf16, #tpu.memory_space<vmem>>, vector<128x384xbf16>
    %cst_37 = arith.constant dense<0.000000e+00> : vector<8x384xf32>
    %67 = tpu.matmul %65, %66, %cst_37 {dimension_numbers = #tpu.dot_dimension_numbers<[1], [0], [0], [1], [0, 0, 1, 1], [], []>} : vector<8x128xbf16>, vector<128x384xbf16>, vector<8x384xf32> -> vector<8x384xf32>
    %c0_38 = arith.constant 0 : index
    %c0_39 = arith.constant 0 : index
    %68 = vector.load %arg9[%c0_38, %c0_39] : memref<1x384xf32, #tpu.memory_space<vmem>>, vector<1x384xf32>
    %69 = vector.broadcast %68 : vector<1x384xf32> to vector<8x384xf32>
    %70 = arith.addf %67, %69 : vector<8x384xf32>
    %71 = vector.extract_strided_slice %64 {offsets = [0, 0], sizes = [8, 128], strides = [1, 1]} : vector<8x384xf32> to vector<8x128xf32>
    %72 = vector.extract_strided_slice %70 {offsets = [0, 0], sizes = [8, 128], strides = [1, 1]} : vector<8x384xf32> to vector<8x128xf32>
    %73 = arith.addf %71, %72 : vector<8x128xf32>
    %74 = arith.negf %73 : vector<8x128xf32>
    %75 = math.exp %74 : vector<8x128xf32>
    %cst_40 = arith.constant 1.000000e+00 : f32
    %76 = vector.broadcast %cst_40 : f32 to vector<8x128xf32>
    %77 = arith.addf %76, %75 : vector<8x128xf32>
    %78 = arith.divf %76, %77 : vector<8x128xf32>
    %79 = vector.extract_strided_slice %64 {offsets = [0, 128], sizes = [8, 128], strides = [1, 1]} : vector<8x384xf32> to vector<8x128xf32>
    %80 = vector.extract_strided_slice %70 {offsets = [0, 128], sizes = [8, 128], strides = [1, 1]} : vector<8x384xf32> to vector<8x128xf32>
    %81 = arith.addf %79, %80 : vector<8x128xf32>
    %82 = arith.negf %81 : vector<8x128xf32>
    %83 = math.exp %82 : vector<8x128xf32>
    %cst_41 = arith.constant 1.000000e+00 : f32
    %84 = vector.broadcast %cst_41 : f32 to vector<8x128xf32>
    %85 = arith.addf %84, %83 : vector<8x128xf32>
    %86 = arith.divf %84, %85 : vector<8x128xf32>
    %87 = vector.extract_strided_slice %64 {offsets = [0, 256], sizes = [8, 128], strides = [1, 1]} : vector<8x384xf32> to vector<8x128xf32>
    %88 = vector.extract_strided_slice %70 {offsets = [0, 256], sizes = [8, 128], strides = [1, 1]} : vector<8x384xf32> to vector<8x128xf32>
    %89 = arith.mulf %78, %88 : vector<8x128xf32>
    %90 = arith.addf %87, %89 : vector<8x128xf32>
    %91 = math.tanh %90 : vector<8x128xf32>
    %cst_42 = arith.constant 1.000000e+00 : f32
    %92 = vector.broadcast %cst_42 : f32 to vector<8x128xf32>
    %93 = arith.subf %92, %86 : vector<8x128xf32>
    %94 = arith.mulf %93, %91 : vector<8x128xf32>
    %95 = arith.mulf %86, %63 : vector<8x128xf32>
    %96 = arith.addf %94, %95 : vector<8x128xf32>
    %c0_43 = arith.constant 0 : index
    %c0_44 = arith.constant 0 : index
    %97 = vector.load %arg12[%c0_43, %c0_44] : memref<8x128xf32, #tpu.memory_space<vmem>>, vector<8x128xf32>
    tpu.vector_store %arg12[%c0_43, %c0_44], %96 {strides = array<i32>} : memref<8x128xf32, #tpu.memory_space<vmem>>, vector<8x128xf32>,
    %c8 = arith.constant 8 : index
    %c0_45 = arith.constant 0 : index
    %98 = vector.load %arg11[%c8, %c0_45] : memref<64x128xf32, #tpu.memory_space<vmem>>, vector<8x128xf32>
    tpu.vector_store %arg11[%c8, %c0_45], %96 {strides = array<i32>} : memref<64x128xf32, #tpu.memory_space<vmem>>, vector<8x128xf32>,
    %c0_46 = arith.constant 0 : index
    %c0_47 = arith.constant 0 : index
    %99 = vector.load %arg12[%c0_46, %c0_47] : memref<8x128xf32, #tpu.memory_space<vmem>>, vector<8x128xf32>
    %100 = vector.extract_strided_slice %26 {offsets = [16, 0], sizes = [8, 384], strides = [1, 1]} : vector<64x384xf32> to vector<8x384xf32>
    %101 = arith.truncf %99 : vector<8x128xf32> to vector<8x128xbf16>
    %c0_48 = arith.constant 0 : index
    %c0_49 = arith.constant 0 : index
    %102 = vector.load %arg7[%c0_48, %c0_49] : memref<128x384xbf16, #tpu.memory_space<vmem>>, vector<128x384xbf16>
    %cst_50 = arith.constant dense<0.000000e+00> : vector<8x384xf32>
    %103 = tpu.matmul %101, %102, %cst_50 {dimension_numbers = #tpu.dot_dimension_numbers<[1], [0], [0], [1], [0, 0, 1, 1], [], []>} : vector<8x128xbf16>, vector<128x384xbf16>, vector<8x384xf32> -> vector<8x384xf32>
    %c0_51 = arith.constant 0 : index
    %c0_52 = arith.constant 0 : index
    %104 = vector.load %arg9[%c0_51, %c0_52] : memref<1x384xf32, #tpu.memory_space<vmem>>, vector<1x384xf32>
    %105 = vector.broadcast %104 : vector<1x384xf32> to vector<8x384xf32>
    %106 = arith.addf %103, %105 : vector<8x384xf32>
    %107 = vector.extract_strided_slice %100 {offsets = [0, 0], sizes = [8, 128], strides = [1, 1]} : vector<8x384xf32> to vector<8x128xf32>
    %108 = vector.extract_strided_slice %106 {offsets = [0, 0], sizes = [8, 128], strides = [1, 1]} : vector<8x384xf32> to vector<8x128xf32>
    %109 = arith.addf %107, %108 : vector<8x128xf32>
    %110 = arith.negf %109 : vector<8x128xf32>
    %111 = math.exp %110 : vector<8x128xf32>
    %cst_53 = arith.constant 1.000000e+00 : f32
    %112 = vector.broadcast %cst_53 : f32 to vector<8x128xf32>
    %113 = arith.addf %112, %111 : vector<8x128xf32>
    %114 = arith.divf %112, %113 : vector<8x128xf32>
    %115 = vector.extract_strided_slice %100 {offsets = [0, 128], sizes = [8, 128], strides = [1, 1]} : vector<8x384xf32> to vector<8x128xf32>
    %116 = vector.extract_strided_slice %106 {offsets = [0, 128], sizes = [8, 128], strides = [1, 1]} : vector<8x384xf32> to vector<8x128xf32>
    %117 = arith.addf %115, %116 : vector<8x128xf32>
    %118 = arith.negf %117 : vector<8x128xf32>
    %119 = math.exp %118 : vector<8x128xf32>
    %cst_54 = arith.constant 1.000000e+00 : f32
    %120 = vector.broadcast %cst_54 : f32 to vector<8x128xf32>
    %121 = arith.addf %120, %119 : vector<8x128xf32>
    %122 = arith.divf %120, %121 : vector<8x128xf32>
    %123 = vector.extract_strided_slice %100 {offsets = [0, 256], sizes = [8, 128], strides = [1, 1]} : vector<8x384xf32> to vector<8x128xf32>
    %124 = vector.extract_strided_slice %106 {offsets = [0, 256], sizes = [8, 128], strides = [1, 1]} : vector<8x384xf32> to vector<8x128xf32>
    %125 = arith.mulf %114, %124 : vector<8x128xf32>
    %126 = arith.addf %123, %125 : vector<8x128xf32>
    %127 = math.tanh %126 : vector<8x128xf32>
    %cst_55 = arith.constant 1.000000e+00 : f32
    %128 = vector.broadcast %cst_55 : f32 to vector<8x128xf32>
    %129 = arith.subf %128, %122 : vector<8x128xf32>
    %130 = arith.mulf %129, %127 : vector<8x128xf32>
    %131 = arith.mulf %122, %99 : vector<8x128xf32>
    %132 = arith.addf %130, %131 : vector<8x128xf32>
    %c0_56 = arith.constant 0 : index
    %c0_57 = arith.constant 0 : index
    %133 = vector.load %arg12[%c0_56, %c0_57] : memref<8x128xf32, #tpu.memory_space<vmem>>, vector<8x128xf32>
    tpu.vector_store %arg12[%c0_56, %c0_57], %132 {strides = array<i32>} : memref<8x128xf32, #tpu.memory_space<vmem>>, vector<8x128xf32>,
    %c16 = arith.constant 16 : index
    %c0_58 = arith.constant 0 : index
    %134 = vector.load %arg11[%c16, %c0_58] : memref<64x128xf32, #tpu.memory_space<vmem>>, vector<8x128xf32>
    tpu.vector_store %arg11[%c16, %c0_58], %132 {strides = array<i32>} : memref<64x128xf32, #tpu.memory_space<vmem>>, vector<8x128xf32>,
    %c0_59 = arith.constant 0 : index
    %c0_60 = arith.constant 0 : index
    %135 = vector.load %arg12[%c0_59, %c0_60] : memref<8x128xf32, #tpu.memory_space<vmem>>, vector<8x128xf32>
    %136 = vector.extract_strided_slice %26 {offsets = [24, 0], sizes = [8, 384], strides = [1, 1]} : vector<64x384xf32> to vector<8x384xf32>
    %137 = arith.truncf %135 : vector<8x128xf32> to vector<8x128xbf16>
    %c0_61 = arith.constant 0 : index
    %c0_62 = arith.constant 0 : index
    %138 = vector.load %arg7[%c0_61, %c0_62] : memref<128x384xbf16, #tpu.memory_space<vmem>>, vector<128x384xbf16>
    %cst_63 = arith.constant dense<0.000000e+00> : vector<8x384xf32>
    %139 = tpu.matmul %137, %138, %cst_63 {dimension_numbers = #tpu.dot_dimension_numbers<[1], [0], [0], [1], [0, 0, 1, 1], [], []>} : vector<8x128xbf16>, vector<128x384xbf16>, vector<8x384xf32> -> vector<8x384xf32>
    %c0_64 = arith.constant 0 : index
    %c0_65 = arith.constant 0 : index
    %140 = vector.load %arg9[%c0_64, %c0_65] : memref<1x384xf32, #tpu.memory_space<vmem>>, vector<1x384xf32>
    %141 = vector.broadcast %140 : vector<1x384xf32> to vector<8x384xf32>
    %142 = arith.addf %139, %141 : vector<8x384xf32>
    %143 = vector.extract_strided_slice %136 {offsets = [0, 0], sizes = [8, 128], strides = [1, 1]} : vector<8x384xf32> to vector<8x128xf32>
    %144 = vector.extract_strided_slice %142 {offsets = [0, 0], sizes = [8, 128], strides = [1, 1]} : vector<8x384xf32> to vector<8x128xf32>
    %145 = arith.addf %143, %144 : vector<8x128xf32>
    %146 = arith.negf %145 : vector<8x128xf32>
    %147 = math.exp %146 : vector<8x128xf32>
    %cst_66 = arith.constant 1.000000e+00 : f32
    %148 = vector.broadcast %cst_66 : f32 to vector<8x128xf32>
    %149 = arith.addf %148, %147 : vector<8x128xf32>
    %150 = arith.divf %148, %149 : vector<8x128xf32>
    %151 = vector.extract_strided_slice %136 {offsets = [0, 128], sizes = [8, 128], strides = [1, 1]} : vector<8x384xf32> to vector<8x128xf32>
    %152 = vector.extract_strided_slice %142 {offsets = [0, 128], sizes = [8, 128], strides = [1, 1]} : vector<8x384xf32> to vector<8x128xf32>
    %153 = arith.addf %151, %152 : vector<8x128xf32>
    %154 = arith.negf %153 : vector<8x128xf32>
    %155 = math.exp %154 : vector<8x128xf32>
    %cst_67 = arith.constant 1.000000e+00 : f32
    %156 = vector.broadcast %cst_67 : f32 to vector<8x128xf32>
    %157 = arith.addf %156, %155 : vector<8x128xf32>
    %158 = arith.divf %156, %157 : vector<8x128xf32>
    %159 = vector.extract_strided_slice %136 {offsets = [0, 256], sizes = [8, 128], strides = [1, 1]} : vector<8x384xf32> to vector<8x128xf32>
    %160 = vector.extract_strided_slice %142 {offsets = [0, 256], sizes = [8, 128], strides = [1, 1]} : vector<8x384xf32> to vector<8x128xf32>
    %161 = arith.mulf %150, %160 : vector<8x128xf32>
    %162 = arith.addf %159, %161 : vector<8x128xf32>
    %163 = math.tanh %162 : vector<8x128xf32>
    %cst_68 = arith.constant 1.000000e+00 : f32
    %164 = vector.broadcast %cst_68 : f32 to vector<8x128xf32>
    %165 = arith.subf %164, %158 : vector<8x128xf32>
    %166 = arith.mulf %165, %163 : vector<8x128xf32>
    %167 = arith.mulf %158, %135 : vector<8x128xf32>
    %168 = arith.addf %166, %167 : vector<8x128xf32>
    %c0_69 = arith.constant 0 : index
    %c0_70 = arith.constant 0 : index
    %169 = vector.load %arg12[%c0_69, %c0_70] : memref<8x128xf32, #tpu.memory_space<vmem>>, vector<8x128xf32>
    tpu.vector_store %arg12[%c0_69, %c0_70], %168 {strides = array<i32>} : memref<8x128xf32, #tpu.memory_space<vmem>>, vector<8x128xf32>,
    %c24 = arith.constant 24 : index
    %c0_71 = arith.constant 0 : index
    %170 = vector.load %arg11[%c24, %c0_71] : memref<64x128xf32, #tpu.memory_space<vmem>>, vector<8x128xf32>
    tpu.vector_store %arg11[%c24, %c0_71], %168 {strides = array<i32>} : memref<64x128xf32, #tpu.memory_space<vmem>>, vector<8x128xf32>,
    %c0_72 = arith.constant 0 : index
    %c0_73 = arith.constant 0 : index
    %171 = vector.load %arg12[%c0_72, %c0_73] : memref<8x128xf32, #tpu.memory_space<vmem>>, vector<8x128xf32>
    %172 = vector.extract_strided_slice %26 {offsets = [32, 0], sizes = [8, 384], strides = [1, 1]} : vector<64x384xf32> to vector<8x384xf32>
    %173 = arith.truncf %171 : vector<8x128xf32> to vector<8x128xbf16>
    %c0_74 = arith.constant 0 : index
    %c0_75 = arith.constant 0 : index
    %174 = vector.load %arg7[%c0_74, %c0_75] : memref<128x384xbf16, #tpu.memory_space<vmem>>, vector<128x384xbf16>
    %cst_76 = arith.constant dense<0.000000e+00> : vector<8x384xf32>
    %175 = tpu.matmul %173, %174, %cst_76 {dimension_numbers = #tpu.dot_dimension_numbers<[1], [0], [0], [1], [0, 0, 1, 1], [], []>} : vector<8x128xbf16>, vector<128x384xbf16>, vector<8x384xf32> -> vector<8x384xf32>
    %c0_77 = arith.constant 0 : index
    %c0_78 = arith.constant 0 : index
    %176 = vector.load %arg9[%c0_77, %c0_78] : memref<1x384xf32, #tpu.memory_space<vmem>>, vector<1x384xf32>
    %177 = vector.broadcast %176 : vector<1x384xf32> to vector<8x384xf32>
    %178 = arith.addf %175, %177 : vector<8x384xf32>
    %179 = vector.extract_strided_slice %172 {offsets = [0, 0], sizes = [8, 128], strides = [1, 1]} : vector<8x384xf32> to vector<8x128xf32>
    %180 = vector.extract_strided_slice %178 {offsets = [0, 0], sizes = [8, 128], strides = [1, 1]} : vector<8x384xf32> to vector<8x128xf32>
    %181 = arith.addf %179, %180 : vector<8x128xf32>
    %182 = arith.negf %181 : vector<8x128xf32>
    %183 = math.exp %182 : vector<8x128xf32>
    %cst_79 = arith.constant 1.000000e+00 : f32
    %184 = vector.broadcast %cst_79 : f32 to vector<8x128xf32>
    %185 = arith.addf %184, %183 : vector<8x128xf32>
    %186 = arith.divf %184, %185 : vector<8x128xf32>
    %187 = vector.extract_strided_slice %172 {offsets = [0, 128], sizes = [8, 128], strides = [1, 1]} : vector<8x384xf32> to vector<8x128xf32>
    %188 = vector.extract_strided_slice %178 {offsets = [0, 128], sizes = [8, 128], strides = [1, 1]} : vector<8x384xf32> to vector<8x128xf32>
    %189 = arith.addf %187, %188 : vector<8x128xf32>
    %190 = arith.negf %189 : vector<8x128xf32>
    %191 = math.exp %190 : vector<8x128xf32>
    %cst_80 = arith.constant 1.000000e+00 : f32
    %192 = vector.broadcast %cst_80 : f32 to vector<8x128xf32>
    %193 = arith.addf %192, %191 : vector<8x128xf32>
    %194 = arith.divf %192, %193 : vector<8x128xf32>
    %195 = vector.extract_strided_slice %172 {offsets = [0, 256], sizes = [8, 128], strides = [1, 1]} : vector<8x384xf32> to vector<8x128xf32>
    %196 = vector.extract_strided_slice %178 {offsets = [0, 256], sizes = [8, 128], strides = [1, 1]} : vector<8x384xf32> to vector<8x128xf32>
    %197 = arith.mulf %186, %196 : vector<8x128xf32>
    %198 = arith.addf %195, %197 : vector<8x128xf32>
    %199 = math.tanh %198 : vector<8x128xf32>
    %cst_81 = arith.constant 1.000000e+00 : f32
    %200 = vector.broadcast %cst_81 : f32 to vector<8x128xf32>
    %201 = arith.subf %200, %194 : vector<8x128xf32>
    %202 = arith.mulf %201, %199 : vector<8x128xf32>
    %203 = arith.mulf %194, %171 : vector<8x128xf32>
    %204 = arith.addf %202, %203 : vector<8x128xf32>
    %c0_82 = arith.constant 0 : index
    %c0_83 = arith.constant 0 : index
    %205 = vector.load %arg12[%c0_82, %c0_83] : memref<8x128xf32, #tpu.memory_space<vmem>>, vector<8x128xf32>
    tpu.vector_store %arg12[%c0_82, %c0_83], %204 {strides = array<i32>} : memref<8x128xf32, #tpu.memory_space<vmem>>, vector<8x128xf32>,
    %c32 = arith.constant 32 : index
    %c0_84 = arith.constant 0 : index
    %206 = vector.load %arg11[%c32, %c0_84] : memref<64x128xf32, #tpu.memory_space<vmem>>, vector<8x128xf32>
    tpu.vector_store %arg11[%c32, %c0_84], %204 {strides = array<i32>} : memref<64x128xf32, #tpu.memory_space<vmem>>, vector<8x128xf32>,
    %c0_85 = arith.constant 0 : index
    %c0_86 = arith.constant 0 : index
    %207 = vector.load %arg12[%c0_85, %c0_86] : memref<8x128xf32, #tpu.memory_space<vmem>>, vector<8x128xf32>
    %208 = vector.extract_strided_slice %26 {offsets = [40, 0], sizes = [8, 384], strides = [1, 1]} : vector<64x384xf32> to vector<8x384xf32>
    %209 = arith.truncf %207 : vector<8x128xf32> to vector<8x128xbf16>
    %c0_87 = arith.constant 0 : index
    %c0_88 = arith.constant 0 : index
    %210 = vector.load %arg7[%c0_87, %c0_88] : memref<128x384xbf16, #tpu.memory_space<vmem>>, vector<128x384xbf16>
    %cst_89 = arith.constant dense<0.000000e+00> : vector<8x384xf32>
    %211 = tpu.matmul %209, %210, %cst_89 {dimension_numbers = #tpu.dot_dimension_numbers<[1], [0], [0], [1], [0, 0, 1, 1], [], []>} : vector<8x128xbf16>, vector<128x384xbf16>, vector<8x384xf32> -> vector<8x384xf32>
    %c0_90 = arith.constant 0 : index
    %c0_91 = arith.constant 0 : index
    %212 = vector.load %arg9[%c0_90, %c0_91] : memref<1x384xf32, #tpu.memory_space<vmem>>, vector<1x384xf32>
    %213 = vector.broadcast %212 : vector<1x384xf32> to vector<8x384xf32>
    %214 = arith.addf %211, %213 : vector<8x384xf32>
    %215 = vector.extract_strided_slice %208 {offsets = [0, 0], sizes = [8, 128], strides = [1, 1]} : vector<8x384xf32> to vector<8x128xf32>
    %216 = vector.extract_strided_slice %214 {offsets = [0, 0], sizes = [8, 128], strides = [1, 1]} : vector<8x384xf32> to vector<8x128xf32>
    %217 = arith.addf %215, %216 : vector<8x128xf32>
    %218 = arith.negf %217 : vector<8x128xf32>
    %219 = math.exp %218 : vector<8x128xf32>
    %cst_92 = arith.constant 1.000000e+00 : f32
    %220 = vector.broadcast %cst_92 : f32 to vector<8x128xf32>
    %221 = arith.addf %220, %219 : vector<8x128xf32>
    %222 = arith.divf %220, %221 : vector<8x128xf32>
    %223 = vector.extract_strided_slice %208 {offsets = [0, 128], sizes = [8, 128], strides = [1, 1]} : vector<8x384xf32> to vector<8x128xf32>
    %224 = vector.extract_strided_slice %214 {offsets = [0, 128], sizes = [8, 128], strides = [1, 1]} : vector<8x384xf32> to vector<8x128xf32>
    %225 = arith.addf %223, %224 : vector<8x128xf32>
    %226 = arith.negf %225 : vector<8x128xf32>
    %227 = math.exp %226 : vector<8x128xf32>
    %cst_93 = arith.constant 1.000000e+00 : f32
    %228 = vector.broadcast %cst_93 : f32 to vector<8x128xf32>
    %229 = arith.addf %228, %227 : vector<8x128xf32>
    %230 = arith.divf %228, %229 : vector<8x128xf32>
    %231 = vector.extract_strided_slice %208 {offsets = [0, 256], sizes = [8, 128], strides = [1, 1]} : vector<8x384xf32> to vector<8x128xf32>
    %232 = vector.extract_strided_slice %214 {offsets = [0, 256], sizes = [8, 128], strides = [1, 1]} : vector<8x384xf32> to vector<8x128xf32>
    %233 = arith.mulf %222, %232 : vector<8x128xf32>
    %234 = arith.addf %231, %233 : vector<8x128xf32>
    %235 = math.tanh %234 : vector<8x128xf32>
    %cst_94 = arith.constant 1.000000e+00 : f32
    %236 = vector.broadcast %cst_94 : f32 to vector<8x128xf32>
    %237 = arith.subf %236, %230 : vector<8x128xf32>
    %238 = arith.mulf %237, %235 : vector<8x128xf32>
    %239 = arith.mulf %230, %207 : vector<8x128xf32>
    %240 = arith.addf %238, %239 : vector<8x128xf32>
    %c0_95 = arith.constant 0 : index
    %c0_96 = arith.constant 0 : index
    %241 = vector.load %arg12[%c0_95, %c0_96] : memref<8x128xf32, #tpu.memory_space<vmem>>, vector<8x128xf32>
    tpu.vector_store %arg12[%c0_95, %c0_96], %240 {strides = array<i32>} : memref<8x128xf32, #tpu.memory_space<vmem>>, vector<8x128xf32>,
    %c40 = arith.constant 40 : index
    %c0_97 = arith.constant 0 : index
    %242 = vector.load %arg11[%c40, %c0_97] : memref<64x128xf32, #tpu.memory_space<vmem>>, vector<8x128xf32>
    tpu.vector_store %arg11[%c40, %c0_97], %240 {strides = array<i32>} : memref<64x128xf32, #tpu.memory_space<vmem>>, vector<8x128xf32>,
    %c0_98 = arith.constant 0 : index
    %c0_99 = arith.constant 0 : index
    %243 = vector.load %arg12[%c0_98, %c0_99] : memref<8x128xf32, #tpu.memory_space<vmem>>, vector<8x128xf32>
    %244 = vector.extract_strided_slice %26 {offsets = [48, 0], sizes = [8, 384], strides = [1, 1]} : vector<64x384xf32> to vector<8x384xf32>
    %245 = arith.truncf %243 : vector<8x128xf32> to vector<8x128xbf16>
    %c0_100 = arith.constant 0 : index
    %c0_101 = arith.constant 0 : index
    %246 = vector.load %arg7[%c0_100, %c0_101] : memref<128x384xbf16, #tpu.memory_space<vmem>>, vector<128x384xbf16>
    %cst_102 = arith.constant dense<0.000000e+00> : vector<8x384xf32>
    %247 = tpu.matmul %245, %246, %cst_102 {dimension_numbers = #tpu.dot_dimension_numbers<[1], [0], [0], [1], [0, 0, 1, 1], [], []>} : vector<8x128xbf16>, vector<128x384xbf16>, vector<8x384xf32> -> vector<8x384xf32>
    %c0_103 = arith.constant 0 : index
    %c0_104 = arith.constant 0 : index
    %248 = vector.load %arg9[%c0_103, %c0_104] : memref<1x384xf32, #tpu.memory_space<vmem>>, vector<1x384xf32>
    %249 = vector.broadcast %248 : vector<1x384xf32> to vector<8x384xf32>
    %250 = arith.addf %247, %249 : vector<8x384xf32>
    %251 = vector.extract_strided_slice %244 {offsets = [0, 0], sizes = [8, 128], strides = [1, 1]} : vector<8x384xf32> to vector<8x128xf32>
    %252 = vector.extract_strided_slice %250 {offsets = [0, 0], sizes = [8, 128], strides = [1, 1]} : vector<8x384xf32> to vector<8x128xf32>
    %253 = arith.addf %251, %252 : vector<8x128xf32>
    %254 = arith.negf %253 : vector<8x128xf32>
    %255 = math.exp %254 : vector<8x128xf32>
    %cst_105 = arith.constant 1.000000e+00 : f32
    %256 = vector.broadcast %cst_105 : f32 to vector<8x128xf32>
    %257 = arith.addf %256, %255 : vector<8x128xf32>
    %258 = arith.divf %256, %257 : vector<8x128xf32>
    %259 = vector.extract_strided_slice %244 {offsets = [0, 128], sizes = [8, 128], strides = [1, 1]} : vector<8x384xf32> to vector<8x128xf32>
    %260 = vector.extract_strided_slice %250 {offsets = [0, 128], sizes = [8, 128], strides = [1, 1]} : vector<8x384xf32> to vector<8x128xf32>
    %261 = arith.addf %259, %260 : vector<8x128xf32>
    %262 = arith.negf %261 : vector<8x128xf32>
    %263 = math.exp %262 : vector<8x128xf32>
    %cst_106 = arith.constant 1.000000e+00 : f32
    %264 = vector.broadcast %cst_106 : f32 to vector<8x128xf32>
    %265 = arith.addf %264, %263 : vector<8x128xf32>
    %266 = arith.divf %264, %265 : vector<8x128xf32>
    %267 = vector.extract_strided_slice %244 {offsets = [0, 256], sizes = [8, 128], strides = [1, 1]} : vector<8x384xf32> to vector<8x128xf32>
    %268 = vector.extract_strided_slice %250 {offsets = [0, 256], sizes = [8, 128], strides = [1, 1]} : vector<8x384xf32> to vector<8x128xf32>
    %269 = arith.mulf %258, %268 : vector<8x128xf32>
    %270 = arith.addf %267, %269 : vector<8x128xf32>
    %271 = math.tanh %270 : vector<8x128xf32>
    %cst_107 = arith.constant 1.000000e+00 : f32
    %272 = vector.broadcast %cst_107 : f32 to vector<8x128xf32>
    %273 = arith.subf %272, %266 : vector<8x128xf32>
    %274 = arith.mulf %273, %271 : vector<8x128xf32>
    %275 = arith.mulf %266, %243 : vector<8x128xf32>
    %276 = arith.addf %274, %275 : vector<8x128xf32>
    %c0_108 = arith.constant 0 : index
    %c0_109 = arith.constant 0 : index
    %277 = vector.load %arg12[%c0_108, %c0_109] : memref<8x128xf32, #tpu.memory_space<vmem>>, vector<8x128xf32>
    tpu.vector_store %arg12[%c0_108, %c0_109], %276 {strides = array<i32>} : memref<8x128xf32, #tpu.memory_space<vmem>>, vector<8x128xf32>,
    %c48 = arith.constant 48 : index
    %c0_110 = arith.constant 0 : index
    %278 = vector.load %arg11[%c48, %c0_110] : memref<64x128xf32, #tpu.memory_space<vmem>>, vector<8x128xf32>
    tpu.vector_store %arg11[%c48, %c0_110], %276 {strides = array<i32>} : memref<64x128xf32, #tpu.memory_space<vmem>>, vector<8x128xf32>,
    %c0_111 = arith.constant 0 : index
    %c0_112 = arith.constant 0 : index
    %279 = vector.load %arg12[%c0_111, %c0_112] : memref<8x128xf32, #tpu.memory_space<vmem>>, vector<8x128xf32>
    %280 = vector.extract_strided_slice %26 {offsets = [56, 0], sizes = [8, 384], strides = [1, 1]} : vector<64x384xf32> to vector<8x384xf32>
    %281 = arith.truncf %279 : vector<8x128xf32> to vector<8x128xbf16>
    %c0_113 = arith.constant 0 : index
    %c0_114 = arith.constant 0 : index
    %282 = vector.load %arg7[%c0_113, %c0_114] : memref<128x384xbf16, #tpu.memory_space<vmem>>, vector<128x384xbf16>
    %cst_115 = arith.constant dense<0.000000e+00> : vector<8x384xf32>
    %283 = tpu.matmul %281, %282, %cst_115 {dimension_numbers = #tpu.dot_dimension_numbers<[1], [0], [0], [1], [0, 0, 1, 1], [], []>} : vector<8x128xbf16>, vector<128x384xbf16>, vector<8x384xf32> -> vector<8x384xf32>
    %c0_116 = arith.constant 0 : index
    %c0_117 = arith.constant 0 : index
    %284 = vector.load %arg9[%c0_116, %c0_117] : memref<1x384xf32, #tpu.memory_space<vmem>>, vector<1x384xf32>
    %285 = vector.broadcast %284 : vector<1x384xf32> to vector<8x384xf32>
    %286 = arith.addf %283, %285 : vector<8x384xf32>
    %287 = vector.extract_strided_slice %280 {offsets = [0, 0], sizes = [8, 128], strides = [1, 1]} : vector<8x384xf32> to vector<8x128xf32>
    %288 = vector.extract_strided_slice %286 {offsets = [0, 0], sizes = [8, 128], strides = [1, 1]} : vector<8x384xf32> to vector<8x128xf32>
    %289 = arith.addf %287, %288 : vector<8x128xf32>
    %290 = arith.negf %289 : vector<8x128xf32>
    %291 = math.exp %290 : vector<8x128xf32>
    %cst_118 = arith.constant 1.000000e+00 : f32
    %292 = vector.broadcast %cst_118 : f32 to vector<8x128xf32>
    %293 = arith.addf %292, %291 : vector<8x128xf32>
    %294 = arith.divf %292, %293 : vector<8x128xf32>
    %295 = vector.extract_strided_slice %280 {offsets = [0, 128], sizes = [8, 128], strides = [1, 1]} : vector<8x384xf32> to vector<8x128xf32>
    %296 = vector.extract_strided_slice %286 {offsets = [0, 128], sizes = [8, 128], strides = [1, 1]} : vector<8x384xf32> to vector<8x128xf32>
    %297 = arith.addf %295, %296 : vector<8x128xf32>
    %298 = arith.negf %297 : vector<8x128xf32>
    %299 = math.exp %298 : vector<8x128xf32>
    %cst_119 = arith.constant 1.000000e+00 : f32
    %300 = vector.broadcast %cst_119 : f32 to vector<8x128xf32>
    %301 = arith.addf %300, %299 : vector<8x128xf32>
    %302 = arith.divf %300, %301 : vector<8x128xf32>
    %303 = vector.extract_strided_slice %280 {offsets = [0, 256], sizes = [8, 128], strides = [1, 1]} : vector<8x384xf32> to vector<8x128xf32>
    %304 = vector.extract_strided_slice %286 {offsets = [0, 256], sizes = [8, 128], strides = [1, 1]} : vector<8x384xf32> to vector<8x128xf32>
    %305 = arith.mulf %294, %304 : vector<8x128xf32>
    %306 = arith.addf %303, %305 : vector<8x128xf32>
    %307 = math.tanh %306 : vector<8x128xf32>
    %cst_120 = arith.constant 1.000000e+00 : f32
    %308 = vector.broadcast %cst_120 : f32 to vector<8x128xf32>
    %309 = arith.subf %308, %302 : vector<8x128xf32>
    %310 = arith.mulf %309, %307 : vector<8x128xf32>
    %311 = arith.mulf %302, %279 : vector<8x128xf32>
    %312 = arith.addf %310, %311 : vector<8x128xf32>
    %c0_121 = arith.constant 0 : index
    %c0_122 = arith.constant 0 : index
    %313 = vector.load %arg12[%c0_121, %c0_122] : memref<8x128xf32, #tpu.memory_space<vmem>>, vector<8x128xf32>
    tpu.vector_store %arg12[%c0_121, %c0_122], %312 {strides = array<i32>} : memref<8x128xf32, #tpu.memory_space<vmem>>, vector<8x128xf32>,
    %c56 = arith.constant 56 : index
    %c0_123 = arith.constant 0 : index
    %314 = vector.load %arg11[%c56, %c0_123] : memref<64x128xf32, #tpu.memory_space<vmem>>, vector<8x128xf32>
    tpu.vector_store %arg11[%c56, %c0_123], %312 {strides = array<i32>} : memref<64x128xf32, #tpu.memory_space<vmem>>, vector<8x128xf32>,
    return
  }
  func.func @transform_0(%arg0: i32) -> (i32, i32) {
    %c0_i32 = arith.constant 0 : i32
    %c0_i32_0 = arith.constant 0 : i32
    return %arg0, %c0_i32 : i32, i32
  }
  func.func @transform_1(%arg0: i32) -> (i32, i32) {
    %c0_i32 = arith.constant 0 : i32
    %c0_i32_0 = arith.constant 0 : i32
    %c0_i32_1 = arith.constant 0 : i32
    return %c0_i32, %c0_i32_0 : i32, i32
  }
  func.func @transform_2(%arg0: i32) -> (i32, i32) {
    %c0_i32 = arith.constant 0 : i32
    %c0_i32_0 = arith.constant 0 : i32
    %c0_i32_1 = arith.constant 0 : i32
    return %c0_i32, %c0_i32_0 : i32, i32
  }
  func.func @transform_3(%arg0: i32) -> (i32, i32) {
    %c0_i32 = arith.constant 0 : i32
    %c0_i32_0 = arith.constant 0 : i32
    %c0_i32_1 = arith.constant 0 : i32
    return %c0_i32, %c0_i32_0 : i32, i32
  }
  func.func @transform_4(%arg0: i32) -> (i32, i32) {
    %c0_i32 = arith.constant 0 : i32
    %c0_i32_0 = arith.constant 0 : i32
    %c0_i32_1 = arith.constant 0 : i32
    return %c0_i32, %c0_i32_0 : i32, i32
  }
  func.func @transform_5(%arg0: i32) -> (i32, i32) {
    %c0_i32 = arith.constant 0 : i32
    %c0_i32_0 = arith.constant 0 : i32
    %c0_i32_1 = arith.constant 0 : i32
    return %c0_i32, %c0_i32_0 : i32, i32
  }
  func.func @transform_6(%arg0: i32) -> (i32, i32) {
    %c0_i32 = arith.constant 0 : i32
    %c0_i32_0 = arith.constant 0 : i32
    %c0_i32_1 = arith.constant 0 : i32
    return %c0_i32, %c0_i32_0 : i32, i32
  }
  func.func @transform_7(%arg0: i32) -> (i32, i32) {
    %c0_i32 = arith.constant 0 : i32
    %c0_i32_0 = arith.constant 0 : i32
    %c0_i32_1 = arith.constant 0 : i32
    return %c0_i32, %c0_i32_0 : i32, i32
  }
  func.func @transform_8(%arg0: i32) -> (i32, i32) {
    %c0_i32 = arith.constant 0 : i32
    %c0_i32_0 = arith.constant 0 : i32
    %c0_i32_1 = arith.constant 0 : i32
    return %c0_i32, %c0_i32_0 : i32, i32
  }
  func.func @transform_9(%arg0: i32) -> (i32, i32) {
    %c0_i32 = arith.constant 0 : i32
    %c0_i32_0 = arith.constant 0 : i32
    %c0_i32_1 = arith.constant 0 : i32
    return %c0_i32, %c0_i32_0 : i32, i32
  }
  func.func @transform_10(%arg0: i32) -> (i32, i32) {
    %c0_i32 = arith.constant 0 : i32
    %c0_i32_0 = arith.constant 0 : i32
    return %arg0, %c0_i32 : i32, i32
  }
}

</mosaic_0001>

<llo_original>
// kernel: sampling_world_model_rollout.1
$region0: #{sampling_world_model_rollout.1}
  #allocation0 [shape = 'u32[]', space=smem, size = 0x4, offset = 0x4, fixed_abs, tag = 'smem constant byte address 0x4 - core index']
  #allocation1 [shape = 'u32[144,128]{1,0:T(1,128)}', space=vmem, size = 0x12000, scoped, tag = 'internal scratch']
  #allocation2 [shape = 'f32[8,128]{1,0:T(8,128)}', space=vmem, size = 0x1000, scoped, tag = 'scratch operand']
  %s0 = inlined_call_operand.vmem [shape: bf16[128,1024], index: 0, kind: input, shape index: {}]
  %s1 = inlined_call_operand.vmem [shape: bf16[1024,256], index: 1, kind: input, shape index: {}]
  %s2 = inlined_call_operand.vmem [shape: f32[1,256], index: 2, kind: input, shape index: {}]
  %s3 = inlined_call_operand.vmem [shape: bf16[256,128], index: 3, kind: input, shape index: {}]
  %s4 = inlined_call_operand.vmem [shape: f32[1,128], index: 4, kind: input, shape index: {}]
  %s5 = inlined_call_operand.vmem [shape: bf16[128,384], index: 5, kind: input, shape index: {}]
  %s6 = inlined_call_operand.vmem [shape: bf16[128,384], index: 6, kind: input, shape index: {}]
  %s7 = inlined_call_operand.vmem [shape: f32[1,384], index: 7, kind: input, shape index: {}]
  %s8 = inlined_call_operand.vmem [shape: f32[1,384], index: 8, kind: input, shape index: {}]
  %s9 = inlined_call_operand.vmem [shape: f32[8,128], index: 9, kind: input, shape index: {}]
  %s10 = inlined_call_operand.vmem [shape: f32[128,128], index: 10, kind: output, shape index: {}]
  %s11 = sld [smem:[#allocation0]]
  $region77: #{sampling_world_model_rollout.1} parent=0
    _
  %s13 = ssub.s32 1, %s11
  %s14 = scalar_select 0, %s13, %s11
  loop: start=0, step=1, limit=4
  $region2: #{sampling_world_model_rollout.1} parent=0 // loop_pre_header
    _
  $region3: #{sampling_world_model_rollout.1} parent=0 // loop_header
    %s16 = sphi 0, %s20
    %p17 = scmp.ge.s32.totalorder %s16, 4
    %s26 = sphi 0, %s28
    %s29 = sphi 0, %s26
    %s30 = sphi 0, %s29
    %s46 = sphi 0, %s30
    %s50 = sphi 0, %s50
    %s52 = sphi 0, %s50
    %s53 = sphi 0, %s52
    %s67 = sphi 0, %s53
    %s71 = sphi 0, %s71
    %s73 = sphi 0, %s71
    %s74 = sphi 0, %s73
    %s88 = sphi 0, %s74
    %s92 = sphi 0, %s92
    %s94 = sphi 0, %s92
    %s95 = sphi 0, %s94
    %s109 = sphi 0, %s95
    %s113 = sphi 0, %s113
    %s115 = sphi 0, %s113
    %s116 = sphi 0, %s115
    %s130 = sphi 0, %s116
    %s134 = sphi 0, %s134
    %s136 = sphi 0, %s134
    %s137 = sphi 0, %s136
    %s151 = sphi 0, %s137
    %s155 = sphi 0, %s155
    %s157 = sphi 0, %s155
    %s158 = sphi 0, %s157
    %s172 = sphi 0, %s158
    %s176 = sphi 0, %s176
    %s178 = sphi 0, %s176
    %s179 = sphi 0, %s178
    %s193 = sphi 0, %s179
    %s197 = sphi 0, %s197
    %s199 = sphi 0, %s197
    %s200 = sphi 0, %s199
    %s214 = sphi 0, %s200
    %s218 = sphi 0, %s218
    %s220 = sphi 0, %s218
    %s221 = sphi 0, %s220
    %s235 = sphi 0, %s221
    %s241 = sphi 0, %s243
    %s244 = sphi 0, %s241
    %s245 = sphi 0, %s244
    %s261 = sphi 0, %s245
  $region4: #{sampling_world_model_rollout.1} parent=0 // loop_header_branch
    %19 = sbr.rel (%p17) target = $region8
  $region5: #{sampling_world_model_rollout.1} parent=0 // loop_body
    %s21 = ssub.s32 %s16, 1
    %s22 = ssub.s32 %s16, 2
    %s23 = sadd.s32 %s16, 1
    %s24 = ssub.s32 %s16, %s23
    %p25 = scmp.eq.s32.totalorder %s24, 0
    %s27 = sadd.s32 %s26, 1
    %s28 = scalar_select %p25, %s26, %s27
    %p31 = pneg %p25
    %p32 = scmp.eq.s32.totalorder %s16, 1
    %p33 = por %p31, %p32
    %p34 = scmp.ne.s32.totalorder %s26, %s29
    %p35 = scmp.eq.s32.totalorder %s16, 0
    %p36 = por %p34, %p35
    %p37 = scmp.ne.s32.totalorder %s26, %s29
    %p38 = scmp.eq.s32.totalorder %s21, 1
    %p39 = por %p37, %p38
    %p40 = scmp.ne.s32.totalorder %s29, %s30
    %p41 = scmp.eq.s32.totalorder %s21, 0
    %p42 = por %p40, %p41
    %p43 = scmp.ne.s32.totalorder %s29, %s30
    %p44 = scmp.eq.s32.totalorder %s22, 1
    %p45 = por %p43, %p44
    %p47 = scmp.ne.s32.totalorder %s30, %s46
    %p48 = scmp.eq.s32.totalorder %s22, 0
    %p49 = por %p47, %p48
    %s51 = sadd.s32 %s50, 1
    %p54 = scmp.eq.s32.totalorder %s16, 1
    %p55 = scmp.ne.s32.totalorder %s50, %s52
    %p56 = scmp.eq.s32.totalorder %s16, 0
    %p57 = por %p55, %p56
    %p58 = scmp.ne.s32.totalorder %s50, %s52
    %p59 = scmp.eq.s32.totalorder %s21, 1
    %p60 = por %p58, %p59
    %p61 = scmp.ne.s32.totalorder %s52, %s53
    %p62 = scmp.eq.s32.totalorder %s21, 0
    %p63 = por %p61, %p62
    %p64 = scmp.ne.s32.totalorder %s52, %s53
    %p65 = scmp.eq.s32.totalorder %s22, 1
    %p66 = por %p64, %p65
    %p68 = scmp.ne.s32.totalorder %s53, %s67
    %p69 = scmp.eq.s32.totalorder %s22, 0
    %p70 = por %p68, %p69
    %s72 = sadd.s32 %s71, 1
    %p75 = scmp.eq.s32.totalorder %s16, 1
    %p76 = scmp.ne.s32.totalorder %s71, %s73
    %p77 = scmp.eq.s32.totalorder %s16, 0
    %p78 = por %p76, %p77
    %p79 = scmp.ne.s32.totalorder %s71, %s73
    %p80 = scmp.eq.s32.totalorder %s21, 1
    %p81 = por %p79, %p80
    %p82 = scmp.ne.s32.totalorder %s73, %s74
    %p83 = scmp.eq.s32.totalorder %s21, 0
    %p84 = por %p82, %p83
    %p85 = scmp.ne.s32.totalorder %s73, %s74
    %p86 = scmp.eq.s32.totalorder %s22, 1
    %p87 = por %p85, %p86
    %p89 = scmp.ne.s32.totalorder %s74, %s88
    %p90 = scmp.eq.s32.totalorder %s22, 0
    %p91 = por %p89, %p90
    %s93 = sadd.s32 %s92, 1
    %p96 = scmp.eq.s32.totalorder %s16, 1
    %p97 = scmp.ne.s32.totalorder %s92, %s94
    %p98 = scmp.eq.s32.totalorder %s16, 0
    %p99 = por %p97, %p98
    %p100 = scmp.ne.s32.totalorder %s92, %s94
    %p101 = scmp.eq.s32.totalorder %s21, 1
    %p102 = por %p100, %p101
    %p103 = scmp.ne.s32.totalorder %s94, %s95
    %p104 = scmp.eq.s32.totalorder %s21, 0
    %p105 = por %p103, %p104
    %p106 = scmp.ne.s32.totalorder %s94, %s95
    %p107 = scmp.eq.s32.totalorder %s22, 1
    %p108 = por %p106, %p107
    %p110 = scmp.ne.s32.totalorder %s95, %s109
    %p111 = scmp.eq.s32.totalorder %s22, 0
    %p112 = por %p110, %p111
    %s114 = sadd.s32 %s113, 1
    %p117 = scmp.eq.s32.totalorder %s16, 1
    %p118 = scmp.ne.s32.totalorder %s113, %s115
    %p119 = scmp.eq.s32.totalorder %s16, 0
    %p120 = por %p118, %p119
    %p121 = scmp.ne.s32.totalorder %s113, %s115
    %p122 = scmp.eq.s32.totalorder %s21, 1
    %p123 = por %p121, %p122
    %p124 = scmp.ne.s32.totalorder %s115, %s116
    %p125 = scmp.eq.s32.totalorder %s21, 0
    %p126 = por %p124, %p125
    %p127 = scmp.ne.s32.totalorder %s115, %s116
    %p128 = scmp.eq.s32.totalorder %s22, 1
    %p129 = por %p127, %p128
    %p131 = scmp.ne.s32.totalorder %s116, %s130
    %p132 = scmp.eq.s32.totalorder %s22, 0
    %p133 = por %p131, %p132
    %s135 = sadd.s32 %s134, 1
    %p138 = scmp.eq.s32.totalorder %s16, 1
    %p139 = scmp.ne.s32.totalorder %s134, %s136
    %p140 = scmp.eq.s32.totalorder %s16, 0
    %p141 = por %p139, %p140
    %p142 = scmp.ne.s32.totalorder %s134, %s136
    %p143 = scmp.eq.s32.totalorder %s21, 1
    %p144 = por %p142, %p143
    %p145 = scmp.ne.s32.totalorder %s136, %s137
    %p146 = scmp.eq.s32.totalorder %s21, 0
    %p147 = por %p145, %p146
    %p148 = scmp.ne.s32.totalorder %s136, %s137
    %p149 = scmp.eq.s32.totalorder %s22, 1
    %p150 = por %p148, %p149
    %p152 = scmp.ne.s32.totalorder %s137, %s151
    %p153 = scmp.eq.s32.totalorder %s22, 0
    %p154 = por %p152, %p153
    %s156 = sadd.s32 %s155, 1
    %p159 = scmp.eq.s32.totalorder %s16, 1
    %p160 = scmp.ne.s32.totalorder %s155, %s157
    %p161 = scmp.eq.s32.totalorder %s16, 0
    %p162 = por %p160, %p161
    %p163 = scmp.ne.s32.totalorder %s155, %s157
    %p164 = scmp.eq.s32.totalorder %s21, 1
    %p165 = por %p163, %p164
    %p166 = scmp.ne.s32.totalorder %s157, %s158
    %p167 = scmp.eq.s32.totalorder %s21, 0
    %p168 = por %p166, %p167
    %p169 = scmp.ne.s32.totalorder %s157, %s158
    %p170 = scmp.eq.s32.totalorder %s22, 1
    %p171 = por %p169, %p170
    %p173 = scmp.ne.s32.totalorder %s158, %s172
    %p174 = scmp.eq.s32.totalorder %s22, 0
    %p175 = por %p173, %p174
    %s177 = sadd.s32 %s176, 1
    %p180 = scmp.eq.s32.totalorder %s16, 1
    %p181 = scmp.ne.s32.totalorder %s176, %s178
    %p182 = scmp.eq.s32.totalorder %s16, 0
    %p183 = por %p181, %p182
    %p184 = scmp.ne.s32.totalorder %s176, %s178
    %p185 = scmp.eq.s32.totalorder %s21, 1
    %p186 = por %p184, %p185
    %p187 = scmp.ne.s32.totalorder %s178, %s179
    %p188 = scmp.eq.s32.totalorder %s21, 0
    %p189 = por %p187, %p188
    %p190 = scmp.ne.s32.totalorder %s178, %s179
    %p191 = scmp.eq.s32.totalorder %s22, 1
    %p192 = por %p190, %p191
    %p194 = scmp.ne.s32.totalorder %s179, %s193
    %p195 = scmp.eq.s32.totalorder %s22, 0
    %p196 = por %p194, %p195
    %s198 = sadd.s32 %s197, 1
    %p201 = scmp.eq.s32.totalorder %s16, 1
    %p202 = scmp.ne.s32.totalorder %s197, %s199
    %p203 = scmp.eq.s32.totalorder %s16, 0
    %p204 = por %p202, %p203
    %p205 = scmp.ne.s32.totalorder %s197, %s199
    %p206 = scmp.eq.s32.totalorder %s21, 1
    %p207 = por %p205, %p206
    %p208 = scmp.ne.s32.totalorder %s199, %s200
    %p209 = scmp.eq.s32.totalorder %s21, 0
    %p210 = por %p208, %p209
    %p211 = scmp.ne.s32.totalorder %s199, %s200
    %p212 = scmp.eq.s32.totalorder %s22, 1
    %p213 = por %p211, %p212
    %p215 = scmp.ne.s32.totalorder %s200, %s214
    %p216 = scmp.eq.s32.totalorder %s22, 0
    %p217 = por %p215, %p216
    %s219 = sadd.s32 %s218, 1
    %p222 = scmp.eq.s32.totalorder %s16, 1
    %p223 = scmp.ne.s32.totalorder %s218, %s220
    %p224 = scmp.eq.s32.totalorder %s16, 0
    %p225 = por %p223, %p224
    %p226 = scmp.ne.s32.totalorder %s218, %s220
    %p227 = scmp.eq.s32.totalorder %s21, 1
    %p228 = por %p226, %p227
    %p229 = scmp.ne.s32.totalorder %s220, %s221
    %p230 = scmp.eq.s32.totalorder %s21, 0
    %p231 = por %p229, %p230
    %p232 = scmp.ne.s32.totalorder %s220, %s221
    %p233 = scmp.eq.s32.totalorder %s22, 1
    %p234 = por %p232, %p233
    %p236 = scmp.ne.s32.totalorder %s221, %s235
    %p237 = scmp.eq.s32.totalorder %s22, 0
    %p238 = por %p236, %p237
    %s239 = ssub.s32 %s16, %s23
    %p240 = scmp.eq.s32.totalorder %s239, 0
    %s242 = sadd.s32 %s241, 1
    %s243 = scalar_select %p240, %s241, %s242
    %p246 = pneg %p240
    %p247 = scmp.eq.s32.totalorder %s16, 1
    %p248 = por %p246, %p247
    %p249 = scmp.ne.s32.totalorder %s241, %s244
    %p250 = scmp.eq.s32.totalorder %s16, 0
    %p251 = por %p249, %p250
    %p252 = scmp.ne.s32.totalorder %s241, %s244
    %p253 = scmp.eq.s32.totalorder %s21, 1
    %p254 = por %p252, %p253
    %p255 = scmp.ne.s32.totalorder %s244, %s245
    %p256 = scmp.eq.s32.totalorder %s21, 0
    %p257 = por %p255, %p256
    %p258 = scmp.ne.s32.totalorder %s244, %s245
    %p259 = scmp.eq.s32.totalorder %s22, 1
    %p260 = por %p258, %p259
    %p262 = scmp.ne.s32.totalorder %s245, %s261
    %p263 = scmp.eq.s32.totalorder %s22, 0
    %p264 = por %p262, %p263
    %p265 = scmp.le.s32.totalorder 1, %s16
    %p266 = scmp.lt.s32.totalorder %s16, 3
    %p267 = pnand %p265, %p266
    %p268 = pneg %p267
    // Predicated region
    $region9: #{sampling_world_model_rollout.1} parent=5 // pred_check
      _
    $region10: #{sampling_world_model_rollout.1} parent=5 // pred_check_branch
      %270 = sbr.rel (%p267) target = $region12
    $region11: #{sampling_world_model_rollout.1} parent=5 // pred_region
      %s271 = ssub.s32 %s16, 1
      // Predicated region
      $region13: #{sampling_world_model_rollout.1} parent=11 // pred_check
        %p272 = pneg %p63
      $region14: #{sampling_world_model_rollout.1} parent=11 // pred_check_branch
        %274 = sbr.rel (%p272) target = $region16
      $region15: #{sampling_world_model_rollout.1} parent=11 // pred_region
        _
      $region16: #{sampling_world_model_rollout.1} parent=11 // pred_fallthru
        _
      // Predicated region
      $region17: #{sampling_world_model_rollout.1} parent=11 // pred_check
        %p275 = pneg %p84
      $region18: #{sampling_world_model_rollout.1} parent=11 // pred_check_branch
        %277 = sbr.rel (%p275) target = $region20
      $region19: #{sampling_world_model_rollout.1} parent=11 // pred_region
        _
      $region20: #{sampling_world_model_rollout.1} parent=11 // pred_fallthru
        _
      // Predicated region
      $region21: #{sampling_world_model_rollout.1} parent=11 // pred_check
        %p278 = pneg %p105
      $region22: #{sampling_world_model_rollout.1} parent=11 // pred_check_branch
        %280 = sbr.rel (%p278) target = $region24
      $region23: #{sampling_world_model_rollout.1} parent=11 // pred_region
        _
      $region24: #{sampling_world_model_rollout.1} parent=11 // pred_fallthru
        _
      // Predicated region
      $region25: #{sampling_world_model_rollout.1} parent=11 // pred_check
        %p281 = pneg %p126
      $region26: #{sampling_world_model_rollout.1} parent=11 // pred_check_branch
        %283 = sbr.rel (%p281) target = $region28
      $region27: #{sampling_world_model_rollout.1} parent=11 // pred_region
        _
      $region28: #{sampling_world_model_rollout.1} parent=11 // pred_fallthru
        _
      // Predicated region
      $region29: #{sampling_world_model_rollout.1} parent=11 // pred_check
        %p284 = pneg %p147
      $region30: #{sampling_world_model_rollout.1} parent=11 // pred_check_branch
        %286 = sbr.rel (%p284) target = $region32
      $region31: #{sampling_world_model_rollout.1} parent=11 // pred_region
        _
      $region32: #{sampling_world_model_rollout.1} parent=11 // pred_fallthru
        _
      // Predicated region
      $region33: #{sampling_world_model_rollout.1} parent=11 // pred_check
        %p287 = pneg %p168
      $region34: #{sampling_world_model_rollout.1} parent=11 // pred_check_branch
        %289 = sbr.rel (%p287) target = $region36
      $region35: #{sampling_world_model_rollout.1} parent=11 // pred_region
        _
      $region36: #{sampling_world_model_rollout.1} parent=11 // pred_fallthru
        _
      // Predicated region
      $region37: #{sampling_world_model_rollout.1} parent=11 // pred_check
        %p290 = pneg %p189
      $region38: #{sampling_world_model_rollout.1} parent=11 // pred_check_branch
        %292 = sbr.rel (%p290) target = $region40
      $region39: #{sampling_world_model_rollout.1} parent=11 // pred_region
        _
      $region40: #{sampling_world_model_rollout.1} parent=11 // pred_fallthru
        _
      // Predicated region
      $region41: #{sampling_world_model_rollout.1} parent=11 // pred_check
        %p293 = pneg %p210
      $region42: #{sampling_world_model_rollout.1} parent=11 // pred_check_branch
        %295 = sbr.rel (%p293) target = $region44
      $region43: #{sampling_world_model_rollout.1} parent=11 // pred_region
        _
      $region44: #{sampling_world_model_rollout.1} parent=11 // pred_fallthru
        _
      // Predicated region
      $region45: #{sampling_world_model_rollout.1} parent=11 // pred_check
        %p296 = pneg %p231
      $region46: #{sampling_world_model_rollout.1} parent=11 // pred_check_branch
        %298 = sbr.rel (%p296) target = $region48
      $region47: #{sampling_world_model_rollout.1} parent=11 // pred_region
        _
      $region48: #{sampling_world_model_rollout.1} parent=11 // pred_fallthru
        _
    $region12: #{sampling_world_model_rollout.1} parent=5 // pred_fallthru
      _
    %p299 = scmp.lt.s32.totalorder %s16, 2
    // Predicated region
    $region49: #{sampling_world_model_rollout.1} parent=5 // pred_check
      %p300 = pneg %p299
    $region50: #{sampling_world_model_rollout.1} parent=5 // pred_check_branch
      %302 = sbr.rel (%p300) target = $region52
    $region51: #{sampling_world_model_rollout.1} parent=5 // pred_region
      // Predicated region
      $region53: #{sampling_world_model_rollout.1} parent=51 // pred_check
        %p303 = pneg %p36
      $region54: #{sampling_world_model_rollout.1} parent=51 // pred_check_branch
        %305 = sbr.rel (%p303) target = $region56
      $region55: #{sampling_world_model_rollout.1} parent=51 // pred_region
        %s306 = smul.u32 8, %s16
        %p307 = scmp.lt.s32.totalorder %s306, 15
        %s308 = scalar_select %p307, %s306, 15
        %s309 = smul.addr %s308, 8
        %s310 = smul.addr %s309, 4
        %s311 = scalar_lea.vmem %s0, %s310
        %s312 = smul.u32 8, %s16
      $region56: #{sampling_world_model_rollout.1} parent=51 // pred_fallthru
        _
    $region52: #{sampling_world_model_rollout.1} parent=5 // pred_fallthru
      _
    %p313 = scmp.le.s32.totalorder 1, %s16
    %p314 = scmp.lt.s32.totalorder %s16, 3
    %p315 = pnand %p313, %p314
    %p316 = pneg %p315
    // Predicated region
    $region57: #{sampling_world_model_rollout.1} parent=5 // pred_check
      _
    $region58: #{sampling_world_model_rollout.1} parent=5 // pred_check_branch
      %318 = sbr.rel (%p315) target = $region60
    $region59: #{sampling_world_model_rollout.1} parent=5 // pred_region
      %s319 = ssub.s32 %s16, 1
      %s320 = smul.u32 8, %s21
      %p321 = scmp.lt.s32.totalorder %s320, 15
      %s322 = scalar_select %p321, %s320, 15
      %s323 = smul.addr %s322, 8
      %s324 = smul.addr %s323, 4
      %s325 = scalar_lea.vmem %s0, %s324
      %p326 = pneg %p42
      %p327 = pneg %p39
      %p328 = pneg %p63
      %p329 = pneg %p60
      %p330 = pneg %p84
      %p331 = pneg %p81
      %p332 = pneg %p105
      %p333 = pneg %p102
      %p334 = pneg %p126
      %p335 = pneg %p123
      %p336 = pneg %p147
      %p337 = pneg %p144
      %p338 = pneg %p168
      %p339 = pneg %p165
      %p340 = pneg %p189
      %p341 = pneg %p186
      %p342 = pneg %p210
      %p343 = pneg %p207
      %p344 = pneg %p231
      %p345 = pneg %p228
      %p346 = pneg %p257
      %p347 = pneg %p254
      %s348 = smul.u32 8, %s21
      %p349 = scmp.lt.s32.totalorder %s348, 15
      %s350 = scalar_select %p349, %s348, 15
      %s351 = smul.addr %s350, 8
      %s352 = scalar_lea.vmem %s10, %s351
      %s353 = smul.u32 8, %s21
      %p354 = scmp.lt.s32.totalorder %s353, 15
      %s355 = scalar_select %p354, %s353, 15
      %s356 = smul.addr %s355, 8
      %s357 = smul.addr %s356, 4
      %s358 = scalar_lea.vmem %s0, %s357
      %s359 = smul.u32 8, %s21
      %s360 = smul.u32 8, %s21
      %p361 = scmp.lt.s32.totalorder %s360, 15
      %s362 = scalar_select %p361, %s360, 15
      %s363 = smul.addr %s362, 8
      %s364 = scalar_lea.vmem %s10, %s363
      %s365 = smul.u32 8, %s21
      %p367 = scmp.eq.s32.totalorder %s21, 0
      // Predicated region
      $region61: #{sampling_world_model_rollout.1} parent=59 // pred_check
        %p368 = pneg %p367
      $region62: #{sampling_world_model_rollout.1} parent=59 // pred_check_branch
        %370 = sbr.rel (%p368) target = $region64
      $region63: #{sampling_world_model_rollout.1} parent=59 // pred_region
        %v371 = vld [vmem:[%s9] sm:$0xff]
        %372 = vst [vmem:[#allocation2] sm:$0xff] %v371
      $region64: #{sampling_world_model_rollout.1} parent=59 // pred_fallthru
        _
      %v373 = vld [vmem:[%s358] sm:$0xff]
      %v374 = vld [vmem:[%s358 + $0x8] sm:$0xff]
      %v375 = vld [vmem:[%s358 + $0x10] sm:$0xff]
      %v376 = vld [vmem:[%s358 + $0x18] sm:$0xff]
      %v377 = vld [vmem:[%s358 + $0x20] sm:$0xff]
      %v378 = vld [vmem:[%s358 + $0x28] sm:$0xff]
      %v379 = vld [vmem:[%s358 + $0x30] sm:$0xff]
      %v380 = vld [vmem:[%s358 + $0x38] sm:$0xff]
      %v381 = vld [vmem:[%s358 + $0x40] sm:$0xff]
      %v382 = vld [vmem:[%s358 + $0x48] sm:$0xff]
      %v383 = vld [vmem:[%s358 + $0x50] sm:$0xff]
      %v384 = vld [vmem:[%s358 + $0x58] sm:$0xff]
      %v385 = vld [vmem:[%s358 + $0x60] sm:$0xff]
      %v386 = vld [vmem:[%s358 + $0x68] sm:$0xff]
      %v387 = vld [vmem:[%s358 + $0x70] sm:$0xff]
      %v388 = vld [vmem:[%s358 + $0x78] sm:$0xff]
      %v389 = vld [vmem:[%s358 + $0x80] sm:$0xff]
      %v390 = vld [vmem:[%s358 + $0x88] sm:$0xff]
      %v391 = vld [vmem:[%s358 + $0x90] sm:$0xff]
      %v392 = vld [vmem:[%s358 + $0x98] sm:$0xff]
      %v393 = vld [vmem:[%s358 + $0xa0] sm:$0xff]
      %v394 = vld [vmem:[%s358 + $0xa8] sm:$0xff]
      %v395 = vld [vmem:[%s358 + $0xb0] sm:$0xff]
      %v396 = vld [vmem:[%s358 + $0xb8] sm:$0xff]
      %v397 = vld [vmem:[%s358 + $0xc0] sm:$0xff]
      %v398 = vld [vmem:[%s358 + $0xc8] sm:$0xff]
      %v399 = vld [vmem:[%s358 + $0xd0] sm:$0xff]
      %v400 = vld [vmem:[%s358 + $0xd8] sm:$0xff]
      %v401 = vld [vmem:[%s358 + $0xe0] sm:$0xff]
      %v402 = vld [vmem:[%s358 + $0xe8] sm:$0xff]
      %v403 = vld [vmem:[%s358 + $0xf0] sm:$0xff]
      %v404 = vld [vmem:[%s358 + $0xf8] sm:$0xff]
      %v405 = vld [vmem:[%s1] sm:$0xff]
      %v406 = vld [vmem:[%s1 + $0x8] sm:$0xff]
      %v407 = vld [vmem:[%s1 + $0x10] sm:$0xff]
      %v408 = vld [vmem:[%s1 + $0x18] sm:$0xff]
      %v409 = vld [vmem:[%s1 + $0x20] sm:$0xff]
      %v410 = vld [vmem:[%s1 + $0x28] sm:$0xff]
      %v411 = vld [vmem:[%s1 + $0x30] sm:$0xff]
      %v412 = vld [vmem:[%s1 + $0x38] sm:$0xff]
      %v413 = vld [vmem:[%s1 + $0x40] sm:$0xff]
      %v414 = vld [vmem:[%s1 + $0x48] sm:$0xff]
      %v415 = vld [vmem:[%s1 + $0x50] sm:$0xff]
      %v416 = vld [vmem:[%s1 + $0x58] sm:$0xff]
      %v417 = vld [vmem:[%s1 + $0x60] sm:$0xff]
      %v418 = vld [vmem:[%s1 + $0x68] sm:$0xff]
      %v419 = vld [vmem:[%s1 + $0x70] sm:$0xff]
      %v420 = vld [vmem:[%s1 + $0x78] sm:$0xff]
      %v421 = vld [vmem:[%s1 + $0x80] sm:$0xff]
      %v422 = vld [vmem:[%s1 + $0x88] sm:$0xff]
      %v423 = vld [vmem:[%s1 + $0x90] sm:$0xff]
      %v424 = vld [vmem:[%s1 + $0x98] sm:$0xff]
      %v425 = vld [vmem:[%s1 + $0xa0] sm:$0xff]
      %v426 = vld [vmem:[%s1 + $0xa8] sm:$0xff]
      %v427 = vld [vmem:[%s1 + $0xb0] sm:$0xff]
      %v428 = vld [vmem:[%s1 + $0xb8] sm:$0xff]
      %v429 = vld [vmem:[%s1 + $0xc0] sm:$0xff]
      %v430 = vld [vmem:[%s1 + $0xc8] sm:$0xff]
      %v431 = vld [vmem:[%s1 + $0xd0] sm:$0xff]
      %v432 = vld [vmem:[%s1 + $0xd8] sm:$0xff]
      %v433 = vld [vmem:[%s1 + $0xe0] sm:$0xff]
      %v434 = vld [vmem:[%s1 + $0xe8] sm:$0xff]
      %v435 = vld [vmem:[%s1 + $0xf0] sm:$0xff]
      %v436 = vld [vmem:[%s1 + $0xf8] sm:$0xff]
      %v437 = vld [vmem:[%s1 + $0x100] sm:$0xff]
      %v438 = vld [vmem:[%s1 + $0x108] sm:$0xff]
      %v439 = vld [vmem:[%s1 + $0x110] sm:$0xff]
      %v440 = vld [vmem:[%s1 + $0x118] sm:$0xff]
      %v441 = vld [vmem:[%s1 + $0x120] sm:$0xff]
      %v442 = vld [vmem:[%s1 + $0x128] sm:$0xff]
      %v443 = vld [vmem:[%s1 + $0x130] sm:$0xff]
      %v444 = vld [vmem:[%s1 + $0x138] sm:$0xff]
      %v445 = vld [vmem:[%s1 + $0x140] sm:$0xff]
      %v446 = vld [vmem:[%s1 + $0x148] sm:$0xff]
      %v447 = vld [vmem:[%s1 + $0x150] sm:$0xff]
      %v448 = vld [vmem:[%s1 + $0x158] sm:$0xff]
      %v449 = vld [vmem:[%s1 + $0x160] sm:$0xff]
      %v450 = vld [vmem:[%s1 + $0x168] sm:$0xff]
      %v451 = vld [vmem:[%s1 + $0x170] sm:$0xff]
      %v452 = vld [vmem:[%s1 + $0x178] sm:$0xff]
      %v453 = vld [vmem:[%s1 + $0x180] sm:$0xff]
      %v454 = vld [vmem:[%s1 + $0x188] sm:$0xff]
      %v455 = vld [vmem:[%s1 + $0x190] sm:$0xff]
      %v456 = vld [vmem:[%s1 + $0x198] sm:$0xff]
      %v457 = vld [vmem:[%s1 + $0x1a0] sm:$0xff]
      %v458 = vld [vmem:[%s1 + $0x1a8] sm:$0xff]
      %v459 = vld [vmem:[%s1 + $0x1b0] sm:$0xff]
      %v460 = vld [vmem:[%s1 + $0x1b8] sm:$0xff]
      %v461 = vld [vmem:[%s1 + $0x1c0] sm:$0xff]
      %v462 = vld [vmem:[%s1 + $0x1c8] sm:$0xff]
      %v463 = vld [vmem:[%s1 + $0x1d0] sm:$0xff]
      %v464 = vld [vmem:[%s1 + $0x1d8] sm:$0xff]
      %v465 = vld [vmem:[%s1 + $0x1e0] sm:$0xff]
      %v466 = vld [vmem:[%s1 + $0x1e8] sm:$0xff]
      %v467 = vld [vmem:[%s1 + $0x1f0] sm:$0xff]
      %v468 = vld [vmem:[%s1 + $0x1f8] sm:$0xff]
      %v469 = vld [vmem:[%s1 + $0x200] sm:$0xff]
      %v470 = vld [vmem:[%s1 + $0x208] sm:$0xff]
      %v471 = vld [vmem:[%s1 + $0x210] sm:$0xff]
      %v472 = vld [vmem:[%s1 + $0x218] sm:$0xff]
      %v473 = vld [vmem:[%s1 + $0x220] sm:$0xff]
      %v474 = vld [vmem:[%s1 + $0x228] sm:$0xff]
      %v475 = vld [vmem:[%s1 + $0x230] sm:$0xff]
      %v476 = vld [vmem:[%s1 + $0x238] sm:$0xff]
      %v477 = vld [vmem:[%s1 + $0x240] sm:$0xff]
      %v478 = vld [vmem:[%s1 + $0x248] sm:$0xff]
      %v479 = vld [vmem:[%s1 + $0x250] sm:$0xff]
      %v480 = vld [vmem:[%s1 + $0x258] sm:$0xff]
      %v481 = vld [vmem:[%s1 + $0x260] sm:$0xff]
      %v482 = vld [vmem:[%s1 + $0x268] sm:$0xff]
      %v483 = vld [vmem:[%s1 + $0x270] sm:$0xff]
      %v484 = vld [vmem:[%s1 + $0x278] sm:$0xff]
      %v485 = vld [vmem:[%s1 + $0x280] sm:$0xff]
      %v486 = vld [vmem:[%s1 + $0x288] sm:$0xff]
      %v487 = vld [vmem:[%s1 + $0x290] sm:$0xff]
      %v488 = vld [vmem:[%s1 + $0x298] sm:$0xff]
      %v489 = vld [vmem:[%s1 + $0x2a0] sm:$0xff]
      %v490 = vld [vmem:[%s1 + $0x2a8] sm:$0xff]
      %v491 = vld [vmem:[%s1 + $0x2b0] sm:$0xff]
      %v492 = vld [vmem:[%s1 + $0x2b8] sm:$0xff]
      %v493 = vld [vmem:[%s1 + $0x2c0] sm:$0xff]
      %v494 = vld [vmem:[%s1 + $0x2c8] sm:$0xff]
      %v495 = vld [vmem:[%s1 + $0x2d0] sm:$0xff]
      %v496 = vld [vmem:[%s1 + $0x2d8] sm:$0xff]
      %v497 = vld [vmem:[%s1 + $0x2e0] sm:$0xff]
      %v498 = vld [vmem:[%s1 + $0x2e8] sm:$0xff]
      %v499 = vld [vmem:[%s1 + $0x2f0] sm:$0xff]
      %v500 = vld [vmem:[%s1 + $0x2f8] sm:$0xff]
      %v501 = vld [vmem:[%s1 + $0x300] sm:$0xff]
      %v502 = vld [vmem:[%s1 + $0x308] sm:$0xff]
      %v503 = vld [vmem:[%s1 + $0x310] sm:$0xff]
      %v504 = vld [vmem:[%s1 + $0x318] sm:$0xff]
      %v505 = vld [vmem:[%s1 + $0x320] sm:$0xff]
      %v506 = vld [vmem:[%s1 + $0x328] sm:$0xff]
      %v507 = vld [vmem:[%s1 + $0x330] sm:$0xff]
      %v508 = vld [vmem:[%s1 + $0x338] sm:$0xff]
      %v509 = vld [vmem:[%s1 + $0x340] sm:$0xff]
      %v510 = vld [vmem:[%s1 + $0x348] sm:$0xff]
      %v511 = vld [vmem:[%s1 + $0x350] sm:$0xff]
      %v512 = vld [vmem:[%s1 + $0x358] sm:$0xff]
      %v513 = vld [vmem:[%s1 + $0x360] sm:$0xff]
      %v514 = vld [vmem:[%s1 + $0x368] sm:$0xff]
      %v515 = vld [vmem:[%s1 + $0x370] sm:$0xff]
      %v516 = vld [vmem:[%s1 + $0x378] sm:$0xff]
      %v517 = vld [vmem:[%s1 + $0x380] sm:$0xff]
      %v518 = vld [vmem:[%s1 + $0x388] sm:$0xff]
      %v519 = vld [vmem:[%s1 + $0x390] sm:$0xff]
      %v520 = vld [vmem:[%s1 + $0x398] sm:$0xff]
      %v521 = vld [vmem:[%s1 + $0x3a0] sm:$0xff]
      %v522 = vld [vmem:[%s1 + $0x3a8] sm:$0xff]
      %v523 = vld [vmem:[%s1 + $0x3b0] sm:$0xff]
      %v524 = vld [vmem:[%s1 + $0x3b8] sm:$0xff]
      %v525 = vld [vmem:[%s1 + $0x3c0] sm:$0xff]
      %v526 = vld [vmem:[%s1 + $0x3c8] sm:$0xff]
      %v527 = vld [vmem:[%s1 + $0x3d0] sm:$0xff]
      %v528 = vld [vmem:[%s1 + $0x3d8] sm:$0xff]
      %v529 = vld [vmem:[%s1 + $0x3e0] sm:$0xff]
      %v530 = vld [vmem:[%s1 + $0x3e8] sm:$0xff]
      %v531 = vld [vmem:[%s1 + $0x3f0] sm:$0xff]
      %v532 = vld [vmem:[%s1 + $0x3f8] sm:$0xff]
      %v565 = vunpack.c.l.b16 %v373
      %v566 = vunpack.c.h.b16 %v373
      %v567 = vunpack.c.l.b16 %v374
      %v568 = vunpack.c.h.b16 %v374
      %v569 = vunpack.c.l.b16 %v375
      %v570 = vunpack.c.h.b16 %v375
      %v571 = vunpack.c.l.b16 %v376
      %v572 = vunpack.c.h.b16 %v376
      %v573 = vunpack.c.l.b16 %v377
      %v574 = vunpack.c.h.b16 %v377
      %v575 = vunpack.c.l.b16 %v378
      %v576 = vunpack.c.h.b16 %v378
      %v577 = vunpack.c.l.b16 %v379
      %v578 = vunpack.c.h.b16 %v379
      %v579 = vunpack.c.l.b16 %v380
      %v580 = vunpack.c.h.b16 %v380
      %v581 = vunpack.c.l.b16 %v381
      %v582 = vunpack.c.h.b16 %v381
      %v583 = vunpack.c.l.b16 %v382
      %v584 = vunpack.c.h.b16 %v382
      %v585 = vunpack.c.l.b16 %v383
      %v586 = vunpack.c.h.b16 %v383
      %v587 = vunpack.c.l.b16 %v384
      %v588 = vunpack.c.h.b16 %v384
      %v589 = vunpack.c.l.b16 %v385
      %v590 = vunpack.c.h.b16 %v385
      %v591 = vunpack.c.l.b16 %v386
      %v592 = vunpack.c.h.b16 %v386
      %v593 = vunpack.c.l.b16 %v387
      %v594 = vunpack.c.h.b16 %v387
      %v595 = vunpack.c.l.b16 %v388
      %v596 = vunpack.c.h.b16 %v388
      %v597 = vunpack.c.l.b16 %v389
      %v598 = vunpack.c.h.b16 %v389
      %v599 = vunpack.c.l.b16 %v390
      %v600 = vunpack.c.h.b16 %v390
      %v601 = vunpack.c.l.b16 %v391
      %v602 = vunpack.c.h.b16 %v391
      %v603 = vunpack.c.l.b16 %v392
      %v604 = vunpack.c.h.b16 %v392
      %v605 = vunpack.c.l.b16 %v393
      %v606 = vunpack.c.h.b16 %v393
      %v607 = vunpack.c.l.b16 %v394
      %v608 = vunpack.c.h.b16 %v394
      %v609 = vunpack.c.l.b16 %v395
      %v610 = vunpack.c.h.b16 %v395
      %v611 = vunpack.c.l.b16 %v396
      %v612 = vunpack.c.h.b16 %v396
      %v613 = vunpack.c.l.b16 %v397
      %v614 = vunpack.c.h.b16 %v397
      %v615 = vunpack.c.l.b16 %v398
      %v616 = vunpack.c.h.b16 %v398
      %v617 = vunpack.c.l.b16 %v399
      %v618 = vunpack.c.h.b16 %v399
      %v619 = vunpack.c.l.b16 %v400
      %v620 = vunpack.c.h.b16 %v400
      %v621 = vunpack.c.l.b16 %v401
      %v622 = vunpack.c.h.b16 %v401
      %v623 = vunpack.c.l.b16 %v402
      %v624 = vunpack.c.h.b16 %v402
      %v625 = vunpack.c.l.b16 %v403
      %v626 = vunpack.c.h.b16 %v403
      %v627 = vunpack.c.l.b16 %v404
      %v628 = vunpack.c.h.b16 %v404
      %v629 = vpack.c.b16 %v573, %v565
      %v630 = vpack.c.b16 %v574, %v566
      %v631 = vpack.c.b16 %v575, %v567
      %v632 = vpack.c.b16 %v576, %v568
      %v633 = vpack.c.b16 %v577, %v569
      %v634 = vpack.c.b16 %v578, %v570
      %v635 = vpack.c.b16 %v579, %v571
      %v636 = vpack.c.b16 %v580, %v572
      %v637 = vpack.c.b16 %v589, %v581
      %v638 = vpack.c.b16 %v590, %v582
      %v639 = vpack.c.b16 %v591, %v583
      %v640 = vpack.c.b16 %v592, %v584
      %v641 = vpack.c.b16 %v593, %v585
      %v642 = vpack.c.b16 %v594, %v586
      %v643 = vpack.c.b16 %v595, %v587
      %v644 = vpack.c.b16 %v596, %v588
      %v645 = vpack.c.b16 %v605, %v597
      %v646 = vpack.c.b16 %v606, %v598
      %v647 = vpack.c.b16 %v607, %v599
      %v648 = vpack.c.b16 %v608, %v600
      %v649 = vpack.c.b16 %v609, %v601
      %v650 = vpack.c.b16 %v610, %v602
      %v651 = vpack.c.b16 %v611, %v603
      %v652 = vpack.c.b16 %v612, %v604
      %v653 = vpack.c.b16 %v621, %v613
      %v654 = vpack.c.b16 %v622, %v614
      %v655 = vpack.c.b16 %v623, %v615
      %v656 = vpack.c.b16 %v624, %v616
      %v657 = vpack.c.b16 %v625, %v617
      %v658 = vpack.c.b16 %v626, %v618
      %v659 = vpack.c.b16 %v627, %v619
      %v660 = vpack.c.b16 %v628, %v620
      %v821 = vunpack.c.l.b16 %v405
      %v822 = vunpack.c.h.b16 %v405
      %v823 = vunpack.c.l.b16 %v406
      %v824 = vunpack.c.h.b16 %v406
      %v825 = vunpack.c.l.b16 %v407
      %v826 = vunpack.c.h.b16 %v407
      %v827 = vunpack.c.l.b16 %v408
      %v828 = vunpack.c.h.b16 %v408
      %v829 = vunpack.c.l.b16 %v409
      %v830 = vunpack.c.h.b16 %v409
      %v831 = vunpack.c.l.b16 %v410
      %v832 = vunpack.c.h.b16 %v410
      %v833 = vunpack.c.l.b16 %v411
      %v834 = vunpack.c.h.b16 %v411
      %v835 = vunpack.c.l.b16 %v412
      %v836 = vunpack.c.h.b16 %v412
      %v837 = vunpack.c.l.b16 %v413
      %v838 = vunpack.c.h.b16 %v413
      %v839 = vunpack.c.l.b16 %v414
      %v840 = vunpack.c.h.b16 %v414
      %v841 = vunpack.c.l.b16 %v415
      %v842 = vunpack.c.h.b16 %v415
      %v843 = vunpack.c.l.b16 %v416
      %v844 = vunpack.c.h.b16 %v416
      %v845 = vunpack.c.l.b16 %v417
      %v846 = vunpack.c.h.b16 %v417
      %v847 = vunpack.c.l.b16 %v418
      %v848 = vunpack.c.h.b16 %v418
      %v849 = vunpack.c.l.b16 %v419
      %v850 = vunpack.c.h.b16 %v419
      %v851 = vunpack.c.l.b16 %v420
      %v852 = vunpack.c.h.b16 %v420
      %v853 = vunpack.c.l.b16 %v421
      %v854 = vunpack.c.h.b16 %v421
      %v855 = vunpack.c.l.b16 %v422
      %v856 = vunpack.c.h.b16 %v422
      %v857 = vunpack.c.l.b16 %v423
      %v858 = vunpack.c.h.b16 %v423
      %v859 = vunpack.c.l.b16 %v424
      %v860 = vunpack.c.h.b16 %v424
      %v861 = vunpack.c.l.b16 %v425
      %v862 = vunpack.c.h.b16 %v425
      %v863 = vunpack.c.l.b16 %v426
      %v864 = vunpack.c.h.b16 %v426
      %v865 = vunpack.c.l.b16 %v427
      %v866 = vunpack.c.h.b16 %v427
      %v867 = vunpack.c.l.b16 %v428
      %v868 = vunpack.c.h.b16 %v428
      %v869 = vunpack.c.l.b16 %v429
      %v870 = vunpack.c.h.b16 %v429
      %v871 = vunpack.c.l.b16 %v430
      %v872 = vunpack.c.h.b16 %v430
      %v873 = vunpack.c.l.b16 %v431
      %v874 = vunpack.c.h.b16 %v431
      %v875 = vunpack.c.l.b16 %v432
      %v876 = vunpack.c.h.b16 %v432
      %v877 = vunpack.c.l.b16 %v433
      %v878 = vunpack.c.h.b16 %v433
      %v879 = vunpack.c.l.b16 %v434
      %v880 = vunpack.c.h.b16 %v434
      %v881 = vunpack.c.l.b16 %v435
      %v882 = vunpack.c.h.b16 %v435
      %v883 = vunpack.c.l.b16 %v436
      %v884 = vunpack.c.h.b16 %v436
      %v885 = vunpack.c.l.b16 %v437
      %v886 = vunpack.c.h.b16 %v437
      %v887 = vunpack.c.l.b16 %v438
      %v888 = vunpack.c.h.b16 %v438
      %v889 = vunpack.c.l.b16 %v439
      %v890 = vunpack.c.h.b16 %v439
      %v891 = vunpack.c.l.b16 %v440
      %v892 = vunpack.c.h.b16 %v440
      %v893 = vunpack.c.l.b16 %v441
      %v894 = vunpack.c.h.b16 %v441
      %v895 = vunpack.c.l.b16 %v442
      %v896 = vunpack.c.h.b16 %v442
      %v897 = vunpack.c.l.b16 %v443
      %v898 = vunpack.c.h.b16 %v443
      %v899 = vunpack.c.l.b16 %v444
      %v900 = vunpack.c.h.b16 %v444
      %v901 = vunpack.c.l.b16 %v445
      %v902 = vunpack.c.h.b16 %v445
      %v903 = vunpack.c.l.b16 %v446
      %v904 = vunpack.c.h.b16 %v446
      %v905 = vunpack.c.l.b16 %v447
      %v906 = vunpack.c.h.b16 %v447
      %v907 = vunpack.c.l.b16 %v448
      %v908 = vunpack.c.h.b16 %v448
      %v909 = vunpack.c.l.b16 %v449
      %v910 = vunpack.c.h.b16 %v449
      %v911 = vunpack.c.l.b16 %v450
      %v912 = vunpack.c.h.b16 %v450
      %v913 = vunpack.c.l.b16 %v451
      %v914 = vunpack.c.h.b16 %v451
      %v915 = vunpack.c.l.b16 %v452
      %v916 = vunpack.c.h.b16 %v452
      %v917 = vunpack.c.l.b16 %v453
      %v918 = vunpack.c.h.b16 %v453
      %v919 = vunpack.c.l.b16 %v454
      %v920 = vunpack.c.h.b16 %v454
      %v921 = vunpack.c.l.b16 %v455
      %v922 = vunpack.c.h.b16 %v455
      %v923 = vunpack.c.l.b16 %v456
      %v924 = vunpack.c.h.b16 %v456
      %v925 = vunpack.c.l.b16 %v457
      %v926 = vunpack.c.h.b16 %v457
      %v927 = vunpack.c.l.b16 %v458
      %v928 = vunpack.c.h.b16 %v458
      %v929 = vunpack.c.l.b16 %v459
      %v930 = vunpack.c.h.b16 %v459
      %v931 = vunpack.c.l.b16 %v460
      %v932 = vunpack.c.h.b16 %v460
      %v933 = vunpack.c.l.b16 %v461
      %v934 = vunpack.c.h.b16 %v461
      %v935 = vunpack.c.l.b16 %v462
      %v936 = vunpack.c.h.b16 %v462
      %v937 = vunpack.c.l.b16 %v463
      %v938 = vunpack.c.h.b16 %v463
      %v939 = vunpack.c.l.b16 %v464
      %v940 = vunpack.c.h.b16 %v464
      %v941 = vunpack.c.l.b16 %v465
      %v942 = vunpack.c.h.b16 %v465
      %v943 = vunpack.c.l.b16 %v466
      %v944 = vunpack.c.h.b16 %v466
      %v945 = vunpack.c.l.b16 %v467
      %v946 = vunpack.c.h.b16 %v467
      %v947 = vunpack.c.l.b16 %v468
      %v948 = vunpack.c.h.b16 %v468
      %v949 = vunpack.c.l.b16 %v469
      %v950 = vunpack.c.h.b16 %v469
      %v951 = vunpack.c.l.b16 %v470
      %v952 = vunpack.c.h.b16 %v470
      %v953 = vunpack.c.l.b16 %v471
      %v954 = vunpack.c.h.b16 %v471
      %v955 = vunpack.c.l.b16 %v472
      %v956 = vunpack.c.h.b16 %v472
      %v957 = vunpack.c.l.b16 %v473
      %v958 = vunpack.c.h.b16 %v473
      %v959 = vunpack.c.l.b16 %v474
      %v960 = vunpack.c.h.b16 %v474
      %v961 = vunpack.c.l.b16 %v475
      %v962 = vunpack.c.h.b16 %v475
      %v963 = vunpack.c.l.b16 %v476
      %v964 = vunpack.c.h.b16 %v476
      %v965 = vunpack.c.l.b16 %v477
      %v966 = vunpack.c.h.b16 %v477
      %v967 = vunpack.c.l.b16 %v478
      %v968 = vunpack.c.h.b16 %v478
      %v969 = vunpack.c.l.b16 %v479
      %v970 = vunpack.c.h.b16 %v479
      %v971 = vunpack.c.l.b16 %v480
      %v972 = vunpack.c.h.b16 %v480
      %v973 = vunpack.c.l.b16 %v481
      %v974 = vunpack.c.h.b16 %v481
      %v975 = vunpack.c.l.b16 %v482
      %v976 = vunpack.c.h.b16 %v482
      %v977 = vunpack.c.l.b16 %v483
      %v978 = vunpack.c.h.b16 %v483
      %v979 = vunpack.c.l.b16 %v484
      %v980 = vunpack.c.h.b16 %v484
      %v981 = vunpack.c.l.b16 %v485
      %v982 = vunpack.c.h.b16 %v485
      %v983 = vunpack.c.l.b16 %v486
      %v984 = vunpack.c.h.b16 %v486
      %v985 = vunpack.c.l.b16 %v487
      %v986 = vunpack.c.h.b16 %v487
      %v987 = vunpack.c.l.b16 %v488
      %v988 = vunpack.c.h.b16 %v488
      %v989 = vunpack.c.l.b16 %v489
      %v990 = vunpack.c.h.b16 %v489
      %v991 = vunpack.c.l.b16 %v490
      %v992 = vunpack.c.h.b16 %v490
      %v993 = vunpack.c.l.b16 %v491
      %v994 = vunpack.c.h.b16 %v491
      %v995 = vunpack.c.l.b16 %v492
      %v996 = vunpack.c.h.b16 %v492
      %v997 = vunpack.c.l.b16 %v493
      %v998 = vunpack.c.h.b16 %v493
      %v999 = vunpack.c.l.b16 %v494
      %v1000 = vunpack.c.h.b16 %v494
      %v1001 = vunpack.c.l.b16 %v495
      %v1002 = vunpack.c.h.b16 %v495
      %v1003 = vunpack.c.l.b16 %v496
      %v1004 = vunpack.c.h.b16 %v496
      %v1005 = vunpack.c.l.b16 %v497
      %v1006 = vunpack.c.h.b16 %v497
      %v1007 = vunpack.c.l.b16 %v498
      %v1008 = vunpack.c.h.b16 %v498
      %v1009 = vunpack.c.l.b16 %v499
      %v1010 = vunpack.c.h.b16 %v499
      %v1011 = vunpack.c.l.b16 %v500
      %v1012 = vunpack.c.h.b16 %v500
      %v1013 = vunpack.c.l.b16 %v501
      %v1014 = vunpack.c.h.b16 %v501
      %v1015 = vunpack.c.l.b16 %v502
      %v1016 = vunpack.c.h.b16 %v502
      %v1017 = vunpack.c.l.b16 %v503
      %v1018 = vunpack.c.h.b16 %v503
      %v1019 = vunpack.c.l.b16 %v504
      %v1020 = vunpack.c.h.b16 %v504
      %v1021 = vunpack.c.l.b16 %v505
      %v1022 = vunpack.c.h.b16 %v505
      %v1023 = vunpack.c.l.b16 %v506
      %v1024 = vunpack.c.h.b16 %v506
      %v1025 = vunpack.c.l.b16 %v507
      %v1026 = vunpack.c.h.b16 %v507
      %v1027 = vunpack.c.l.b16 %v508
      %v1028 = vunpack.c.h.b16 %v508
      %v1029 = vunpack.c.l.b16 %v509
      %v1030 = vunpack.c.h.b16 %v509
      %v1031 = vunpack.c.l.b16 %v510
      %v1032 = vunpack.c.h.b16 %v510
      %v1033 = vunpack.c.l.b16 %v511
      %v1034 = vunpack.c.h.b16 %v511
      %v1035 = vunpack.c.l.b16 %v512
      %v1036 = vunpack.c.h.b16 %v512
      %v1037 = vunpack.c.l.b16 %v513
      %v1038 = vunpack.c.h.b16 %v513
      %v1039 = vunpack.c.l.b16 %v514
      %v1040 = vunpack.c.h.b16 %v514
      %v1041 = vunpack.c.l.b16 %v515
      %v1042 = vunpack.c.h.b16 %v515
      %v1043 = vunpack.c.l.b16 %v516
      %v1044 = vunpack.c.h.b16 %v516
      %v1045 = vunpack.c.l.b16 %v517
      %v1046 = vunpack.c.h.b16 %v517
      %v1047 = vunpack.c.l.b16 %v518
      %v1048 = vunpack.c.h.b16 %v518
      %v1049 = vunpack.c.l.b16 %v519
      %v1050 = vunpack.c.h.b16 %v519
      %v1051 = vunpack.c.l.b16 %v520
      %v1052 = vunpack.c.h.b16 %v520
      %v1053 = vunpack.c.l.b16 %v521
      %v1054 = vunpack.c.h.b16 %v521
      %v1055 = vunpack.c.l.b16 %v522
      %v1056 = vunpack.c.h.b16 %v522
      %v1057 = vunpack.c.l.b16 %v523
      %v1058 = vunpack.c.h.b16 %v523
      %v1059 = vunpack.c.l.b16 %v524
      %v1060 = vunpack.c.h.b16 %v524
      %v1061 = vunpack.c.l.b16 %v525
      %v1062 = vunpack.c.h.b16 %v525
      %v1063 = vunpack.c.l.b16 %v526
      %v1064 = vunpack.c.h.b16 %v526
      %v1065 = vunpack.c.l.b16 %v527
      %v1066 = vunpack.c.h.b16 %v527
      %v1067 = vunpack.c.l.b16 %v528
      %v1068 = vunpack.c.h.b16 %v528
      %v1069 = vunpack.c.l.b16 %v529
      %v1070 = vunpack.c.h.b16 %v529
      %v1071 = vunpack.c.l.b16 %v530
      %v1072 = vunpack.c.h.b16 %v530
      %v1073 = vunpack.c.l.b16 %v531
      %v1074 = vunpack.c.h.b16 %v531
      %v1075 = vunpack.c.l.b16 %v532
      %v1076 = vunpack.c.h.b16 %v532
      %v1077 = vpack.c.b16 %v823, %v821
      %v1078 = vpack.c.b16 %v824, %v822
      %v1079 = vpack.c.b16 %v827, %v825
      %v1080 = vpack.c.b16 %v828, %v826
      %v1081 = vpack.c.b16 %v831, %v829
      %v1082 = vpack.c.b16 %v832, %v830
      %v1083 = vpack.c.b16 %v835, %v833
      %v1084 = vpack.c.b16 %v836, %v834
      %v1085 = vpack.c.b16 %v839, %v837
      %v1086 = vpack.c.b16 %v840, %v838
      %v1087 = vpack.c.b16 %v843, %v841
      %v1088 = vpack.c.b16 %v844, %v842
      %v1089 = vpack.c.b16 %v847, %v845
      %v1090 = vpack.c.b16 %v848, %v846
      %v1091 = vpack.c.b16 %v851, %v849
      %v1092 = vpack.c.b16 %v852, %v850
      %v1093 = vpack.c.b16 %v855, %v853
      %v1094 = vpack.c.b16 %v856, %v854
      %v1095 = vpack.c.b16 %v859, %v857
      %v1096 = vpack.c.b16 %v860, %v858
      %v1097 = vpack.c.b16 %v863, %v861
      %v1098 = vpack.c.b16 %v864, %v862
      %v1099 = vpack.c.b16 %v867, %v865
      %v1100 = vpack.c.b16 %v868, %v866
      %v1101 = vpack.c.b16 %v871, %v869
      %v1102 = vpack.c.b16 %v872, %v870
      %v1103 = vpack.c.b16 %v875, %v873
      %v1104 = vpack.c.b16 %v876, %v874
      %v1105 = vpack.c.b16 %v879, %v877
      %v1106 = vpack.c.b16 %v880, %v878
      %v1107 = vpack.c.b16 %v883, %v881
      %v1108 = vpack.c.b16 %v884, %v882
      %v1109 = vpack.c.b16 %v887, %v885
      %v1110 = vpack.c.b16 %v888, %v886
      %v1111 = vpack.c.b16 %v891, %v889
      %v1112 = vpack.c.b16 %v892, %v890
      %v1113 = vpack.c.b16 %v895, %v893
      %v1114 = vpack.c.b16 %v896, %v894
      %v1115 = vpack.c.b16 %v899, %v897
      %v1116 = vpack.c.b16 %v900, %v898
      %v1117 = vpack.c.b16 %v903, %v901
      %v1118 = vpack.c.b16 %v904, %v902
      %v1119 = vpack.c.b16 %v907, %v905
      %v1120 = vpack.c.b16 %v908, %v906
      %v1121 = vpack.c.b16 %v911, %v909
      %v1122 = vpack.c.b16 %v912, %v910
      %v1123 = vpack.c.b16 %v915, %v913
      %v1124 = vpack.c.b16 %v916, %v914
      %v1125 = vpack.c.b16 %v919, %v917
      %v1126 = vpack.c.b16 %v920, %v918
      %v1127 = vpack.c.b16 %v923, %v921
      %v1128 = vpack.c.b16 %v924, %v922
      %v1129 = vpack.c.b16 %v927, %v925
      %v1130 = vpack.c.b16 %v928, %v926
      %v1131 = vpack.c.b16 %v931, %v929
      %v1132 = vpack.c.b16 %v932, %v930
      %v1133 = vpack.c.b16 %v935, %v933
      %v1134 = vpack.c.b16 %v936, %v934
      %v1135 = vpack.c.b16 %v939, %v937
      %v1136 = vpack.c.b16 %v940, %v938
      %v1137 = vpack.c.b16 %v943, %v941
      %v1138 = vpack.c.b16 %v944, %v942
      %v1139 = vpack.c.b16 %v947, %v945
      %v1140 = vpack.c.b16 %v948, %v946
      %v1141 = vpack.c.b16 %v951, %v949
      %v1142 = vpack.c.b16 %v952, %v950
      %v1143 = vpack.c.b16 %v955, %v953
      %v1144 = vpack.c.b16 %v956, %v954
      %v1145 = vpack.c.b16 %v959, %v957
      %v1146 = vpack.c.b16 %v960, %v958
      %v1147 = vpack.c.b16 %v963, %v961
      %v1148 = vpack.c.b16 %v964, %v962
      %v1149 = vpack.c.b16 %v967, %v965
      %v1150 = vpack.c.b16 %v968, %v966
      %v1151 = vpack.c.b16 %v971, %v969
      %v1152 = vpack.c.b16 %v972, %v970
      %v1153 = vpack.c.b16 %v975, %v973
      %v1154 = vpack.c.b16 %v976, %v974
      %v1155 = vpack.c.b16 %v979, %v977
      %v1156 = vpack.c.b16 %v980, %v978
      %v1157 = vpack.c.b16 %v983, %v981
      %v1158 = vpack.c.b16 %v984, %v982
      %v1159 = vpack.c.b16 %v987, %v985
      %v1160 = vpack.c.b16 %v988, %v986
      %v1161 = vpack.c.b16 %v991, %v989
      %v1162 = vpack.c.b16 %v992, %v990
      %v1163 = vpack.c.b16 %v995, %v993
      %v1164 = vpack.c.b16 %v996, %v994
      %v1165 = vpack.c.b16 %v999, %v997
      %v1166 = vpack.c.b16 %v1000, %v998
      %v1167 = vpack.c.b16 %v1003, %v1001
      %v1168 = vpack.c.b16 %v1004, %v1002
      %v1169 = vpack.c.b16 %v1007, %v1005
      %v1170 = vpack.c.b16 %v1008, %v1006
      %v1171 = vpack.c.b16 %v1011, %v1009
      %v1172 = vpack.c.b16 %v1012, %v1010
      %v1173 = vpack.c.b16 %v1015, %v1013
      %v1174 = vpack.c.b16 %v1016, %v1014
      %v1175 = vpack.c.b16 %v1019, %v1017
      %v1176 = vpack.c.b16 %v1020, %v1018
      %v1177 = vpack.c.b16 %v1023, %v1021
      %v1178 = vpack.c.b16 %v1024, %v1022
      %v1179 = vpack.c.b16 %v1027, %v1025
      %v1180 = vpack.c.b16 %v1028, %v1026
      %v1181 = vpack.c.b16 %v1031, %v1029
      %v1182 = vpack.c.b16 %v1032, %v1030
      %v1183 = vpack.c.b16 %v1035, %v1033
      %v1184 = vpack.c.b16 %v1036, %v1034
      %v1185 = vpack.c.b16 %v1039, %v1037
      %v1186 = vpack.c.b16 %v1040, %v1038
      %v1187 = vpack.c.b16 %v1043, %v1041
      %v1188 = vpack.c.b16 %v1044, %v1042
      %v1189 = vpack.c.b16 %v1047, %v1045
      %v1190 = vpack.c.b16 %v1048, %v1046
      %v1191 = vpack.c.b16 %v1051, %v1049
      %v1192 = vpack.c.b16 %v1052, %v1050
      %v1193 = vpack.c.b16 %v1055, %v1053
      %v1194 = vpack.c.b16 %v1056, %v1054
      %v1195 = vpack.c.b16 %v1059, %v1057
      %v1196 = vpack.c.b16 %v1060, %v1058
      %v1197 = vpack.c.b16 %v1063, %v1061
      %v1198 = vpack.c.b16 %v1064, %v1062
      %v1199 = vpack.c.b16 %v1067, %v1065
      %v1200 = vpack.c.b16 %v1068, %v1066
      %v1201 = vpack.c.b16 %v1071, %v1069
      %v1202 = vpack.c.b16 %v1072, %v1070
      %v1203 = vpack.c.b16 %v1075, %v1073
      %v1204 = vpack.c.b16 %v1076, %v1074
      %1333 = vmatprep.subr.bf16.mxu0 %v1078
      %1334 = vmatpush1.bf16.msra.mxu0 %v1077
      %1335 = vmatprep.subr.bf16.mxu0 %v1080
      %1336 = vmatpush1.bf16.msra.mxu0 %v1079
      %1337 = vmatprep.subr.bf16.mxu0 %v1082
      %1338 = vmatpush1.bf16.msra.mxu0 %v1081
      %1339 = vmatprep.subr.bf16.mxu0 %v1084
      %1340 = vmatpush1.bf16.msra.mxu0 %v1083
      %1341 = vmatprep.subr.bf16.mxu0 %v1086
      %1342 = vmatpush1.bf16.msra.mxu0 %v1085
      %1343 = vmatprep.subr.bf16.mxu0 %v1088
      %1344 = vmatpush1.bf16.msra.mxu0 %v1087
      %1345 = vmatprep.subr.bf16.mxu0 %v1090
      %1346 = vmatpush1.bf16.msra.mxu0 %v1089
      %1347 = vmatprep.subr.bf16.mxu0 %v1092
      %1348 = vmatpush1.bf16.msra.mxu0 %v1091
      %1349 = vmatprep.subr.bf16.mxu0 %v1094
      %1350 = vmatpush1.bf16.msra.mxu0 %v1093
      %1351 = vmatprep.subr.bf16.mxu0 %v1096
      %1352 = vmatpush1.bf16.msra.mxu0 %v1095
      %1353 = vmatprep.subr.bf16.mxu0 %v1098
      %1354 = vmatpush1.bf16.msra.mxu0 %v1097
      %1355 = vmatprep.subr.bf16.mxu0 %v1100
      %1356 = vmatpush1.bf16.msra.mxu0 %v1099
      %1357 = vmatprep.subr.bf16.mxu0 %v1102
      %1358 = vmatpush1.bf16.msra.mxu0 %v1101
      %1359 = vmatprep.subr.bf16.mxu0 %v1104
      %1360 = vmatpush1.bf16.msra.mxu0 %v1103
      %1361 = vmatprep.subr.bf16.mxu0 %v1106
      %1362 = vmatpush1.bf16.msra.mxu0 %v1105
      %1363 = vmatprep.subr.bf16.mxu0 %v1108
      %1364 = vmatpush1.bf16.msra.mxu0 %v1107
      %1365 = vmatprep.mubr.bf16.mxu0 %v630
      %1366 = vmatmul.mubr.bf16.gmra.mrb[0].mxu0 %v629
      %v1367 = vpop.f32.mrb[0].mxu0
      %v1368 = vadd.f32 0.0, %v1367
      %v1369 = vpop.f32.mrb[0].mxu0
      %v1370 = vadd.f32 0.0, %v1369
      %v1371 = vpop.f32.mrb[0].mxu0
      %v1372 = vadd.f32 0.0, %v1371
      %v1373 = vpop.f32.mrb[0].mxu0
      %v1374 = vadd.f32 0.0, %v1373
      %1375 = vmatprep.mubr.bf16.mxu0 %v638
      %1376 = vmatmul.mubr.bf16.gmra.mrb[0].mxu0 %v637
      %v1377 = vpop.f32.mrb[0].mxu0
      %v1378 = vadd.f32 0.0, %v1377
      %v1379 = vpop.f32.mrb[0].mxu0
      %v1380 = vadd.f32 0.0, %v1379
      %v1381 = vpop.f32.mrb[0].mxu0
      %v1382 = vadd.f32 0.0, %v1381
      %v1383 = vpop.f32.mrb[0].mxu0
      %v1384 = vadd.f32 0.0, %v1383
      %1385 = vmatprep.mubr.bf16.mxu0 %v646
      %1386 = vmatmul.mubr.bf16.gmra.mrb[0].mxu0 %v645
      %v1387 = vpop.f32.mrb[0].mxu0
      %v1388 = vadd.f32 0.0, %v1387
      %v1389 = vpop.f32.mrb[0].mxu0
      %v1390 = vadd.f32 0.0, %v1389
      %v1391 = vpop.f32.mrb[0].mxu0
      %v1392 = vadd.f32 0.0, %v1391
      %v1393 = vpop.f32.mrb[0].mxu0
      %v1394 = vadd.f32 0.0, %v1393
      %1395 = vmatprep.mubr.bf16.mxu0 %v654
      %1396 = vmatmul.mubr.bf16.gmra.mrb[0].mxu0 %v653
      %v1397 = vpop.f32.mrb[0].mxu0
      %v1398 = vadd.f32 0.0, %v1397
      %v1399 = vpop.f32.mrb[0].mxu0
      %v1400 = vadd.f32 0.0, %v1399
      %v1401 = vpop.f32.mrb[0].mxu0
      %v1402 = vadd.f32 0.0, %v1401
      %v1403 = vpop.f32.mrb[0].mxu0
      %v1404 = vadd.f32 0.0, %v1403
      %1405 = vdwg.mxu0
      %1406 = vmatprep.subr.bf16.mxu0 %v1110
      %1407 = vmatpush1.bf16.msra.mxu0 %v1109
      %1408 = vmatprep.subr.bf16.mxu0 %v1112
      %1409 = vmatpush1.bf16.msra.mxu0 %v1111
      %1410 = vmatprep.subr.bf16.mxu0 %v1114
      %1411 = vmatpush1.bf16.msra.mxu0 %v1113
      %1412 = vmatprep.subr.bf16.mxu0 %v1116
      %1413 = vmatpush1.bf16.msra.mxu0 %v1115
      %1414 = vmatprep.subr.bf16.mxu0 %v1118
      %1415 = vmatpush1.bf16.msra.mxu0 %v1117
      %1416 = vmatprep.subr.bf16.mxu0 %v1120
      %1417 = vmatpush1.bf16.msra.mxu0 %v1119
      %1418 = vmatprep.subr.bf16.mxu0 %v1122
      %1419 = vmatpush1.bf16.msra.mxu0 %v1121
      %1420 = vmatprep.subr.bf16.mxu0 %v1124
      %1421 = vmatpush1.bf16.msra.mxu0 %v1123
      %1422 = vmatprep.subr.bf16.mxu0 %v1126
      %1423 = vmatpush1.bf16.msra.mxu0 %v1125
      %1424 = vmatprep.subr.bf16.mxu0 %v1128
      %1425 = vmatpush1.bf16.msra.mxu0 %v1127
      %1426 = vmatprep.subr.bf16.mxu0 %v1130
      %1427 = vmatpush1.bf16.msra.mxu0 %v1129
      %1428 = vmatprep.subr.bf16.mxu0 %v1132
      %1429 = vmatpush1.bf16.msra.mxu0 %v1131
      %1430 = vmatprep.subr.bf16.mxu0 %v1134
      %1431 = vmatpush1.bf16.msra.mxu0 %v1133
      %1432 = vmatprep.subr.bf16.mxu0 %v1136
      %1433 = vmatpush1.bf16.msra.mxu0 %v1135
      %1434 = vmatprep.subr.bf16.mxu0 %v1138
      %1435 = vmatpush1.bf16.msra.mxu0 %v1137
      %1436 = vmatprep.subr.bf16.mxu0 %v1140
      %1437 = vmatpush1.bf16.msra.mxu0 %v1139
      %1438 = vmatprep.mubr.bf16.mxu0 %v632
      %1439 = vmatmul.mubr.bf16.gmra.mrb[0].mxu0 %v631
      %v1440 = vpop.f32.mrb[0].mxu0
      %v1441 = vadd.f32 %v1368, %v1440
      %v1442 = vpop.f32.mrb[0].mxu0
      %v1443 = vadd.f32 %v1370, %v1442
      %v1444 = vpop.f32.mrb[0].mxu0
      %v1445 = vadd.f32 %v1372, %v1444
      %v1446 = vpop.f32.mrb[0].mxu0
      %v1447 = vadd.f32 %v1374, %v1446
      %1448 = vmatprep.mubr.bf16.mxu0 %v640
      %1449 = vmatmul.mubr.bf16.gmra.mrb[0].mxu0 %v639
      %v1450 = vpop.f32.mrb[0].mxu0
      %v1451 = vadd.f32 %v1378, %v1450
      %v1452 = vpop.f32.mrb[0].mxu0
      %v1453 = vadd.f32 %v1380, %v1452
      %v1454 = vpop.f32.mrb[0].mxu0
      %v1455 = vadd.f32 %v1382, %v1454
      %v1456 = vpop.f32.mrb[0].mxu0
      %v1457 = vadd.f32 %v1384, %v1456
      %1458 = vmatprep.mubr.bf16.mxu0 %v648
      %1459 = vmatmul.mubr.bf16.gmra.mrb[0].mxu0 %v647
      %v1460 = vpop.f32.mrb[0].mxu0
      %v1461 = vadd.f32 %v1388, %v1460
      %v1462 = vpop.f32.mrb[0].mxu0
      %v1463 = vadd.f32 %v1390, %v1462
      %v1464 = vpop.f32.mrb[0].mxu0
      %v1465 = vadd.f32 %v1392, %v1464
      %v1466 = vpop.f32.mrb[0].mxu0
      %v1467 = vadd.f32 %v1394, %v1466
      %1468 = vmatprep.mubr.bf16.mxu0 %v656
      %1469 = vmatmul.mubr.bf16.gmra.mrb[0].mxu0 %v655
      %v1470 = vpop.f32.mrb[0].mxu0
      %v1471 = vadd.f32 %v1398, %v1470
      %v1472 = vpop.f32.mrb[0].mxu0
      %v1473 = vadd.f32 %v1400, %v1472
      %v1474 = vpop.f32.mrb[0].mxu0
      %v1475 = vadd.f32 %v1402, %v1474
      %v1476 = vpop.f32.mrb[0].mxu0
      %v1477 = vadd.f32 %v1404, %v1476
      %1478 = vdwg.mxu0
      %1479 = vmatprep.subr.bf16.mxu0 %v1142
      %1480 = vmatpush1.bf16.msra.mxu0 %v1141
      %1481 = vmatprep.subr.bf16.mxu0 %v1144
      %1482 = vmatpush1.bf16.msra.mxu0 %v1143
      %1483 = vmatprep.subr.bf16.mxu0 %v1146
      %1484 = vmatpush1.bf16.msra.mxu0 %v1145
      %1485 = vmatprep.subr.bf16.mxu0 %v1148
      %1486 = vmatpush1.bf16.msra.mxu0 %v1147
      %1487 = vmatprep.subr.bf16.mxu0 %v1150
      %1488 = vmatpush1.bf16.msra.mxu0 %v1149
      %1489 = vmatprep.subr.bf16.mxu0 %v1152
      %1490 = vmatpush1.bf16.msra.mxu0 %v1151
      %1491 = vmatprep.subr.bf16.mxu0 %v1154
      %1492 = vmatpush1.bf16.msra.mxu0 %v1153
      %1493 = vmatprep.subr.bf16.mxu0 %v1156
      %1494 = vmatpush1.bf16.msra.mxu0 %v1155
      %1495 = vmatprep.subr.bf16.mxu0 %v1158
      %1496 = vmatpush1.bf16.msra.mxu0 %v1157
      %1497 = vmatprep.subr.bf16.mxu0 %v1160
      %1498 = vmatpush1.bf16.msra.mxu0 %v1159
      %1499 = vmatprep.subr.bf16.mxu0 %v1162
      %1500 = vmatpush1.bf16.msra.mxu0 %v1161
      %1501 = vmatprep.subr.bf16.mxu0 %v1164
      %1502 = vmatpush1.bf16.msra.mxu0 %v1163
      %1503 = vmatprep.subr.bf16.mxu0 %v1166
      %1504 = vmatpush1.bf16.msra.mxu0 %v1165
      %1505 = vmatprep.subr.bf16.mxu0 %v1168
      %1506 = vmatpush1.bf16.msra.mxu0 %v1167
      %1507 = vmatprep.subr.bf16.mxu0 %v1170
      %1508 = vmatpush1.bf16.msra.mxu0 %v1169
      %1509 = vmatprep.subr.bf16.mxu0 %v1172
      %1510 = vmatpush1.bf16.msra.mxu0 %v1171
      %1511 = vmatprep.mubr.bf16.mxu0 %v634
      %1512 = vmatmul.mubr.bf16.gmra.mrb[0].mxu0 %v633
      %v1513 = vpop.f32.mrb[0].mxu0
      %v1514 = vadd.f32 %v1441, %v1513
      %v1515 = vpop.f32.mrb[0].mxu0
      %v1516 = vadd.f32 %v1443, %v1515
      %v1517 = vpop.f32.mrb[0].mxu0
      %v1518 = vadd.f32 %v1445, %v1517
      %v1519 = vpop.f32.mrb[0].mxu0
      %v1520 = vadd.f32 %v1447, %v1519
      %1521 = vmatprep.mubr.bf16.mxu0 %v642
      %1522 = vmatmul.mubr.bf16.gmra.mrb[0].mxu0 %v641
      %v1523 = vpop.f32.mrb[0].mxu0
      %v1524 = vadd.f32 %v1451, %v1523
      %v1525 = vpop.f32.mrb[0].mxu0
      %v1526 = vadd.f32 %v1453, %v1525
      %v1527 = vpop.f32.mrb[0].mxu0
      %v1528 = vadd.f32 %v1455, %v1527
      %v1529 = vpop.f32.mrb[0].mxu0
      %v1530 = vadd.f32 %v1457, %v1529
      %1531 = vmatprep.mubr.bf16.mxu0 %v650
      %1532 = vmatmul.mubr.bf16.gmra.mrb[0].mxu0 %v649
      %v1533 = vpop.f32.mrb[0].mxu0
      %v1534 = vadd.f32 %v1461, %v1533
      %v1535 = vpop.f32.mrb[0].mxu0
      %v1536 = vadd.f32 %v1463, %v1535
      %v1537 = vpop.f32.mrb[0].mxu0
      %v1538 = vadd.f32 %v1465, %v1537
      %v1539 = vpop.f32.mrb[0].mxu0
      %v1540 = vadd.f32 %v1467, %v1539
      %1541 = vmatprep.mubr.bf16.mxu0 %v658
      %1542 = vmatmul.mubr.bf16.gmra.mrb[0].mxu0 %v657
      %v1543 = vpop.f32.mrb[0].mxu0
      %v1544 = vadd.f32 %v1471, %v1543
      %v1545 = vpop.f32.mrb[0].mxu0
      %v1546 = vadd.f32 %v1473, %v1545
      %v1547 = vpop.f32.mrb[0].mxu0
      %v1548 = vadd.f32 %v1475, %v1547
      %v1549 = vpop.f32.mrb[0].mxu0
      %v1550 = vadd.f32 %v1477, %v1549
      %1551 = vdwg.mxu0
      %1552 = vmatprep.subr.bf16.mxu0 %v1174
      %1553 = vmatpush1.bf16.msra.mxu0 %v1173
      %1554 = vmatprep.subr.bf16.mxu0 %v1176
      %1555 = vmatpush1.bf16.msra.mxu0 %v1175
      %1556 = vmatprep.subr.bf16.mxu0 %v1178
      %1557 = vmatpush1.bf16.msra.mxu0 %v1177
      %1558 = vmatprep.subr.bf16.mxu0 %v1180
      %1559 = vmatpush1.bf16.msra.mxu0 %v1179
      %1560 = vmatprep.subr.bf16.mxu0 %v1182
      %1561 = vmatpush1.bf16.msra.mxu0 %v1181
      %1562 = vmatprep.subr.bf16.mxu0 %v1184
      %1563 = vmatpush1.bf16.msra.mxu0 %v1183
      %1564 = vmatprep.subr.bf16.mxu0 %v1186
      %1565 = vmatpush1.bf16.msra.mxu0 %v1185
      %1566 = vmatprep.subr.bf16.mxu0 %v1188
      %1567 = vmatpush1.bf16.msra.mxu0 %v1187
      %1568 = vmatprep.subr.bf16.mxu0 %v1190
      %1569 = vmatpush1.bf16.msra.mxu0 %v1189
      %1570 = vmatprep.subr.bf16.mxu0 %v1192
      %1571 = vmatpush1.bf16.msra.mxu0 %v1191
      %1572 = vmatprep.subr.bf16.mxu0 %v1194
      %1573 = vmatpush1.bf16.msra.mxu0 %v1193
      %1574 = vmatprep.subr.bf16.mxu0 %v1196
      %1575 = vmatpush1.bf16.msra.mxu0 %v1195
      %1576 = vmatprep.subr.bf16.mxu0 %v1198
      %1577 = vmatpush1.bf16.msra.mxu0 %v1197
      %1578 = vmatprep.subr.bf16.mxu0 %v1200
      %1579 = vmatpush1.bf16.msra.mxu0 %v1199
      %1580 = vmatprep.subr.bf16.mxu0 %v1202
      %1581 = vmatpush1.bf16.msra.mxu0 %v1201
      %1582 = vmatprep.subr.bf16.mxu0 %v1204
      %1583 = vmatpush1.bf16.msra.mxu0 %v1203
      %1584 = vmatprep.mubr.bf16.mxu0 %v636
      %1585 = vmatmul.mubr.bf16.gmra.mrb[0].mxu0 %v635
      %v1586 = vpop.f32.mrb[0].mxu0
      %v1587 = vadd.f32 %v1514, %v1586
      %v1588 = vpop.f32.mrb[0].mxu0
      %v1589 = vadd.f32 %v1516, %v1588
      %v1590 = vpop.f32.mrb[0].mxu0
      %v1591 = vadd.f32 %v1518, %v1590
      %v1592 = vpop.f32.mrb[0].mxu0
      %v1593 = vadd.f32 %v1520, %v1592
      %1594 = vmatprep.mubr.bf16.mxu0 %v644
      %1595 = vmatmul.mubr.bf16.gmra.mrb[0].mxu0 %v643
      %v1596 = vpop.f32.mrb[0].mxu0
      %v1597 = vadd.f32 %v1524, %v1596
      %v1598 = vpop.f32.mrb[0].mxu0
      %v1599 = vadd.f32 %v1526, %v1598
      %v1600 = vpop.f32.mrb[0].mxu0
      %v1601 = vadd.f32 %v1528, %v1600
      %v1602 = vpop.f32.mrb[0].mxu0
      %v1603 = vadd.f32 %v1530, %v1602
      %1604 = vmatprep.mubr.bf16.mxu0 %v652
      %1605 = vmatmul.mubr.bf16.gmra.mrb[0].mxu0 %v651
      %v1606 = vpop.f32.mrb[0].mxu0
      %v1607 = vadd.f32 %v1534, %v1606
      %v1608 = vpop.f32.mrb[0].mxu0
      %v1609 = vadd.f32 %v1536, %v1608
      %v1610 = vpop.f32.mrb[0].mxu0
      %v1611 = vadd.f32 %v1538, %v1610
      %v1612 = vpop.f32.mrb[0].mxu0
      %v1613 = vadd.f32 %v1540, %v1612
      %1614 = vmatprep.mubr.bf16.mxu0 %v660
      %1615 = vmatmul.mubr.bf16.gmra.mrb[0].mxu0 %v659
      %v1616 = vpop.f32.mrb[0].mxu0
      %v1617 = vadd.f32 %v1544, %v1616
      %v1618 = vpop.f32.mrb[0].mxu0
      %v1619 = vadd.f32 %v1546, %v1618
      %v1620 = vpop.f32.mrb[0].mxu0
      %v1621 = vadd.f32 %v1548, %v1620
      %v1622 = vpop.f32.mrb[0].mxu0
      %v1623 = vadd.f32 %v1550, %v1622
      %1624 = vdwg.mxu0
      %v1625 = vmul.f32 %v1587, 0.003921569
      %v1626 = vmul.f32 %v1589, 0.003921569
      %v1627 = vmul.f32 %v1591, 0.003921569
      %v1628 = vmul.f32 %v1593, 0.003921569
      %v1629 = vmul.f32 %v1597, 0.003921569
      %v1630 = vmul.f32 %v1599, 0.003921569
      %v1631 = vmul.f32 %v1601, 0.003921569
      %v1632 = vmul.f32 %v1603, 0.003921569
      %v1633 = vmul.f32 %v1607, 0.003921569
      %v1634 = vmul.f32 %v1609, 0.003921569
      %v1635 = vmul.f32 %v1611, 0.003921569
      %v1636 = vmul.f32 %v1613, 0.003921569
      %v1637 = vmul.f32 %v1617, 0.003921569
      %v1638 = vmul.f32 %v1619, 0.003921569
      %v1639 = vmul.f32 %v1621, 0.003921569
      %v1640 = vmul.f32 %v1623, 0.003921569
      %v1641 = vld [vmem:[%s2] sm:$0x3]
      %v1643 = vlaneseq
      %v1644 = vshrl.u32 %v1643, 7
      %v1645 = vsub.s32 0, %v1644
      %v1646 = vrot.slane %v1641, %v1645
      %v1647 = vlaneseq
      %v1648 = vshrl.u32 %v1647, 7
      %v1649 = vsub.s32 1, %v1648
      %v1650 = vrot.slane %v1641, %v1649
      %v1653 = vadd.f32 %v1625, %v1646
      %v1654 = vadd.f32 %v1626, %v1650
      %v1655 = vadd.f32 %v1627, %v1646
      %v1656 = vadd.f32 %v1628, %v1650
      %v1657 = vadd.f32 %v1629, %v1646
      %v1658 = vadd.f32 %v1630, %v1650
      %v1659 = vadd.f32 %v1631, %v1646
      %v1660 = vadd.f32 %v1632, %v1650
      %v1661 = vadd.f32 %v1633, %v1646
      %v1662 = vadd.f32 %v1634, %v1650
      %v1663 = vadd.f32 %v1635, %v1646
      %v1664 = vadd.f32 %v1636, %v1650
      %v1665 = vadd.f32 %v1637, %v1646
      %v1666 = vadd.f32 %v1638, %v1650
      %v1667 = vadd.f32 %v1639, %v1646
      %v1668 = vadd.f32 %v1640, %v1650
      %v1669 = vmax.f32 %v1653, 0.0
      %v1670 = vmax.f32 %v1654, 0.0
      %v1671 = vmax.f32 %v1655, 0.0
      %v1672 = vmax.f32 %v1656, 0.0
      %v1673 = vmax.f32 %v1657, 0.0
      %v1674 = vmax.f32 %v1658, 0.0
      %v1675 = vmax.f32 %v1659, 0.0
      %v1676 = vmax.f32 %v1660, 0.0
      %v1677 = vmax.f32 %v1661, 0.0
      %v1678 = vmax.f32 %v1662, 0.0
      %v1679 = vmax.f32 %v1663, 0.0
      %v1680 = vmax.f32 %v1664, 0.0
      %v1681 = vmax.f32 %v1665, 0.0
      %v1682 = vmax.f32 %v1666, 0.0
      %v1683 = vmax.f32 %v1667, 0.0
      %v1684 = vmax.f32 %v1668, 0.0
      %v1685 = vpack.c.bf16 %v1671, %v1669
      %v1686 = vpack.c.bf16 %v1672, %v1670
      %v1687 = vpack.c.bf16 %v1675, %v1673
      %v1688 = vpack.c.bf16 %v1676, %v1674
      %v1689 = vpack.c.bf16 %v1679, %v1677
      %v1690 = vpack.c.bf16 %v1680, %v1678
      %v1691 = vpack.c.bf16 %v1683, %v1681
      %v1692 = vpack.c.bf16 %v1684, %v1682
      %v1693 = vld [vmem:[%s3] sm:$0xf]
      %v1694 = vld [vmem:[%s3 + $0x4] sm:$0xf]
      %v1695 = vld [vmem:[%s3 + $0x8] sm:$0xf]
      %v1696 = vld [vmem:[%s3 + $0xc] sm:$0xf]
      %v1697 = vld [vmem:[%s3 + $0x10] sm:$0xf]
      %v1698 = vld [vmem:[%s3 + $0x14] sm:$0xf]
      %v1699 = vld [vmem:[%s3 + $0x18] sm:$0xf]
      %v1700 = vld [vmem:[%s3 + $0x1c] sm:$0xf]
      %v1701 = vld [vmem:[%s3 + $0x20] sm:$0xf]
      %v1702 = vld [vmem:[%s3 + $0x24] sm:$0xf]
      %v1703 = vld [vmem:[%s3 + $0x28] sm:$0xf]
      %v1704 = vld [vmem:[%s3 + $0x2c] sm:$0xf]
      %v1705 = vld [vmem:[%s3 + $0x30] sm:$0xf]
      %v1706 = vld [vmem:[%s3 + $0x34] sm:$0xf]
      %v1707 = vld [vmem:[%s3 + $0x38] sm:$0xf]
      %v1708 = vld [vmem:[%s3 + $0x3c] sm:$0xf]
      %v1709 = vld [vmem:[%s3 + $0x40] sm:$0xf]
      %v1710 = vld [vmem:[%s3 + $0x44] sm:$0xf]
      %v1711 = vld [vmem:[%s3 + $0x48] sm:$0xf]
      %v1712 = vld [vmem:[%s3 + $0x4c] sm:$0xf]
      %v1713 = vld [vmem:[%s3 + $0x50] sm:$0xf]
      %v1714 = vld [vmem:[%s3 + $0x54] sm:$0xf]
      %v1715 = vld [vmem:[%s3 + $0x58] sm:$0xf]
      %v1716 = vld [vmem:[%s3 + $0x5c] sm:$0xf]
      %v1717 = vld [vmem:[%s3 + $0x60] sm:$0xf]
      %v1718 = vld [vmem:[%s3 + $0x64] sm:$0xf]
      %v1719 = vld [vmem:[%s3 + $0x68] sm:$0xf]
      %v1720 = vld [vmem:[%s3 + $0x6c] sm:$0xf]
      %v1721 = vld [vmem:[%s3 + $0x70] sm:$0xf]
      %v1722 = vld [vmem:[%s3 + $0x74] sm:$0xf]
      %v1723 = vld [vmem:[%s3 + $0x78] sm:$0xf]
      %v1724 = vld [vmem:[%s3 + $0x7c] sm:$0xf]
      %v1725 = vld [vmem:[%s4] sm:$0x1]
      %v1727 = vlaneseq
      %v1728 = vshrl.u32 %v1727, 7
      %v1729 = vsub.s32 0, %v1728
      %v1730 = vrot.slane %v1725, %v1729
      %v1764 = vunpack.c.l.b16 %v1693
      %v1765 = vunpack.c.l.b16 %v1694
      %v1766 = vunpack.c.l.b16 %v1695
      %v1767 = vunpack.c.l.b16 %v1696
      %v1768 = vunpack.c.l.b16 %v1697
      %v1769 = vunpack.c.l.b16 %v1698
      %v1770 = vunpack.c.l.b16 %v1699
      %v1771 = vunpack.c.l.b16 %v1700
      %v1772 = vunpack.c.l.b16 %v1701
      %v1773 = vunpack.c.l.b16 %v1702
      %v1774 = vunpack.c.l.b16 %v1703
      %v1775 = vunpack.c.l.b16 %v1704
      %v1776 = vunpack.c.l.b16 %v1705
      %v1777 = vunpack.c.l.b16 %v1706
      %v1778 = vunpack.c.l.b16 %v1707
      %v1779 = vunpack.c.l.b16 %v1708
      %v1780 = vunpack.c.l.b16 %v1709
      %v1781 = vunpack.c.l.b16 %v1710
      %v1782 = vunpack.c.l.b16 %v1711
      %v1783 = vunpack.c.l.b16 %v1712
      %v1784 = vunpack.c.l.b16 %v1713
      %v1785 = vunpack.c.l.b16 %v1714
      %v1786 = vunpack.c.l.b16 %v1715
      %v1787 = vunpack.c.l.b16 %v1716
      %v1788 = vunpack.c.l.b16 %v1717
      %v1789 = vunpack.c.l.b16 %v1718
      %v1790 = vunpack.c.l.b16 %v1719
      %v1791 = vunpack.c.l.b16 %v1720
      %v1792 = vunpack.c.l.b16 %v1721
      %v1793 = vunpack.c.l.b16 %v1722
      %v1794 = vunpack.c.l.b16 %v1723
      %v1795 = vunpack.c.l.b16 %v1724
      %v1796 = vpack.c.b16 %v1765, %v1764
      %v1797 = vpack.c.b16 %v1767, %v1766
      %v1798 = vpack.c.b16 %v1769, %v1768
      %v1799 = vpack.c.b16 %v1771, %v1770
      %v1800 = vpack.c.b16 %v1773, %v1772
      %v1801 = vpack.c.b16 %v1775, %v1774
      %v1802 = vpack.c.b16 %v1777, %v1776
      %v1803 = vpack.c.b16 %v1779, %v1778
      %v1804 = vpack.c.b16 %v1781, %v1780
      %v1805 = vpack.c.b16 %v1783, %v1782
      %v1806 = vpack.c.b16 %v1785, %v1784
      %v1807 = vpack.c.b16 %v1787, %v1786
      %v1808 = vpack.c.b16 %v1789, %v1788
      %v1809 = vpack.c.b16 %v1791, %v1790
      %v1810 = vpack.c.b16 %v1793, %v1792
      %v1811 = vpack.c.b16 %v1795, %v1794
      %1828 = vmatprep.subr.bf16.mxu0 0
      %1829 = vmatpush1.bf16.msra.mxu0 %v1796
      %1830 = vmatprep.subr.bf16.mxu0 0
      %1831 = vmatpush1.bf16.msra.mxu0 %v1797
      %1832 = vmatprep.subr.bf16.mxu0 0
      %1833 = vmatpush1.bf16.msra.mxu0 %v1798
      %1834 = vmatprep.subr.bf16.mxu0 0
      %1835 = vmatpush1.bf16.msra.mxu0 %v1799
      %1836 = vmatprep.subr.bf16.mxu0 0
      %1837 = vmatpush1.bf16.msra.mxu0 %v1800
      %1838 = vmatprep.subr.bf16.mxu0 0
      %1839 = vmatpush1.bf16.msra.mxu0 %v1801
      %1840 = vmatprep.subr.bf16.mxu0 0
      %1841 = vmatpush1.bf16.msra.mxu0 %v1802
      %1842 = vmatprep.subr.bf16.mxu0 0
      %1843 = vmatpush1.bf16.msra.mxu0 %v1803
      %1844 = vmatprep.subr.bf16.mxu0 0
      %1845 = vmatpush1.bf16.msra.mxu0 %v1804
      %1846 = vmatprep.subr.bf16.mxu0 0
      %1847 = vmatpush1.bf16.msra.mxu0 %v1805
      %1848 = vmatprep.subr.bf16.mxu0 0
      %1849 = vmatpush1.bf16.msra.mxu0 %v1806
      %1850 = vmatprep.subr.bf16.mxu0 0
      %1851 = vmatpush1.bf16.msra.mxu0 %v1807
      %1852 = vmatprep.subr.bf16.mxu0 0
      %1853 = vmatpush1.bf16.msra.mxu0 %v1808
      %1854 = vmatprep.subr.bf16.mxu0 0
      %1855 = vmatpush1.bf16.msra.mxu0 %v1809
      %1856 = vmatprep.subr.bf16.mxu0 0
      %1857 = vmatpush1.bf16.msra.mxu0 %v1810
      %1858 = vmatprep.subr.bf16.mxu0 0
      %1859 = vmatpush1.bf16.msra.mxu0 %v1811
      %1860 = vmatprep.mubr.bf16.mxu0 %v1686
      %1861 = vmatmul.mubr.bf16.gmra.mrb[0].mxu0 %v1685
      %v1862 = vpop.f32.mrb[0].mxu0
      %v1863 = vadd.f32 %v1730, %v1862
      %v1864 = vpop.f32.mrb[0].mxu0
      %v1865 = vpop.f32.mrb[0].mxu0
      %v1866 = vadd.f32 %v1730, %v1865
      %v1867 = vpop.f32.mrb[0].mxu0
      %1868 = vmatprep.mubr.bf16.mxu0 %v1688
      %1869 = vmatmul.mubr.bf16.gmra.mrb[0].mxu0 %v1687
      %v1870 = vpop.f32.mrb[0].mxu0
      %v1871 = vadd.f32 %v1730, %v1870
      %v1872 = vpop.f32.mrb[0].mxu0
      %v1873 = vpop.f32.mrb[0].mxu0
      %v1874 = vadd.f32 %v1730, %v1873
      %v1875 = vpop.f32.mrb[0].mxu0
      %1876 = vmatprep.mubr.bf16.mxu0 %v1690
      %1877 = vmatmul.mubr.bf16.gmra.mrb[0].mxu0 %v1689
      %v1878 = vpop.f32.mrb[0].mxu0
      %v1879 = vadd.f32 %v1730, %v1878
      %v1880 = vpop.f32.mrb[0].mxu0
      %v1881 = vpop.f32.mrb[0].mxu0
      %v1882 = vadd.f32 %v1730, %v1881
      %v1883 = vpop.f32.mrb[0].mxu0
      %1884 = vmatprep.mubr.bf16.mxu0 %v1692
      %1885 = vmatmul.mubr.bf16.gmra.mrb[0].mxu0 %v1691
      %v1886 = vpop.f32.mrb[0].mxu0
      %v1887 = vadd.f32 %v1730, %v1886
      %v1888 = vpop.f32.mrb[0].mxu0
      %v1889 = vpop.f32.mrb[0].mxu0
      %v1890 = vadd.f32 %v1730, %v1889
      %v1891 = vpop.f32.mrb[0].mxu0
      %1892 = vdwg.mxu0
      %v1893 = vmax.f32 %v1863, 0.0
      %v1894 = vmax.f32 %v1866, 0.0
      %v1895 = vmax.f32 %v1871, 0.0
      %v1896 = vmax.f32 %v1874, 0.0
      %v1897 = vmax.f32 %v1879, 0.0
      %v1898 = vmax.f32 %v1882, 0.0
      %v1899 = vmax.f32 %v1887, 0.0
      %v1900 = vmax.f32 %v1890, 0.0
      %v1901 = vpack.c.bf16 %v1894, %v1893
      %v1902 = vpack.c.bf16 %v1896, %v1895
      %v1903 = vpack.c.bf16 %v1898, %v1897
      %v1904 = vpack.c.bf16 %v1900, %v1899
      %v1905 = vld [vmem:[%s5] sm:$0xff]
      %v1906 = vld [vmem:[%s5 + $0x8] sm:$0xf]
      %v1907 = vld [vmem:[%s5 + $0xc] sm:$0xff]
      %v1908 = vld [vmem:[%s5 + $0x14] sm:$0xf]
      %v1909 = vld [vmem:[%s5 + $0x18] sm:$0xff]
      %v1910 = vld [vmem:[%s5 + $0x20] sm:$0xf]
      %v1911 = vld [vmem:[%s5 + $0x24] sm:$0xff]
      %v1912 = vld [vmem:[%s5 + $0x2c] sm:$0xf]
      %v1913 = vld [vmem:[%s5 + $0x30] sm:$0xff]
      %v1914 = vld [vmem:[%s5 + $0x38] sm:$0xf]
      %v1915 = vld [vmem:[%s5 + $0x3c] sm:$0xff]
      %v1916 = vld [vmem:[%s5 + $0x44] sm:$0xf]
      %v1917 = vld [vmem:[%s5 + $0x48] sm:$0xff]
      %v1918 = vld [vmem:[%s5 + $0x50] sm:$0xf]
      %v1919 = vld [vmem:[%s5 + $0x54] sm:$0xff]
      %v1920 = vld [vmem:[%s5 + $0x5c] sm:$0xf]
      %v1921 = vld [vmem:[%s5 + $0x60] sm:$0xff]
      %v1922 = vld [vmem:[%s5 + $0x68] sm:$0xf]
      %v1923 = vld [vmem:[%s5 + $0x6c] sm:$0xff]
      %v1924 = vld [vmem:[%s5 + $0x74] sm:$0xf]
      %v1925 = vld [vmem:[%s5 + $0x78] sm:$0xff]
      %v1926 = vld [vmem:[%s5 + $0x80] sm:$0xf]
      %v1927 = vld [vmem:[%s5 + $0x84] sm:$0xff]
      %v1928 = vld [vmem:[%s5 + $0x8c] sm:$0xf]
      %v1929 = vld [vmem:[%s5 + $0x90] sm:$0xff]
      %v1930 = vld [vmem:[%s5 + $0x98] sm:$0xf]
      %v1931 = vld [vmem:[%s5 + $0x9c] sm:$0xff]
      %v1932 = vld [vmem:[%s5 + $0xa4] sm:$0xf]
      %v1933 = vld [vmem:[%s5 + $0xa8] sm:$0xff]
      %v1934 = vld [vmem:[%s5 + $0xb0] sm:$0xf]
      %v1935 = vld [vmem:[%s5 + $0xb4] sm:$0xff]
      %v1936 = vld [vmem:[%s5 + $0xbc] sm:$0xf]
      %v1937 = vld [vmem:[%s7] sm:$0x7]
      %v1939 = vlaneseq
      %v1940 = vshrl.u32 %v1939, 7
      %v1941 = vsub.s32 0, %v1940
      %v1942 = vrot.slane %v1937, %v1941
      %v1943 = vlaneseq
      %v1944 = vshrl.u32 %v1943, 7
      %v1945 = vsub.s32 1, %v1944
      %v1946 = vrot.slane %v1937, %v1945
      %v1947 = vlaneseq
      %v1948 = vshrl.u32 %v1947, 7
      %v1949 = vsub.s32 2, %v1948
      %v1950 = vrot.slane %v1937, %v1949
      %v1986 = vunpack.c.l.b16 %v1905
      %v1987 = vunpack.c.h.b16 %v1905
      %v1988 = vunpack.c.l.b16 %v1906
      %v1989 = vunpack.c.l.b16 %v1907
      %v1990 = vunpack.c.h.b16 %v1907
      %v1991 = vunpack.c.l.b16 %v1908
      %v1992 = vunpack.c.l.b16 %v1909
      %v1993 = vunpack.c.h.b16 %v1909
      %v1994 = vunpack.c.l.b16 %v1910
      %v1995 = vunpack.c.l.b16 %v1911
      %v1996 = vunpack.c.h.b16 %v1911
      %v1997 = vunpack.c.l.b16 %v1912
      %v1998 = vunpack.c.l.b16 %v1913
      %v1999 = vunpack.c.h.b16 %v1913
      %v2000 = vunpack.c.l.b16 %v1914
      %v2001 = vunpack.c.l.b16 %v1915
      %v2002 = vunpack.c.h.b16 %v1915
      %v2003 = vunpack.c.l.b16 %v1916
      %v2004 = vunpack.c.l.b16 %v1917
      %v2005 = vunpack.c.h.b16 %v1917
      %v2006 = vunpack.c.l.b16 %v1918
      %v2007 = vunpack.c.l.b16 %v1919
      %v2008 = vunpack.c.h.b16 %v1919
      %v2009 = vunpack.c.l.b16 %v1920
      %v2010 = vunpack.c.l.b16 %v1921
      %v2011 = vunpack.c.h.b16 %v1921
      %v2012 = vunpack.c.l.b16 %v1922
      %v2013 = vunpack.c.l.b16 %v1923
      %v2014 = vunpack.c.h.b16 %v1923
      %v2015 = vunpack.c.l.b16 %v1924
      %v2016 = vunpack.c.l.b16 %v1925
      %v2017 = vunpack.c.h.b16 %v1925
      %v2018 = vunpack.c.l.b16 %v1926
      %v2019 = vunpack.c.l.b16 %v1927
      %v2020 = vunpack.c.h.b16 %v1927
      %v2021 = vunpack.c.l.b16 %v1928
      %v2022 = vunpack.c.l.b16 %v1929
      %v2023 = vunpack.c.h.b16 %v1929
      %v2024 = vunpack.c.l.b16 %v1930
      %v2025 = vunpack.c.l.b16 %v1931
      %v2026 = vunpack.c.h.b16 %v1931
      %v2027 = vunpack.c.l.b16 %v1932
      %v2028 = vunpack.c.l.b16 %v1933
      %v2029 = vunpack.c.h.b16 %v1933
      %v2030 = vunpack.c.l.b16 %v1934
      %v2031 = vunpack.c.l.b16 %v1935
      %v2032 = vunpack.c.h.b16 %v1935
      %v2033 = vunpack.c.l.b16 %v1936
      %v2034 = vpack.c.b16 %v1989, %v1986
      %v2035 = vpack.c.b16 %v1990, %v1987
      %v2036 = vpack.c.b16 %v1991, %v1988
      %v2037 = vpack.c.b16 %v1995, %v1992
      %v2038 = vpack.c.b16 %v1996, %v1993
      %v2039 = vpack.c.b16 %v1997, %v1994
      %v2040 = vpack.c.b16 %v2001, %v1998
      %v2041 = vpack.c.b16 %v2002, %v1999
      %v2042 = vpack.c.b16 %v2003, %v2000
      %v2043 = vpack.c.b16 %v2007, %v2004
      %v2044 = vpack.c.b16 %v2008, %v2005
      %v2045 = vpack.c.b16 %v2009, %v2006
      %v2046 = vpack.c.b16 %v2013, %v2010
      %v2047 = vpack.c.b16 %v2014, %v2011
      %v2048 = vpack.c.b16 %v2015, %v2012
      %v2049 = vpack.c.b16 %v2019, %v2016
      %v2050 = vpack.c.b16 %v2020, %v2017
      %v2051 = vpack.c.b16 %v2021, %v2018
      %v2052 = vpack.c.b16 %v2025, %v2022
      %v2053 = vpack.c.b16 %v2026, %v2023
      %v2054 = vpack.c.b16 %v2027, %v2024
      %v2055 = vpack.c.b16 %v2031, %v2028
      %v2056 = vpack.c.b16 %v2032, %v2029
      %v2057 = vpack.c.b16 %v2033, %v2030
      %2082 = vmatprep.subr.bf16.mxu0 %v2035
      %2083 = vmatpush1.bf16.msra.mxu0 %v2034
      %2084 = vmatprep.subr.bf16.mxu0 %v2038
      %2085 = vmatpush1.bf16.msra.mxu0 %v2037
      %2086 = vmatprep.subr.bf16.mxu0 %v2041
      %2087 = vmatpush1.bf16.msra.mxu0 %v2040
      %2088 = vmatprep.subr.bf16.mxu0 %v2044
      %2089 = vmatpush1.bf16.msra.mxu0 %v2043
      %2090 = vmatprep.subr.bf16.mxu0 %v2047
      %2091 = vmatpush1.bf16.msra.mxu0 %v2046
      %2092 = vmatprep.subr.bf16.mxu0 %v2050
      %2093 = vmatpush1.bf16.msra.mxu0 %v2049
      %2094 = vmatprep.subr.bf16.mxu0 %v2053
      %2095 = vmatpush1.bf16.msra.mxu0 %v2052
      %2096 = vmatprep.subr.bf16.mxu0 %v2056
      %2097 = vmatpush1.bf16.msra.mxu0 %v2055
      %2098 = vmatprep.subr.bf16.mxu0 0
      %2099 = vmatpush1.bf16.msra.mxu0 0
      %2100 = vmatprep.subr.bf16.mxu0 0
      %2101 = vmatpush1.bf16.msra.mxu0 0
      %2102 = vmatprep.subr.bf16.mxu0 0
      %2103 = vmatpush1.bf16.msra.mxu0 0
      %2104 = vmatprep.subr.bf16.mxu0 0
      %2105 = vmatpush1.bf16.msra.mxu0 0
      %2106 = vmatprep.subr.bf16.mxu0 0
      %2107 = vmatpush1.bf16.msra.mxu0 0
      %2108 = vmatprep.subr.bf16.mxu0 0
      %2109 = vmatpush1.bf16.msra.mxu0 0
      %2110 = vmatprep.subr.bf16.mxu0 0
      %2111 = vmatpush1.bf16.msra.mxu0 0
      %2112 = vmatprep.subr.bf16.mxu0 0
      %2113 = vmatpush1.bf16.msra.mxu0 0
      %2114 = vmatprep.mubr.bf16.mxu0 0
      %2115 = vmatmul.mubr.bf16.gmra.mrb[0].mxu0 %v1901
      %v2116 = vpop.f32.mrb[0].mxu0
      %v2117 = vadd.f32 %v1942, %v2116
      %v2118 = vpop.f32.mrb[0].mxu0
      %v2119 = vadd.f32 %v1946, %v2118
      %v2120 = vpop.f32.mrb[0].mxu0
      %v2121 = vadd.f32 %v1942, %v2120
      %v2122 = vpop.f32.mrb[0].mxu0
      %v2123 = vadd.f32 %v1946, %v2122
      %2124 = vmatprep.mubr.bf16.mxu0 0
      %2125 = vmatmul.mubr.bf16.gmra.mrb[0].mxu0 %v1902
      %v2126 = vpop.f32.mrb[0].mxu0
      %v2127 = vadd.f32 %v1942, %v2126
      %v2128 = vpop.f32.mrb[0].mxu0
      %v2129 = vadd.f32 %v1946, %v2128
      %v2130 = vpop.f32.mrb[0].mxu0
      %v2131 = vadd.f32 %v1942, %v2130
      %v2132 = vpop.f32.mrb[0].mxu0
      %v2133 = vadd.f32 %v1946, %v2132
      %2134 = vmatprep.mubr.bf16.mxu0 0
      %2135 = vmatmul.mubr.bf16.gmra.mrb[0].mxu0 %v1903
      %v2136 = vpop.f32.mrb[0].mxu0
      %v2137 = vadd.f32 %v1942, %v2136
      %v2138 = vpop.f32.mrb[0].mxu0
      %v2139 = vadd.f32 %v1946, %v2138
      %v2140 = vpop.f32.mrb[0].mxu0
      %v2141 = vadd.f32 %v1942, %v2140
      %v2142 = vpop.f32.mrb[0].mxu0
      %v2143 = vadd.f32 %v1946, %v2142
      %2144 = vmatprep.mubr.bf16.mxu0 0
      %2145 = vmatmul.mubr.bf16.gmra.mrb[0].mxu0 %v1904
      %v2146 = vpop.f32.mrb[0].mxu0
      %v2147 = vadd.f32 %v1942, %v2146
      %v2148 = vpop.f32.mrb[0].mxu0
      %v2149 = vadd.f32 %v1946, %v2148
      %v2150 = vpop.f32.mrb[0].mxu0
      %v2151 = vadd.f32 %v1942, %v2150
      %v2152 = vpop.f32.mrb[0].mxu0
      %v2153 = vadd.f32 %v1946, %v2152
      %2154 = vdwg.mxu0
      %2155 = vmatprep.subr.bf16.mxu0 0
      %2156 = vmatpush1.bf16.msra.mxu0 %v2036
      %2157 = vmatprep.subr.bf16.mxu0 0
      %2158 = vmatpush1.bf16.msra.mxu0 %v2039
      %2159 = vmatprep.subr.bf16.mxu0 0
      %2160 = vmatpush1.bf16.msra.mxu0 %v2042
      %2161 = vmatprep.subr.bf16.mxu0 0
      %2162 = vmatpush1.bf16.msra.mxu0 %v2045
      %2163 = vmatprep.subr.bf16.mxu0 0
      %2164 = vmatpush1.bf16.msra.mxu0 %v2048
      %2165 = vmatprep.subr.bf16.mxu0 0
      %2166 = vmatpush1.bf16.msra.mxu0 %v2051
      %2167 = vmatprep.subr.bf16.mxu0 0
      %2168 = vmatpush1.bf16.msra.mxu0 %v2054
      %2169 = vmatprep.subr.bf16.mxu0 0
      %2170 = vmatpush1.bf16.msra.mxu0 %v2057
      %2171 = vmatprep.subr.bf16.mxu0 0
      %2172 = vmatpush1.bf16.msra.mxu0 0
      %2173 = vmatprep.subr.bf16.mxu0 0
      %2174 = vmatpush1.bf16.msra.mxu0 0
      %2175 = vmatprep.subr.bf16.mxu0 0
      %2176 = vmatpush1.bf16.msra.mxu0 0
      %2177 = vmatprep.subr.bf16.mxu0 0
      %2178 = vmatpush1.bf16.msra.mxu0 0
      %2179 = vmatprep.subr.bf16.mxu0 0
      %2180 = vmatpush1.bf16.msra.mxu0 0
      %2181 = vmatprep.subr.bf16.mxu0 0
      %2182 = vmatpush1.bf16.msra.mxu0 0
      %2183 = vmatprep.subr.bf16.mxu0 0
      %2184 = vmatpush1.bf16.msra.mxu0 0
      %2185 = vmatprep.subr.bf16.mxu0 0
      %2186 = vmatpush1.bf16.msra.mxu0 0
      %2187 = vmatprep.mubr.bf16.mxu0 0
      %2188 = vmatmul.mubr.bf16.gmra.mrb[0].mxu0 %v1901
      %v2189 = vpop.f32.mrb[0].mxu0
      %v2190 = vadd.f32 %v1950, %v2189
      %v2191 = vpop.f32.mrb[0].mxu0
      %v2192 = vpop.f32.mrb[0].mxu0
      %v2193 = vadd.f32 %v1950, %v2192
      %v2194 = vpop.f32.mrb[0].mxu0
      %2195 = vmatprep.mubr.bf16.mxu0 0
      %2196 = vmatmul.mubr.bf16.gmra.mrb[0].mxu0 %v1902
      %v2197 = vpop.f32.mrb[0].mxu0
      %v2198 = vadd.f32 %v1950, %v2197
      %v2199 = vpop.f32.mrb[0].mxu0
      %v2200 = vpop.f32.mrb[0].mxu0
      %v2201 = vadd.f32 %v1950, %v2200
      %v2202 = vpop.f32.mrb[0].mxu0
      %2203 = vmatprep.mubr.bf16.mxu0 0
      %2204 = vmatmul.mubr.bf16.gmra.mrb[0].mxu0 %v1903
      %v2205 = vpop.f32.mrb[0].mxu0
      %v2206 = vadd.f32 %v1950, %v2205
      %v2207 = vpop.f32.mrb[0].mxu0
      %v2208 = vpop.f32.mrb[0].mxu0
      %v2209 = vadd.f32 %v1950, %v2208
      %v2210 = vpop.f32.mrb[0].mxu0
      %2211 = vmatprep.mubr.bf16.mxu0 0
      %2212 = vmatmul.mubr.bf16.gmra.mrb[0].mxu0 %v1904
      %v2213 = vpop.f32.mrb[0].mxu0
      %v2214 = vadd.f32 %v1950, %v2213
      %v2215 = vpop.f32.mrb[0].mxu0
      %v2216 = vpop.f32.mrb[0].mxu0
      %v2217 = vadd.f32 %v1950, %v2216
      %v2218 = vpop.f32.mrb[0].mxu0
      %2219 = vdwg.mxu0
      %v2220 = vld [vmem:[#allocation2] sm:$0xff]
      %v2221 = vpack.c.bf16 %v2220, %v2220
      %v2222 = vld [vmem:[%s6] sm:$0xff]
      %v2223 = vld [vmem:[%s6 + $0x8] sm:$0xf]
      %v2224 = vld [vmem:[%s6 + $0xc] sm:$0xff]
      %v2225 = vld [vmem:[%s6 + $0x14] sm:$0xf]
      %v2226 = vld [vmem:[%s6 + $0x18] sm:$0xff]
      %v2227 = vld [vmem:[%s6 + $0x20] sm:$0xf]
      %v2228 = vld [vmem:[%s6 + $0x24] sm:$0xff]
      %v2229 = vld [vmem:[%s6 + $0x2c] sm:$0xf]
      %v2230 = vld [vmem:[%s6 + $0x30] sm:$0xff]
      %v2231 = vld [vmem:[%s6 + $0x38] sm:$0xf]
      %v2232 = vld [vmem:[%s6 + $0x3c] sm:$0xff]
      %v2233 = vld [vmem:[%s6 + $0x44] sm:$0xf]
      %v2234 = vld [vmem:[%s6 + $0x48] sm:$0xff]
      %v2235 = vld [vmem:[%s6 + $0x50] sm:$0xf]
      %v2236 = vld [vmem:[%s6 + $0x54] sm:$0xff]
      %v2237 = vld [vmem:[%s6 + $0x5c] sm:$0xf]
      %v2238 = vld [vmem:[%s6 + $0x60] sm:$0xff]
      %v2239 = vld [vmem:[%s6 + $0x68] sm:$0xf]
      %v2240 = vld [vmem:[%s6 + $0x6c] sm:$0xff]
      %v2241 = vld [vmem:[%s6 + $0x74] sm:$0xf]
      %v2242 = vld [vmem:[%s6 + $0x78] sm:$0xff]
      %v2243 = vld [vmem:[%s6 + $0x80] sm:$0xf]
      %v2244 = vld [vmem:[%s6 + $0x84] sm:$0xff]
      %v2245 = vld [vmem:[%s6 + $0x8c] sm:$0xf]
      %v2246 = vld [vmem:[%s6 + $0x90] sm:$0xff]
      %v2247 = vld [vmem:[%s6 + $0x98] sm:$0xf]
      %v2248 = vld [vmem:[%s6 + $0x9c] sm:$0xff]
      %v2249 = vld [vmem:[%s6 + $0xa4] sm:$0xf]
      %v2250 = vld [vmem:[%s6 + $0xa8] sm:$0xff]
      %v2251 = vld [vmem:[%s6 + $0xb0] sm:$0xf]
      %v2252 = vld [vmem:[%s6 + $0xb4] sm:$0xff]
      %v2253 = vld [vmem:[%s6 + $0xbc] sm:$0xf]
      %v2254 = vld [vmem:[%s8] sm:$0x7]
      %v2256 = vlaneseq
      %v2257 = vshrl.u32 %v2256, 7
      %v2258 = vsub.s32 0, %v2257
      %v2259 = vrot.slane %v2254, %v2258
      %v2260 = vlaneseq
      %v2261 = vshrl.u32 %v2260, 7
      %v2262 = vsub.s32 1, %v2261
      %v2263 = vrot.slane %v2254, %v2262
      %v2264 = vlaneseq
      %v2265 = vshrl.u32 %v2264, 7
      %v2266 = vsub.s32 2, %v2265
      %v2267 = vrot.slane %v2254, %v2266
      %v2303 = vunpack.c.l.b16 %v2222
      %v2304 = vunpack.c.h.b16 %v2222
      %v2305 = vunpack.c.l.b16 %v2223
      %v2306 = vunpack.c.l.b16 %v2224
      %v2307 = vunpack.c.h.b16 %v2224
      %v2308 = vunpack.c.l.b16 %v2225
      %v2309 = vunpack.c.l.b16 %v2226
      %v2310 = vunpack.c.h.b16 %v2226
      %v2311 = vunpack.c.l.b16 %v2227
      %v2312 = vunpack.c.l.b16 %v2228
      %v2313 = vunpack.c.h.b16 %v2228
      %v2314 = vunpack.c.l.b16 %v2229
      %v2315 = vunpack.c.l.b16 %v2230
      %v2316 = vunpack.c.h.b16 %v2230
      %v2317 = vunpack.c.l.b16 %v2231
      %v2318 = vunpack.c.l.b16 %v2232
      %v2319 = vunpack.c.h.b16 %v2232
      %v2320 = vunpack.c.l.b16 %v2233
      %v2321 = vunpack.c.l.b16 %v2234
      %v2322 = vunpack.c.h.b16 %v2234
      %v2323 = vunpack.c.l.b16 %v2235
      %v2324 = vunpack.c.l.b16 %v2236
      %v2325 = vunpack.c.h.b16 %v2236
      %v2326 = vunpack.c.l.b16 %v2237
      %v2327 = vunpack.c.l.b16 %v2238
      %v2328 = vunpack.c.h.b16 %v2238
      %v2329 = vunpack.c.l.b16 %v2239
      %v2330 = vunpack.c.l.b16 %v2240
      %v2331 = vunpack.c.h.b16 %v2240
      %v2332 = vunpack.c.l.b16 %v2241
      %v2333 = vunpack.c.l.b16 %v2242
      %v2334 = vunpack.c.h.b16 %v2242
      %v2335 = vunpack.c.l.b16 %v2243
      %v2336 = vunpack.c.l.b16 %v2244
      %v2337 = vunpack.c.h.b16 %v2244
      %v2338 = vunpack.c.l.b16 %v2245
      %v2339 = vunpack.c.l.b16 %v2246
      %v2340 = vunpack.c.h.b16 %v2246
      %v2341 = vunpack.c.l.b16 %v2247
      %v2342 = vunpack.c.l.b16 %v2248
      %v2343 = vunpack.c.h.b16 %v2248
      %v2344 = vunpack.c.l.b16 %v2249
      %v2345 = vunpack.c.l.b16 %v2250
      %v2346 = vunpack.c.h.b16 %v2250
      %v2347 = vunpack.c.l.b16 %v2251
      %v2348 = vunpack.c.l.b16 %v2252
      %v2349 = vunpack.c.h.b16 %v2252
      %v2350 = vunpack.c.l.b16 %v2253
      %v2351 = vpack.c.b16 %v2306, %v2303
      %v2352 = vpack.c.b16 %v2307, %v2304
      %v2353 = vpack.c.b16 %v2308, %v2305
      %v2354 = vpack.c.b16 %v2312, %v2309
      %v2355 = vpack.c.b16 %v2313, %v2310
      %v2356 = vpack.c.b16 %v2314, %v2311
      %v2357 = vpack.c.b16 %v2318, %v2315
      %v2358 = vpack.c.b16 %v2319, %v2316
      %v2359 = vpack.c.b16 %v2320, %v2317
      %v2360 = vpack.c.b16 %v2324, %v2321
      %v2361 = vpack.c.b16 %v2325, %v2322
      %v2362 = vpack.c.b16 %v2326, %v2323
      %v2363 = vpack.c.b16 %v2330, %v2327
      %v2364 = vpack.c.b16 %v2331, %v2328
      %v2365 = vpack.c.b16 %v2332, %v2329
      %v2366 = vpack.c.b16 %v2336, %v2333
      %v2367 = vpack.c.b16 %v2337, %v2334
      %v2368 = vpack.c.b16 %v2338, %v2335
      %v2369 = vpack.c.b16 %v2342, %v2339
      %v2370 = vpack.c.b16 %v2343, %v2340
      %v2371 = vpack.c.b16 %v2344, %v2341
      %v2372 = vpack.c.b16 %v2348, %v2345
      %v2373 = vpack.c.b16 %v2349, %v2346
      %v2374 = vpack.c.b16 %v2350, %v2347
      %2399 = vmatprep.subr.bf16.mxu0 %v2352
      %2400 = vmatpush1.bf16.msra.mxu0 %v2351
      %2401 = vmatprep.subr.bf16.mxu0 %v2355
      %2402 = vmatpush1.bf16.msra.mxu0 %v2354
      %2403 = vmatprep.subr.bf16.mxu0 %v2358
      %2404 = vmatpush1.bf16.msra.mxu0 %v2357
      %2405 = vmatprep.subr.bf16.mxu0 %v2361
      %2406 = vmatpush1.bf16.msra.mxu0 %v2360
      %2407 = vmatprep.subr.bf16.mxu0 %v2364
      %2408 = vmatpush1.bf16.msra.mxu0 %v2363
      %2409 = vmatprep.subr.bf16.mxu0 %v2367
      %2410 = vmatpush1.bf16.msra.mxu0 %v2366
      %2411 = vmatprep.subr.bf16.mxu0 %v2370
      %2412 = vmatpush1.bf16.msra.mxu0 %v2369
      %2413 = vmatprep.subr.bf16.mxu0 %v2373
      %2414 = vmatpush1.bf16.msra.mxu0 %v2372
      %2415 = vmatprep.subr.bf16.mxu0 0
      %2416 = vmatpush1.bf16.msra.mxu0 0
      %2417 = vmatprep.subr.bf16.mxu0 0
      %2418 = vmatpush1.bf16.msra.mxu0 0
      %2419 = vmatprep.subr.bf16.mxu0 0
      %2420 = vmatpush1.bf16.msra.mxu0 0
      %2421 = vmatprep.subr.bf16.mxu0 0
      %2422 = vmatpush1.bf16.msra.mxu0 0
      %2423 = vmatprep.subr.bf16.mxu0 0
      %2424 = vmatpush1.bf16.msra.mxu0 0
      %2425 = vmatprep.subr.bf16.mxu0 0
      %2426 = vmatpush1.bf16.msra.mxu0 0
      %2427 = vmatprep.subr.bf16.mxu0 0
      %2428 = vmatpush1.bf16.msra.mxu0 0
      %2429 = vmatprep.subr.bf16.mxu0 0
      %2430 = vmatpush1.bf16.msra.mxu0 0
      %2431 = vmatprep.mubr.bf16.mxu0 0
      %2432 = vmatmul.mubr.bf16.gmra.mrb[0].mxu0 %v2221
      %v2433 = vpop.f32.mrb[0].mxu0
      %v2434 = vadd.f32 %v2259, %v2433
      %v2435 = vpop.f32.mrb[0].mxu0
      %v2436 = vadd.f32 %v2263, %v2435
      %v2437 = vpop.f32.mrb[0].mxu0
      %v2438 = vpop.f32.mrb[0].mxu0
      %2439 = vdwg.mxu0
      %2440 = vmatprep.subr.bf16.mxu0 0
      %2441 = vmatpush1.bf16.msra.mxu0 %v2353
      %2442 = vmatprep.subr.bf16.mxu0 0
      %2443 = vmatpush1.bf16.msra.mxu0 %v2356
      %2444 = vmatprep.subr.bf16.mxu0 0
      %2445 = vmatpush1.bf16.msra.mxu0 %v2359
      %2446 = vmatprep.subr.bf16.mxu0 0
      %2447 = vmatpush1.bf16.msra.mxu0 %v2362
      %2448 = vmatprep.subr.bf16.mxu0 0
      %2449 = vmatpush1.bf16.msra.mxu0 %v2365
      %2450 = vmatprep.subr.bf16.mxu0 0
      %2451 = vmatpush1.bf16.msra.mxu0 %v2368
      %2452 = vmatprep.subr.bf16.mxu0 0
      %2453 = vmatpush1.bf16.msra.mxu0 %v2371
      %2454 = vmatprep.subr.bf16.mxu0 0
      %2455 = vmatpush1.bf16.msra.mxu0 %v2374
      %2456 = vmatprep.subr.bf16.mxu0 0
      %2457 = vmatpush1.bf16.msra.mxu0 0
      %2458 = vmatprep.subr.bf16.mxu0 0
      %2459 = vmatpush1.bf16.msra.mxu0 0
      %2460 = vmatprep.subr.bf16.mxu0 0
      %2461 = vmatpush1.bf16.msra.mxu0 0
      %2462 = vmatprep.subr.bf16.mxu0 0
      %2463 = vmatpush1.bf16.msra.mxu0 0
      %2464 = vmatprep.subr.bf16.mxu0 0
      %2465 = vmatpush1.bf16.msra.mxu0 0
      %2466 = vmatprep.subr.bf16.mxu0 0
      %2467 = vmatpush1.bf16.msra.mxu0 0
      %2468 = vmatprep.subr.bf16.mxu0 0
      %2469 = vmatpush1.bf16.msra.mxu0 0
      %2470 = vmatprep.subr.bf16.mxu0 0
      %2471 = vmatpush1.bf16.msra.mxu0 0
      %2472 = vmatprep.mubr.bf16.mxu0 0
      %2473 = vmatmul.mubr.bf16.gmra.mrb[0].mxu0 %v2221
      %v2474 = vpop.f32.mrb[0].mxu0
      %v2475 = vadd.f32 %v2267, %v2474
      %v2476 = vpop.f32.mrb[0].mxu0
      %v2477 = vpop.f32.mrb[0].mxu0
      %v2478 = vpop.f32.mrb[0].mxu0
      %2479 = vdwg.mxu0
      %v2480 = vadd.f32 %v2117, %v2434
      %v2481 = vxor.u32 %v2480, 2147483648
      %v2482 = vmul.f32 %v2481, 1.442695
      %v2483 = vpow.pop %v2482
      %v2484 = vadd.f32 %v2483, 1.0
      %v2485 = vrcp.pop %v2484
      %v2486 = vmul.f32 1.0, %v2485
      %v2487 = vadd.f32 %v2119, %v2436
      %v2488 = vxor.u32 %v2487, 2147483648
      %v2489 = vmul.f32 %v2488, 1.442695
      %v2490 = vpow.pop %v2489
      %v2491 = vadd.f32 %v2490, 1.0
      %v2492 = vrcp.pop %v2491
      %v2493 = vmul.f32 1.0, %v2492
      %v2494 = vmul.f32 %v2486, %v2475
      %v2495 = vadd.f32 %v2190, %v2494
      %v2496 = vtanh.pop %v2495
      %v2497 = vsub.f32 1.0, %v2493
      %v2498 = vmul.f32 %v2497, %v2496
      %v2499 = vmul.f32 %v2493, %v2220
      %v2500 = vadd.f32 %v2498, %v2499
      %2501 = vst [vmem:[#allocation2] sm:$0xff] %v2500
      %2502 = vst [vmem:[%s364] sm:$0xff] %v2500
      %v2503 = vld [vmem:[#allocation2] sm:$0xff]
      %v2504 = vpack.c.bf16 %v2503, %v2503
      %v2505 = vld [vmem:[%s6] sm:$0xff]
      %v2506 = vld [vmem:[%s6 + $0x8] sm:$0xf]
      %v2507 = vld [vmem:[%s6 + $0xc] sm:$0xff]
      %v2508 = vld [vmem:[%s6 + $0x14] sm:$0xf]
      %v2509 = vld [vmem:[%s6 + $0x18] sm:$0xff]
      %v2510 = vld [vmem:[%s6 + $0x20] sm:$0xf]
      %v2511 = vld [vmem:[%s6 + $0x24] sm:$0xff]
      %v2512 = vld [vmem:[%s6 + $0x2c] sm:$0xf]
      %v2513 = vld [vmem:[%s6 + $0x30] sm:$0xff]
      %v2514 = vld [vmem:[%s6 + $0x38] sm:$0xf]
      %v2515 = vld [vmem:[%s6 + $0x3c] sm:$0xff]
      %v2516 = vld [vmem:[%s6 + $0x44] sm:$0xf]
      %v2517 = vld [vmem:[%s6 + $0x48] sm:$0xff]
      %v2518 = vld [vmem:[%s6 + $0x50] sm:$0xf]
      %v2519 = vld [vmem:[%s6 + $0x54] sm:$0xff]
      %v2520 = vld [vmem:[%s6 + $0x5c] sm:$0xf]
      %v2521 = vld [vmem:[%s6 + $0x60] sm:$0xff]
      %v2522 = vld [vmem:[%s6 + $0x68] sm:$0xf]
      %v2523 = vld [vmem:[%s6 + $0x6c] sm:$0xff]
      %v2524 = vld [vmem:[%s6 + $0x74] sm:$0xf]
      %v2525 = vld [vmem:[%s6 + $0x78] sm:$0xff]
      %v2526 = vld [vmem:[%s6 + $0x80] sm:$0xf]
      %v2527 = vld [vmem:[%s6 + $0x84] sm:$0xff]
      %v2528 = vld [vmem:[%s6 + $0x8c] sm:$0xf]
      %v2529 = vld [vmem:[%s6 + $0x90] sm:$0xff]
      %v2530 = vld [vmem:[%s6 + $0x98] sm:$0xf]
      %v2531 = vld [vmem:[%s6 + $0x9c] sm:$0xff]
      %v2532 = vld [vmem:[%s6 + $0xa4] sm:$0xf]
      %v2533 = vld [vmem:[%s6 + $0xa8] sm:$0xff]
      %v2534 = vld [vmem:[%s6 + $0xb0] sm:$0xf]
      %v2535 = vld [vmem:[%s6 + $0xb4] sm:$0xff]
      %v2536 = vld [vmem:[%s6 + $0xbc] sm:$0xf]
      %v2537 = vld [vmem:[%s8] sm:$0x7]
      %v2539 = vlaneseq
      %v2540 = vshrl.u32 %v2539, 7
      %v2541 = vsub.s32 0, %v2540
      %v2542 = vrot.slane %v2537, %v2541
      %v2543 = vlaneseq
      %v2544 = vshrl.u32 %v2543, 7
      %v2545 = vsub.s32 1, %v2544
      %v2546 = vrot.slane %v2537, %v2545
      %v2547 = vlaneseq
      %v2548 = vshrl.u32 %v2547, 7
      %v2549 = vsub.s32 2, %v2548
      %v2550 = vrot.slane %v2537, %v2549
      %v2586 = vunpack.c.l.b16 %v2505
      %v2587 = vunpack.c.h.b16 %v2505
      %v2588 = vunpack.c.l.b16 %v2506
      %v2589 = vunpack.c.l.b16 %v2507
      %v2590 = vunpack.c.h.b16 %v2507
      %v2591 = vunpack.c.l.b16 %v2508
      %v2592 = vunpack.c.l.b16 %v2509
      %v2593 = vunpack.c.h.b16 %v2509
      %v2594 = vunpack.c.l.b16 %v2510
      %v2595 = vunpack.c.l.b16 %v2511
      %v2596 = vunpack.c.h.b16 %v2511
      %v2597 = vunpack.c.l.b16 %v2512
      %v2598 = vunpack.c.l.b16 %v2513
      %v2599 = vunpack.c.h.b16 %v2513
      %v2600 = vunpack.c.l.b16 %v2514
      %v2601 = vunpack.c.l.b16 %v2515
      %v2602 = vunpack.c.h.b16 %v2515
      %v2603 = vunpack.c.l.b16 %v2516
      %v2604 = vunpack.c.l.b16 %v2517
      %v2605 = vunpack.c.h.b16 %v2517
      %v2606 = vunpack.c.l.b16 %v2518
      %v2607 = vunpack.c.l.b16 %v2519
      %v2608 = vunpack.c.h.b16 %v2519
      %v2609 = vunpack.c.l.b16 %v2520
      %v2610 = vunpack.c.l.b16 %v2521
      %v2611 = vunpack.c.h.b16 %v2521
      %v2612 = vunpack.c.l.b16 %v2522
      %v2613 = vunpack.c.l.b16 %v2523
      %v2614 = vunpack.c.h.b16 %v2523
      %v2615 = vunpack.c.l.b16 %v2524
      %v2616 = vunpack.c.l.b16 %v2525
      %v2617 = vunpack.c.h.b16 %v2525
      %v2618 = vunpack.c.l.b16 %v2526
      %v2619 = vunpack.c.l.b16 %v2527
      %v2620 = vunpack.c.h.b16 %v2527
      %v2621 = vunpack.c.l.b16 %v2528
      %v2622 = vunpack.c.l.b16 %v2529
      %v2623 = vunpack.c.h.b16 %v2529
      %v2624 = vunpack.c.l.b16 %v2530
      %v2625 = vunpack.c.l.b16 %v2531
      %v2626 = vunpack.c.h.b16 %v2531
      %v2627 = vunpack.c.l.b16 %v2532
      %v2628 = vunpack.c.l.b16 %v2533
      %v2629 = vunpack.c.h.b16 %v2533
      %v2630 = vunpack.c.l.b16 %v2534
      %v2631 = vunpack.c.l.b16 %v2535
      %v2632 = vunpack.c.h.b16 %v2535
      %v2633 = vunpack.c.l.b16 %v2536
      %v2634 = vpack.c.b16 %v2589, %v2586
      %v2635 = vpack.c.b16 %v2590, %v2587
      %v2636 = vpack.c.b16 %v2591, %v2588
      %v2637 = vpack.c.b16 %v2595, %v2592
      %v2638 = vpack.c.b16 %v2596, %v2593
      %v2639 = vpack.c.b16 %v2597, %v2594
      %v2640 = vpack.c.b16 %v2601, %v2598
      %v2641 = vpack.c.b16 %v2602, %v2599
      %v2642 = vpack.c.b16 %v2603, %v2600
      %v2643 = vpack.c.b16 %v2607, %v2604
      %v2644 = vpack.c.b16 %v2608, %v2605
      %v2645 = vpack.c.b16 %v2609, %v2606
      %v2646 = vpack.c.b16 %v2613, %v2610
      %v2647 = vpack.c.b16 %v2614, %v2611
      %v2648 = vpack.c.b16 %v2615, %v2612
      %v2649 = vpack.c.b16 %v2619, %v2616
      %v2650 = vpack.c.b16 %v2620, %v2617
      %v2651 = vpack.c.b16 %v2621, %v2618
      %v2652 = vpack.c.b16 %v2625, %v2622
      %v2653 = vpack.c.b16 %v2626, %v2623
      %v2654 = vpack.c.b16 %v2627, %v2624
      %v2655 = vpack.c.b16 %v2631, %v2628
      %v2656 = vpack.c.b16 %v2632, %v2629
      %v2657 = vpack.c.b16 %v2633, %v2630
      %2682 = vmatprep.subr.bf16.mxu0 %v2635
      %2683 = vmatpush1.bf16.msra.mxu0 %v2634
      %2684 = vmatprep.subr.bf16.mxu0 %v2638
      %2685 = vmatpush1.bf16.msra.mxu0 %v2637
      %2686 = vmatprep.subr.bf16.mxu0 %v2641
      %2687 = vmatpush1.bf16.msra.mxu0 %v2640
      %2688 = vmatprep.subr.bf16.mxu0 %v2644
      %2689 = vmatpush1.bf16.msra.mxu0 %v2643
      %2690 = vmatprep.subr.bf16.mxu0 %v2647
      %2691 = vmatpush1.bf16.msra.mxu0 %v2646
      %2692 = vmatprep.subr.bf16.mxu0 %v2650
      %2693 = vmatpush1.bf16.msra.mxu0 %v2649
      %2694 = vmatprep.subr.bf16.mxu0 %v2653
      %2695 = vmatpush1.bf16.msra.mxu0 %v2652
      %2696 = vmatprep.subr.bf16.mxu0 %v2656
      %2697 = vmatpush1.bf16.msra.mxu0 %v2655
      %2698 = vmatprep.subr.bf16.mxu0 0
      %2699 = vmatpush1.bf16.msra.mxu0 0
      %2700 = vmatprep.subr.bf16.mxu0 0
      %2701 = vmatpush1.bf16.msra.mxu0 0
      %2702 = vmatprep.subr.bf16.mxu0 0
      %2703 = vmatpush1.bf16.msra.mxu0 0
      %2704 = vmatprep.subr.bf16.mxu0 0
      %2705 = vmatpush1.bf16.msra.mxu0 0
      %2706 = vmatprep.subr.bf16.mxu0 0
      %2707 = vmatpush1.bf16.msra.mxu0 0
      %2708 = vmatprep.subr.bf16.mxu0 0
      %2709 = vmatpush1.bf16.msra.mxu0 0
      %2710 = vmatprep.subr.bf16.mxu0 0
      %2711 = vmatpush1.bf16.msra.mxu0 0
      %2712 = vmatprep.subr.bf16.mxu0 0
      %2713 = vmatpush1.bf16.msra.mxu0 0
      %2714 = vmatprep.mubr.bf16.mxu0 0
      %2715 = vmatmul.mubr.bf16.gmra.mrb[0].mxu0 %v2504
      %v2716 = vpop.f32.mrb[0].mxu0
      %v2717 = vadd.f32 %v2542, %v2716
      %v2718 = vpop.f32.mrb[0].mxu0
      %v2719 = vadd.f32 %v2546, %v2718
      %v2720 = vpop.f32.mrb[0].mxu0
      %v2721 = vpop.f32.mrb[0].mxu0
      %2722 = vdwg.mxu0
      %2723 = vmatprep.subr.bf16.mxu0 0
      %2724 = vmatpush1.bf16.msra.mxu0 %v2636
      %2725 = vmatprep.subr.bf16.mxu0 0
      %2726 = vmatpush1.bf16.msra.mxu0 %v2639
      %2727 = vmatprep.subr.bf16.mxu0 0
      %2728 = vmatpush1.bf16.msra.mxu0 %v2642
      %2729 = vmatprep.subr.bf16.mxu0 0
      %2730 = vmatpush1.bf16.msra.mxu0 %v2645
      %2731 = vmatprep.subr.bf16.mxu0 0
      %2732 = vmatpush1.bf16.msra.mxu0 %v2648
      %2733 = vmatprep.subr.bf16.mxu0 0
      %2734 = vmatpush1.bf16.msra.mxu0 %v2651
      %2735 = vmatprep.subr.bf16.mxu0 0
      %2736 = vmatpush1.bf16.msra.mxu0 %v2654
      %2737 = vmatprep.subr.bf16.mxu0 0
      %2738 = vmatpush1.bf16.msra.mxu0 %v2657
      %2739 = vmatprep.subr.bf16.mxu0 0
      %2740 = vmatpush1.bf16.msra.mxu0 0
      %2741 = vmatprep.subr.bf16.mxu0 0
      %2742 = vmatpush1.bf16.msra.mxu0 0
      %2743 = vmatprep.subr.bf16.mxu0 0
      %2744 = vmatpush1.bf16.msra.mxu0 0
      %2745 = vmatprep.subr.bf16.mxu0 0
      %2746 = vmatpush1.bf16.msra.mxu0 0
      %2747 = vmatprep.subr.bf16.mxu0 0
      %2748 = vmatpush1.bf16.msra.mxu0 0
      %2749 = vmatprep.subr.bf16.mxu0 0
      %2750 = vmatpush1.bf16.msra.mxu0 0
      %2751 = vmatprep.subr.bf16.mxu0 0
      %2752 = vmatpush1.bf16.msra.mxu0 0
      %2753 = vmatprep.subr.bf16.mxu0 0
      %2754 = vmatpush1.bf16.msra.mxu0 0
      %2755 = vmatprep.mubr.bf16.mxu0 0
      %2756 = vmatmul.mubr.bf16.gmra.mrb[0].mxu0 %v2504
      %v2757 = vpop.f32.mrb[0].mxu0
      %v2758 = vadd.f32 %v2550, %v2757
      %v2759 = vpop.f32.mrb[0].mxu0
      %v2760 = vpop.f32.mrb[0].mxu0
      %v2761 = vpop.f32.mrb[0].mxu0
      %2762 = vdwg.mxu0
      %v2763 = vadd.f32 %v2121, %v2717
      %v2764 = vxor.u32 %v2763, 2147483648
      %v2765 = vmul.f32 %v2764, 1.442695
      %v2766 = vpow.pop %v2765
      %v2767 = vadd.f32 %v2766, 1.0
      %v2768 = vrcp.pop %v2767
      %v2769 = vmul.f32 1.0, %v2768
      %v2770 = vadd.f32 %v2123, %v2719
      %v2771 = vxor.u32 %v2770, 2147483648
      %v2772 = vmul.f32 %v2771, 1.442695
      %v2773 = vpow.pop %v2772
      %v2774 = vadd.f32 %v2773, 1.0
      %v2775 = vrcp.pop %v2774
      %v2776 = vmul.f32 1.0, %v2775
      %v2777 = vmul.f32 %v2769, %v2758
      %v2778 = vadd.f32 %v2193, %v2777
      %v2779 = vtanh.pop %v2778
      %v2780 = vsub.f32 1.0, %v2776
      %v2781 = vmul.f32 %v2780, %v2779
      %v2782 = vmul.f32 %v2776, %v2503
      %v2783 = vadd.f32 %v2781, %v2782
      %2784 = vst [vmem:[#allocation2] sm:$0xff] %v2783
      %2785 = vst [vmem:[%s364 + $0x8] sm:$0xff] %v2783
      %v2786 = vld [vmem:[#allocation2] sm:$0xff]
      %v2787 = vpack.c.bf16 %v2786, %v2786
      %v2788 = vld [vmem:[%s6] sm:$0xff]
      %v2789 = vld [vmem:[%s6 + $0x8] sm:$0xf]
      %v2790 = vld [vmem:[%s6 + $0xc] sm:$0xff]
      %v2791 = vld [vmem:[%s6 + $0x14] sm:$0xf]
      %v2792 = vld [vmem:[%s6 + $0x18] sm:$0xff]
      %v2793 = vld [vmem:[%s6 + $0x20] sm:$0xf]
      %v2794 = vld [vmem:[%s6 + $0x24] sm:$0xff]
      %v2795 = vld [vmem:[%s6 + $0x2c] sm:$0xf]
      %v2796 = vld [vmem:[%s6 + $0x30] sm:$0xff]
      %v2797 = vld [vmem:[%s6 + $0x38] sm:$0xf]
      %v2798 = vld [vmem:[%s6 + $0x3c] sm:$0xff]
      %v2799 = vld [vmem:[%s6 + $0x44] sm:$0xf]
      %v2800 = vld [vmem:[%s6 + $0x48] sm:$0xff]
      %v2801 = vld [vmem:[%s6 + $0x50] sm:$0xf]
      %v2802 = vld [vmem:[%s6 + $0x54] sm:$0xff]
      %v2803 = vld [vmem:[%s6 + $0x5c] sm:$0xf]
      %v2804 = vld [vmem:[%s6 + $0x60] sm:$0xff]
      %v2805 = vld [vmem:[%s6 + $0x68] sm:$0xf]
      %v2806 = vld [vmem:[%s6 + $0x6c] sm:$0xff]
      %v2807 = vld [vmem:[%s6 + $0x74] sm:$0xf]
      %v2808 = vld [vmem:[%s6 + $0x78] sm:$0xff]
      %v2809 = vld [vmem:[%s6 + $0x80] sm:$0xf]
      %v2810 = vld [vmem:[%s6 + $0x84] sm:$0xff]
      %v2811 = vld [vmem:[%s6 + $0x8c] sm:$0xf]
      %v2812 = vld [vmem:[%s6 + $0x90] sm:$0xff]
      %v2813 = vld [vmem:[%s6 + $0x98] sm:$0xf]
      %v2814 = vld [vmem:[%s6 + $0x9c] sm:$0xff]
      %v2815 = vld [vmem:[%s6 + $0xa4] sm:$0xf]
      %v2816 = vld [vmem:[%s6 + $0xa8] sm:$0xff]
      %v2817 = vld [vmem:[%s6 + $0xb0] sm:$0xf]
      %v2818 = vld [vmem:[%s6 + $0xb4] sm:$0xff]
      %v2819 = vld [vmem:[%s6 + $0xbc] sm:$0xf]
      %v2820 = vld [vmem:[%s8] sm:$0x7]
      %v2822 = vlaneseq
      %v2823 = vshrl.u32 %v2822, 7
      %v2824 = vsub.s32 0, %v2823
      %v2825 = vrot.slane %v2820, %v2824
      %v2826 = vlaneseq
      %v2827 = vshrl.u32 %v2826, 7
      %v2828 = vsub.s32 1, %v2827
      %v2829 = vrot.slane %v2820, %v2828
      %v2830 = vlaneseq
      %v2831 = vshrl.u32 %v2830, 7
      %v2832 = vsub.s32 2, %v2831
      %v2833 = vrot.slane %v2820, %v2832
      %v2869 = vunpack.c.l.b16 %v2788
      %v2870 = vunpack.c.h.b16 %v2788
      %v2871 = vunpack.c.l.b16 %v2789
      %v2872 = vunpack.c.l.b16 %v2790
      %v2873 = vunpack.c.h.b16 %v2790
      %v2874 = vunpack.c.l.b16 %v2791
      %v2875 = vunpack.c.l.b16 %v2792
      %v2876 = vunpack.c.h.b16 %v2792
      %v2877 = vunpack.c.l.b16 %v2793
      %v2878 = vunpack.c.l.b16 %v2794
      %v2879 = vunpack.c.h.b16 %v2794
      %v2880 = vunpack.c.l.b16 %v2795
      %v2881 = vunpack.c.l.b16 %v2796
      %v2882 = vunpack.c.h.b16 %v2796
      %v2883 = vunpack.c.l.b16 %v2797
      %v2884 = vunpack.c.l.b16 %v2798
      %v2885 = vunpack.c.h.b16 %v2798
      %v2886 = vunpack.c.l.b16 %v2799
      %v2887 = vunpack.c.l.b16 %v2800
      %v2888 = vunpack.c.h.b16 %v2800
      %v2889 = vunpack.c.l.b16 %v2801
      %v2890 = vunpack.c.l.b16 %v2802
      %v2891 = vunpack.c.h.b16 %v2802
      %v2892 = vunpack.c.l.b16 %v2803
      %v2893 = vunpack.c.l.b16 %v2804
      %v2894 = vunpack.c.h.b16 %v2804
      %v2895 = vunpack.c.l.b16 %v2805
      %v2896 = vunpack.c.l.b16 %v2806
      %v2897 = vunpack.c.h.b16 %v2806
      %v2898 = vunpack.c.l.b16 %v2807
      %v2899 = vunpack.c.l.b16 %v2808
      %v2900 = vunpack.c.h.b16 %v2808
      %v2901 = vunpack.c.l.b16 %v2809
      %v2902 = vunpack.c.l.b16 %v2810
      %v2903 = vunpack.c.h.b16 %v2810
      %v2904 = vunpack.c.l.b16 %v2811
      %v2905 = vunpack.c.l.b16 %v2812
      %v2906 = vunpack.c.h.b16 %v2812
      %v2907 = vunpack.c.l.b16 %v2813
      %v2908 = vunpack.c.l.b16 %v2814
      %v2909 = vunpack.c.h.b16 %v2814
      %v2910 = vunpack.c.l.b16 %v2815
      %v2911 = vunpack.c.l.b16 %v2816
      %v2912 = vunpack.c.h.b16 %v2816
      %v2913 = vunpack.c.l.b16 %v2817
      %v2914 = vunpack.c.l.b16 %v2818
      %v2915 = vunpack.c.h.b16 %v2818
      %v2916 = vunpack.c.l.b16 %v2819
      %v2917 = vpack.c.b16 %v2872, %v2869
      %v2918 = vpack.c.b16 %v2873, %v2870
      %v2919 = vpack.c.b16 %v2874, %v2871
      %v2920 = vpack.c.b16 %v2878, %v2875
      %v2921 = vpack.c.b16 %v2879, %v2876
      %v2922 = vpack.c.b16 %v2880, %v2877
      %v2923 = vpack.c.b16 %v2884, %v2881
      %v2924 = vpack.c.b16 %v2885, %v2882
      %v2925 = vpack.c.b16 %v2886, %v2883
      %v2926 = vpack.c.b16 %v2890, %v2887
      %v2927 = vpack.c.b16 %v2891, %v2888
      %v2928 = vpack.c.b16 %v2892, %v2889
      %v2929 = vpack.c.b16 %v2896, %v2893
      %v2930 = vpack.c.b16 %v2897, %v2894
      %v2931 = vpack.c.b16 %v2898, %v2895
      %v2932 = vpack.c.b16 %v2902, %v2899
      %v2933 = vpack.c.b16 %v2903, %v2900
      %v2934 = vpack.c.b16 %v2904, %v2901
      %v2935 = vpack.c.b16 %v2908, %v2905
      %v2936 = vpack.c.b16 %v2909, %v2906
      %v2937 = vpack.c.b16 %v2910, %v2907
      %v2938 = vpack.c.b16 %v2914, %v2911
      %v2939 = vpack.c.b16 %v2915, %v2912
      %v2940 = vpack.c.b16 %v2916, %v2913
      %2965 = vmatprep.subr.bf16.mxu0 %v2918
      %2966 = vmatpush1.bf16.msra.mxu0 %v2917
      %2967 = vmatprep.subr.bf16.mxu0 %v2921
      %2968 = vmatpush1.bf16.msra.mxu0 %v2920
      %2969 = vmatprep.subr.bf16.mxu0 %v2924
      %2970 = vmatpush1.bf16.msra.mxu0 %v2923
      %2971 = vmatprep.subr.bf16.mxu0 %v2927
      %2972 = vmatpush1.bf16.msra.mxu0 %v2926
      %2973 = vmatprep.subr.bf16.mxu0 %v2930
      %2974 = vmatpush1.bf16.msra.mxu0 %v2929
      %2975 = vmatprep.subr.bf16.mxu0 %v2933
      %2976 = vmatpush1.bf16.msra.mxu0 %v2932
      %2977 = vmatprep.subr.bf16.mxu0 %v2936
      %2978 = vmatpush1.bf16.msra.mxu0 %v2935
      %2979 = vmatprep.subr.bf16.mxu0 %v2939
      %2980 = vmatpush1.bf16.msra.mxu0 %v2938
      %2981 = vmatprep.subr.bf16.mxu0 0
      %2982 = vmatpush1.bf16.msra.mxu0 0
      %2983 = vmatprep.subr.bf16.mxu0 0
      %2984 = vmatpush1.bf16.msra.mxu0 0
      %2985 = vmatprep.subr.bf16.mxu0 0
      %2986 = vmatpush1.bf16.msra.mxu0 0
      %2987 = vmatprep.subr.bf16.mxu0 0
      %2988 = vmatpush1.bf16.msra.mxu0 0
      %2989 = vmatprep.subr.bf16.mxu0 0
      %2990 = vmatpush1.bf16.msra.mxu0 0
      %2991 = vmatprep.subr.bf16.mxu0 0
      %2992 = vmatpush1.bf16.msra.mxu0 0
      %2993 = vmatprep.subr.bf16.mxu0 0
      %2994 = vmatpush1.bf16.msra.mxu0 0
      %2995 = vmatprep.subr.bf16.mxu0 0
      %2996 = vmatpush1.bf16.msra.mxu0 0
      %2997 = vmatprep.mubr.bf16.mxu0 0
      %2998 = vmatmul.mubr.bf16.gmra.mrb[0].mxu0 %v2787
      %v2999 = vpop.f32.mrb[0].mxu0
      %v3000 = vadd.f32 %v2825, %v2999
      %v3001 = vpop.f32.mrb[0].mxu0
      %v3002 = vadd.f32 %v2829, %v3001
      %v3003 = vpop.f32.mrb[0].mxu0
      %v3004 = vpop.f32.mrb[0].mxu0
      %3005 = vdwg.mxu0
      %3006 = vmatprep.subr.bf16.mxu0 0
      %3007 = vmatpush1.bf16.msra.mxu0 %v2919
      %3008 = vmatprep.subr.bf16.mxu0 0
      %3009 = vmatpush1.bf16.msra.mxu0 %v2922
      %3010 = vmatprep.subr.bf16.mxu0 0
      %3011 = vmatpush1.bf16.msra.mxu0 %v2925
      %3012 = vmatprep.subr.bf16.mxu0 0
      %3013 = vmatpush1.bf16.msra.mxu0 %v2928
      %3014 = vmatprep.subr.bf16.mxu0 0
      %3015 = vmatpush1.bf16.msra.mxu0 %v2931
      %3016 = vmatprep.subr.bf16.mxu0 0
      %3017 = vmatpush1.bf16.msra.mxu0 %v2934
      %3018 = vmatprep.subr.bf16.mxu0 0
      %3019 = vmatpush1.bf16.msra.mxu0 %v2937
      %3020 = vmatprep.subr.bf16.mxu0 0
      %3021 = vmatpush1.bf16.msra.mxu0 %v2940
      %3022 = vmatprep.subr.bf16.mxu0 0
      %3023 = vmatpush1.bf16.msra.mxu0 0
      %3024 = vmatprep.subr.bf16.mxu0 0
      %3025 = vmatpush1.bf16.msra.mxu0 0
      %3026 = vmatprep.subr.bf16.mxu0 0
      %3027 = vmatpush1.bf16.msra.mxu0 0
      %3028 = vmatprep.subr.bf16.mxu0 0
      %3029 = vmatpush1.bf16.msra.mxu0 0
      %3030 = vmatprep.subr.bf16.mxu0 0
      %3031 = vmatpush1.bf16.msra.mxu0 0
      %3032 = vmatprep.subr.bf16.mxu0 0
      %3033 = vmatpush1.bf16.msra.mxu0 0
      %3034 = vmatprep.subr.bf16.mxu0 0
      %3035 = vmatpush1.bf16.msra.mxu0 0
      %3036 = vmatprep.subr.bf16.mxu0 0
      %3037 = vmatpush1.bf16.msra.mxu0 0
      %3038 = vmatprep.mubr.bf16.mxu0 0
      %3039 = vmatmul.mubr.bf16.gmra.mrb[0].mxu0 %v2787
      %v3040 = vpop.f32.mrb[0].mxu0
      %v3041 = vadd.f32 %v2833, %v3040
      %v3042 = vpop.f32.mrb[0].mxu0
      %v3043 = vpop.f32.mrb[0].mxu0
      %v3044 = vpop.f32.mrb[0].mxu0
      %3045 = vdwg.mxu0
      %v3046 = vadd.f32 %v2127, %v3000
      %v3047 = vxor.u32 %v3046, 2147483648
      %v3048 = vmul.f32 %v3047, 1.442695
      %v3049 = vpow.pop %v3048
      %v3050 = vadd.f32 %v3049, 1.0
      %v3051 = vrcp.pop %v3050
      %v3052 = vmul.f32 1.0, %v3051
      %v3053 = vadd.f32 %v2129, %v3002
      %v3054 = vxor.u32 %v3053, 2147483648
      %v3055 = vmul.f32 %v3054, 1.442695
      %v3056 = vpow.pop %v3055
      %v3057 = vadd.f32 %v3056, 1.0
      %v3058 = vrcp.pop %v3057
      %v3059 = vmul.f32 1.0, %v3058
      %v3060 = vmul.f32 %v3052, %v3041
      %v3061 = vadd.f32 %v2198, %v3060
      %v3062 = vtanh.pop %v3061
      %v3063 = vsub.f32 1.0, %v3059
      %v3064 = vmul.f32 %v3063, %v3062
      %v3065 = vmul.f32 %v3059, %v2786
      %v3066 = vadd.f32 %v3064, %v3065
      %3067 = vst [vmem:[#allocation2] sm:$0xff] %v3066
      %3068 = vst [vmem:[%s364 + $0x10] sm:$0xff] %v3066
      %v3069 = vld [vmem:[#allocation2] sm:$0xff]
      %v3070 = vpack.c.bf16 %v3069, %v3069
      %v3071 = vld [vmem:[%s6] sm:$0xff]
      %v3072 = vld [vmem:[%s6 + $0x8] sm:$0xf]
      %v3073 = vld [vmem:[%s6 + $0xc] sm:$0xff]
      %v3074 = vld [vmem:[%s6 + $0x14] sm:$0xf]
      %v3075 = vld [vmem:[%s6 + $0x18] sm:$0xff]
      %v3076 = vld [vmem:[%s6 + $0x20] sm:$0xf]
      %v3077 = vld [vmem:[%s6 + $0x24] sm:$0xff]
      %v3078 = vld [vmem:[%s6 + $0x2c] sm:$0xf]
      %v3079 = vld [vmem:[%s6 + $0x30] sm:$0xff]
      %v3080 = vld [vmem:[%s6 + $0x38] sm:$0xf]
      %v3081 = vld [vmem:[%s6 + $0x3c] sm:$0xff]
      %v3082 = vld [vmem:[%s6 + $0x44] sm:$0xf]
      %v3083 = vld [vmem:[%s6 + $0x48] sm:$0xff]
      %v3084 = vld [vmem:[%s6 + $0x50] sm:$0xf]
      %v3085 = vld [vmem:[%s6 + $0x54] sm:$0xff]
      %v3086 = vld [vmem:[%s6 + $0x5c] sm:$0xf]
      %v3087 = vld [vmem:[%s6 + $0x60] sm:$0xff]
      %v3088 = vld [vmem:[%s6 + $0x68] sm:$0xf]
      %v3089 = vld [vmem:[%s6 + $0x6c] sm:$0xff]
      %v3090 = vld [vmem:[%s6 + $0x74] sm:$0xf]
      %v3091 = vld [vmem:[%s6 + $0x78] sm:$0xff]
      %v3092 = vld [vmem:[%s6 + $0x80] sm:$0xf]
      %v3093 = vld [vmem:[%s6 + $0x84] sm:$0xff]
      %v3094 = vld [vmem:[%s6 + $0x8c] sm:$0xf]
      %v3095 = vld [vmem:[%s6 + $0x90] sm:$0xff]
      %v3096 = vld [vmem:[%s6 + $0x98] sm:$0xf]
      %v3097 = vld [vmem:[%s6 + $0x9c] sm:$0xff]
      %v3098 = vld [vmem:[%s6 + $0xa4] sm:$0xf]
      %v3099 = vld [vmem:[%s6 + $0xa8] sm:$0xff]
      %v3100 = vld [vmem:[%s6 + $0xb0] sm:$0xf]
      %v3101 = vld [vmem:[%s6 + $0xb4] sm:$0xff]
      %v3102 = vld [vmem:[%s6 + $0xbc] sm:$0xf]
      %v3103 = vld [vmem:[%s8] sm:$0x7]
      %v3105 = vlaneseq
      %v3106 = vshrl.u32 %v3105, 7
      %v3107 = vsub.s32 0, %v3106
      %v3108 = vrot.slane %v3103, %v3107
      %v3109 = vlaneseq
      %v3110 = vshrl.u32 %v3109, 7
      %v3111 = vsub.s32 1, %v3110
      %v3112 = vrot.slane %v3103, %v3111
      %v3113 = vlaneseq
      %v3114 = vshrl.u32 %v3113, 7
      %v3115 = vsub.s32 2, %v3114
      %v3116 = vrot.slane %v3103, %v3115
      %v3152 = vunpack.c.l.b16 %v3071
      %v3153 = vunpack.c.h.b16 %v3071
      %v3154 = vunpack.c.l.b16 %v3072
      %v3155 = vunpack.c.l.b16 %v3073
      %v3156 = vunpack.c.h.b16 %v3073
      %v3157 = vunpack.c.l.b16 %v3074
      %v3158 = vunpack.c.l.b16 %v3075
      %v3159 = vunpack.c.h.b16 %v3075
      %v3160 = vunpack.c.l.b16 %v3076
      %v3161 = vunpack.c.l.b16 %v3077
      %v3162 = vunpack.c.h.b16 %v3077
      %v3163 = vunpack.c.l.b16 %v3078
      %v3164 = vunpack.c.l.b16 %v3079
      %v3165 = vunpack.c.h.b16 %v3079
      %v3166 = vunpack.c.l.b16 %v3080
      %v3167 = vunpack.c.l.b16 %v3081
      %v3168 = vunpack.c.h.b16 %v3081
      %v3169 = vunpack.c.l.b16 %v3082
      %v3170 = vunpack.c.l.b16 %v3083
      %v3171 = vunpack.c.h.b16 %v3083
      %v3172 = vunpack.c.l.b16 %v3084
      %v3173 = vunpack.c.l.b16 %v3085
      %v3174 = vunpack.c.h.b16 %v3085
      %v3175 = vunpack.c.l.b16 %v3086
      %v3176 = vunpack.c.l.b16 %v3087
      %v3177 = vunpack.c.h.b16 %v3087
      %v3178 = vunpack.c.l.b16 %v3088
      %v3179 = vunpack.c.l.b16 %v3089
      %v3180 = vunpack.c.h.b16 %v3089
      %v3181 = vunpack.c.l.b16 %v3090
      %v3182 = vunpack.c.l.b16 %v3091
      %v3183 = vunpack.c.h.b16 %v3091
      %v3184 = vunpack.c.l.b16 %v3092
      %v3185 = vunpack.c.l.b16 %v3093
      %v3186 = vunpack.c.h.b16 %v3093
      %v3187 = vunpack.c.l.b16 %v3094
      %v3188 = vunpack.c.l.b16 %v3095
      %v3189 = vunpack.c.h.b16 %v3095
      %v3190 = vunpack.c.l.b16 %v3096
      %v3191 = vunpack.c.l.b16 %v3097
      %v3192 = vunpack.c.h.b16 %v3097
      %v3193 = vunpack.c.l.b16 %v3098
      %v3194 = vunpack.c.l.b16 %v3099
      %v3195 = vunpack.c.h.b16 %v3099
      %v3196 = vunpack.c.l.b16 %v3100
      %v3197 = vunpack.c.l.b16 %v3101
      %v3198 = vunpack.c.h.b16 %v3101
      %v3199 = vunpack.c.l.b16 %v3102
      %v3200 = vpack.c.b16 %v3155, %v3152
      %v3201 = vpack.c.b16 %v3156, %v3153
      %v3202 = vpack.c.b16 %v3157, %v3154
      %v3203 = vpack.c.b16 %v3161, %v3158
      %v3204 = vpack.c.b16 %v3162, %v3159
      %v3205 = vpack.c.b16 %v3163, %v3160
      %v3206 = vpack.c.b16 %v3167, %v3164
      %v3207 = vpack.c.b16 %v3168, %v3165
      %v3208 = vpack.c.b16 %v3169, %v3166
      %v3209 = vpack.c.b16 %v3173, %v3170
      %v3210 = vpack.c.b16 %v3174, %v3171
      %v3211 = vpack.c.b16 %v3175, %v3172
      %v3212 = vpack.c.b16 %v3179, %v3176
      %v3213 = vpack.c.b16 %v3180, %v3177
      %v3214 = vpack.c.b16 %v3181, %v3178
      %v3215 = vpack.c.b16 %v3185, %v3182
      %v3216 = vpack.c.b16 %v3186, %v3183
      %v3217 = vpack.c.b16 %v3187, %v3184
      %v3218 = vpack.c.b16 %v3191, %v3188
      %v3219 = vpack.c.b16 %v3192, %v3189
      %v3220 = vpack.c.b16 %v3193, %v3190
      %v3221 = vpack.c.b16 %v3197, %v3194
      %v3222 = vpack.c.b16 %v3198, %v3195
      %v3223 = vpack.c.b16 %v3199, %v3196
      %3248 = vmatprep.subr.bf16.mxu0 %v3201
      %3249 = vmatpush1.bf16.msra.mxu0 %v3200
      %3250 = vmatprep.subr.bf16.mxu0 %v3204
      %3251 = vmatpush1.bf16.msra.mxu0 %v3203
      %3252 = vmatprep.subr.bf16.mxu0 %v3207
      %3253 = vmatpush1.bf16.msra.mxu0 %v3206
      %3254 = vmatprep.subr.bf16.mxu0 %v3210
      %3255 = vmatpush1.bf16.msra.mxu0 %v3209
      %3256 = vmatprep.subr.bf16.mxu0 %v3213
      %3257 = vmatpush1.bf16.msra.mxu0 %v3212
      %3258 = vmatprep.subr.bf16.mxu0 %v3216
      %3259 = vmatpush1.bf16.msra.mxu0 %v3215
      %3260 = vmatprep.subr.bf16.mxu0 %v3219
      %3261 = vmatpush1.bf16.msra.mxu0 %v3218
      %3262 = vmatprep.subr.bf16.mxu0 %v3222
      %3263 = vmatpush1.bf16.msra.mxu0 %v3221
      %3264 = vmatprep.subr.bf16.mxu0 0
      %3265 = vmatpush1.bf16.msra.mxu0 0
      %3266 = vmatprep.subr.bf16.mxu0 0
      %3267 = vmatpush1.bf16.msra.mxu0 0
      %3268 = vmatprep.subr.bf16.mxu0 0
      %3269 = vmatpush1.bf16.msra.mxu0 0
      %3270 = vmatprep.subr.bf16.mxu0 0
      %3271 = vmatpush1.bf16.msra.mxu0 0
      %3272 = vmatprep.subr.bf16.mxu0 0
      %3273 = vmatpush1.bf16.msra.mxu0 0
      %3274 = vmatprep.subr.bf16.mxu0 0
      %3275 = vmatpush1.bf16.msra.mxu0 0
      %3276 = vmatprep.subr.bf16.mxu0 0
      %3277 = vmatpush1.bf16.msra.mxu0 0
      %3278 = vmatprep.subr.bf16.mxu0 0
      %3279 = vmatpush1.bf16.msra.mxu0 0
      %3280 = vmatprep.mubr.bf16.mxu0 0
      %3281 = vmatmul.mubr.bf16.gmra.mrb[0].mxu0 %v3070
      %v3282 = vpop.f32.mrb[0].mxu0
      %v3283 = vadd.f32 %v3108, %v3282
      %v3284 = vpop.f32.mrb[0].mxu0
      %v3285 = vadd.f32 %v3112, %v3284
      %v3286 = vpop.f32.mrb[0].mxu0
      %v3287 = vpop.f32.mrb[0].mxu0
      %3288 = vdwg.mxu0
      %3289 = vmatprep.subr.bf16.mxu0 0
      %3290 = vmatpush1.bf16.msra.mxu0 %v3202
      %3291 = vmatprep.subr.bf16.mxu0 0
      %3292 = vmatpush1.bf16.msra.mxu0 %v3205
      %3293 = vmatprep.subr.bf16.mxu0 0
      %3294 = vmatpush1.bf16.msra.mxu0 %v3208
      %3295 = vmatprep.subr.bf16.mxu0 0
      %3296 = vmatpush1.bf16.msra.mxu0 %v3211
      %3297 = vmatprep.subr.bf16.mxu0 0
      %3298 = vmatpush1.bf16.msra.mxu0 %v3214
      %3299 = vmatprep.subr.bf16.mxu0 0
      %3300 = vmatpush1.bf16.msra.mxu0 %v3217
      %3301 = vmatprep.subr.bf16.mxu0 0
      %3302 = vmatpush1.bf16.msra.mxu0 %v3220
      %3303 = vmatprep.subr.bf16.mxu0 0
      %3304 = vmatpush1.bf16.msra.mxu0 %v3223
      %3305 = vmatprep.subr.bf16.mxu0 0
      %3306 = vmatpush1.bf16.msra.mxu0 0
      %3307 = vmatprep.subr.bf16.mxu0 0
      %3308 = vmatpush1.bf16.msra.mxu0 0
      %3309 = vmatprep.subr.bf16.mxu0 0
      %3310 = vmatpush1.bf16.msra.mxu0 0
      %3311 = vmatprep.subr.bf16.mxu0 0
      %3312 = vmatpush1.bf16.msra.mxu0 0
      %3313 = vmatprep.subr.bf16.mxu0 0
      %3314 = vmatpush1.bf16.msra.mxu0 0
      %3315 = vmatprep.subr.bf16.mxu0 0
      %3316 = vmatpush1.bf16.msra.mxu0 0
      %3317 = vmatprep.subr.bf16.mxu0 0
      %3318 = vmatpush1.bf16.msra.mxu0 0
      %3319 = vmatprep.subr.bf16.mxu0 0
      %3320 = vmatpush1.bf16.msra.mxu0 0
      %3321 = vmatprep.mubr.bf16.mxu0 0
      %3322 = vmatmul.mubr.bf16.gmra.mrb[0].mxu0 %v3070
      %v3323 = vpop.f32.mrb[0].mxu0
      %v3324 = vadd.f32 %v3116, %v3323
      %v3325 = vpop.f32.mrb[0].mxu0
      %v3326 = vpop.f32.mrb[0].mxu0
      %v3327 = vpop.f32.mrb[0].mxu0
      %3328 = vdwg.mxu0
      %v3329 = vadd.f32 %v2131, %v3283
      %v3330 = vxor.u32 %v3329, 2147483648
      %v3331 = vmul.f32 %v3330, 1.442695
      %v3332 = vpow.pop %v3331
      %v3333 = vadd.f32 %v3332, 1.0
      %v3334 = vrcp.pop %v3333
      %v3335 = vmul.f32 1.0, %v3334
      %v3336 = vadd.f32 %v2133, %v3285
      %v3337 = vxor.u32 %v3336, 2147483648
      %v3338 = vmul.f32 %v3337, 1.442695
      %v3339 = vpow.pop %v3338
      %v3340 = vadd.f32 %v3339, 1.0
      %v3341 = vrcp.pop %v3340
      %v3342 = vmul.f32 1.0, %v3341
      %v3343 = vmul.f32 %v3335, %v3324
      %v3344 = vadd.f32 %v2201, %v3343
      %v3345 = vtanh.pop %v3344
      %v3346 = vsub.f32 1.0, %v3342
      %v3347 = vmul.f32 %v3346, %v3345
      %v3348 = vmul.f32 %v3342, %v3069
      %v3349 = vadd.f32 %v3347, %v3348
      %3350 = vst [vmem:[#allocation2] sm:$0xff] %v3349
      %3351 = vst [vmem:[%s364 + $0x18] sm:$0xff] %v3349
      %v3352 = vld [vmem:[#allocation2] sm:$0xff]
      %v3353 = vpack.c.bf16 %v3352, %v3352
      %v3354 = vld [vmem:[%s6] sm:$0xff]
      %v3355 = vld [vmem:[%s6 + $0x8] sm:$0xf]
      %v3356 = vld [vmem:[%s6 + $0xc] sm:$0xff]
      %v3357 = vld [vmem:[%s6 + $0x14] sm:$0xf]
      %v3358 = vld [vmem:[%s6 + $0x18] sm:$0xff]
      %v3359 = vld [vmem:[%s6 + $0x20] sm:$0xf]
      %v3360 = vld [vmem:[%s6 + $0x24] sm:$0xff]
      %v3361 = vld [vmem:[%s6 + $0x2c] sm:$0xf]
      %v3362 = vld [vmem:[%s6 + $0x30] sm:$0xff]
      %v3363 = vld [vmem:[%s6 + $0x38] sm:$0xf]
      %v3364 = vld [vmem:[%s6 + $0x3c] sm:$0xff]
      %v3365 = vld [vmem:[%s6 + $0x44] sm:$0xf]
      %v3366 = vld [vmem:[%s6 + $0x48] sm:$0xff]
      %v3367 = vld [vmem:[%s6 + $0x50] sm:$0xf]
      %v3368 = vld [vmem:[%s6 + $0x54] sm:$0xff]
      %v3369 = vld [vmem:[%s6 + $0x5c] sm:$0xf]
      %v3370 = vld [vmem:[%s6 + $0x60] sm:$0xff]
      %v3371 = vld [vmem:[%s6 + $0x68] sm:$0xf]
      %v3372 = vld [vmem:[%s6 + $0x6c] sm:$0xff]
      %v3373 = vld [vmem:[%s6 + $0x74] sm:$0xf]
      %v3374 = vld [vmem:[%s6 + $0x78] sm:$0xff]
      %v3375 = vld [vmem:[%s6 + $0x80] sm:$0xf]
      %v3376 = vld [vmem:[%s6 + $0x84] sm:$0xff]
      %v3377 = vld [vmem:[%s6 + $0x8c] sm:$0xf]
      %v3378 = vld [vmem:[%s6 + $0x90] sm:$0xff]
      %v3379 = vld [vmem:[%s6 + $0x98] sm:$0xf]
      %v3380 = vld [vmem:[%s6 + $0x9c] sm:$0xff]
      %v3381 = vld [vmem:[%s6 + $0xa4] sm:$0xf]
      %v3382 = vld [vmem:[%s6 + $0xa8] sm:$0xff]
      %v3383 = vld [vmem:[%s6 + $0xb0] sm:$0xf]
      %v3384 = vld [vmem:[%s6 + $0xb4] sm:$0xff]
      %v3385 = vld [vmem:[%s6 + $0xbc] sm:$0xf]
      %v3386 = vld [vmem:[%s8] sm:$0x7]
      %v3388 = vlaneseq
      %v3389 = vshrl.u32 %v3388, 7
      %v3390 = vsub.s32 0, %v3389
      %v3391 = vrot.slane %v3386, %v3390
      %v3392 = vlaneseq
      %v3393 = vshrl.u32 %v3392, 7
      %v3394 = vsub.s32 1, %v3393
      %v3395 = vrot.slane %v3386, %v3394
      %v3396 = vlaneseq
      %v3397 = vshrl.u32 %v3396, 7
      %v3398 = vsub.s32 2, %v3397
      %v3399 = vrot.slane %v3386, %v3398
      %v3435 = vunpack.c.l.b16 %v3354
      %v3436 = vunpack.c.h.b16 %v3354
      %v3437 = vunpack.c.l.b16 %v3355
      %v3438 = vunpack.c.l.b16 %v3356
      %v3439 = vunpack.c.h.b16 %v3356
      %v3440 = vunpack.c.l.b16 %v3357
      %v3441 = vunpack.c.l.b16 %v3358
      %v3442 = vunpack.c.h.b16 %v3358
      %v3443 = vunpack.c.l.b16 %v3359
      %v3444 = vunpack.c.l.b16 %v3360
      %v3445 = vunpack.c.h.b16 %v3360
      %v3446 = vunpack.c.l.b16 %v3361
      %v3447 = vunpack.c.l.b16 %v3362
      %v3448 = vunpack.c.h.b16 %v3362
      %v3449 = vunpack.c.l.b16 %v3363
      %v3450 = vunpack.c.l.b16 %v3364
      %v3451 = vunpack.c.h.b16 %v3364
      %v3452 = vunpack.c.l.b16 %v3365
      %v3453 = vunpack.c.l.b16 %v3366
      %v3454 = vunpack.c.h.b16 %v3366
      %v3455 = vunpack.c.l.b16 %v3367
      %v3456 = vunpack.c.l.b16 %v3368
      %v3457 = vunpack.c.h.b16 %v3368
      %v3458 = vunpack.c.l.b16 %v3369
      %v3459 = vunpack.c.l.b16 %v3370
      %v3460 = vunpack.c.h.b16 %v3370
      %v3461 = vunpack.c.l.b16 %v3371
      %v3462 = vunpack.c.l.b16 %v3372
      %v3463 = vunpack.c.h.b16 %v3372
      %v3464 = vunpack.c.l.b16 %v3373
      %v3465 = vunpack.c.l.b16 %v3374
      %v3466 = vunpack.c.h.b16 %v3374
      %v3467 = vunpack.c.l.b16 %v3375
      %v3468 = vunpack.c.l.b16 %v3376
      %v3469 = vunpack.c.h.b16 %v3376
      %v3470 = vunpack.c.l.b16 %v3377
      %v3471 = vunpack.c.l.b16 %v3378
      %v3472 = vunpack.c.h.b16 %v3378
      %v3473 = vunpack.c.l.b16 %v3379
      %v3474 = vunpack.c.l.b16 %v3380
      %v3475 = vunpack.c.h.b16 %v3380
      %v3476 = vunpack.c.l.b16 %v3381
      %v3477 = vunpack.c.l.b16 %v3382
      %v3478 = vunpack.c.h.b16 %v3382
      %v3479 = vunpack.c.l.b16 %v3383
      %v3480 = vunpack.c.l.b16 %v3384
      %v3481 = vunpack.c.h.b16 %v3384
      %v3482 = vunpack.c.l.b16 %v3385
      %v3483 = vpack.c.b16 %v3438, %v3435
      %v3484 = vpack.c.b16 %v3439, %v3436
      %v3485 = vpack.c.b16 %v3440, %v3437
      %v3486 = vpack.c.b16 %v3444, %v3441
      %v3487 = vpack.c.b16 %v3445, %v3442
      %v3488 = vpack.c.b16 %v3446, %v3443
      %v3489 = vpack.c.b16 %v3450, %v3447
      %v3490 = vpack.c.b16 %v3451, %v3448
      %v3491 = vpack.c.b16 %v3452, %v3449
      %v3492 = vpack.c.b16 %v3456, %v3453
      %v3493 = vpack.c.b16 %v3457, %v3454
      %v3494 = vpack.c.b16 %v3458, %v3455
      %v3495 = vpack.c.b16 %v3462, %v3459
      %v3496 = vpack.c.b16 %v3463, %v3460
      %v3497 = vpack.c.b16 %v3464, %v3461
      %v3498 = vpack.c.b16 %v3468, %v3465
      %v3499 = vpack.c.b16 %v3469, %v3466
      %v3500 = vpack.c.b16 %v3470, %v3467
      %v3501 = vpack.c.b16 %v3474, %v3471
      %v3502 = vpack.c.b16 %v3475, %v3472
      %v3503 = vpack.c.b16 %v3476, %v3473
      %v3504 = vpack.c.b16 %v3480, %v3477
      %v3505 = vpack.c.b16 %v3481, %v3478
      %v3506 = vpack.c.b16 %v3482, %v3479
      %3531 = vmatprep.subr.bf16.mxu0 %v3484
      %3532 = vmatpush1.bf16.msra.mxu0 %v3483
      %3533 = vmatprep.subr.bf16.mxu0 %v3487
      %3534 = vmatpush1.bf16.msra.mxu0 %v3486
      %3535 = vmatprep.subr.bf16.mxu0 %v3490
      %3536 = vmatpush1.bf16.msra.mxu0 %v3489
      %3537 = vmatprep.subr.bf16.mxu0 %v3493
      %3538 = vmatpush1.bf16.msra.mxu0 %v3492
      %3539 = vmatprep.subr.bf16.mxu0 %v3496
      %3540 = vmatpush1.bf16.msra.mxu0 %v3495
      %3541 = vmatprep.subr.bf16.mxu0 %v3499
      %3542 = vmatpush1.bf16.msra.mxu0 %v3498
      %3543 = vmatprep.subr.bf16.mxu0 %v3502
      %3544 = vmatpush1.bf16.msra.mxu0 %v3501
      %3545 = vmatprep.subr.bf16.mxu0 %v3505
      %3546 = vmatpush1.bf16.msra.mxu0 %v3504
      %3547 = vmatprep.subr.bf16.mxu0 0
      %3548 = vmatpush1.bf16.msra.mxu0 0
      %3549 = vmatprep.subr.bf16.mxu0 0
      %3550 = vmatpush1.bf16.msra.mxu0 0
      %3551 = vmatprep.subr.bf16.mxu0 0
      %3552 = vmatpush1.bf16.msra.mxu0 0
      %3553 = vmatprep.subr.bf16.mxu0 0
      %3554 = vmatpush1.bf16.msra.mxu0 0
      %3555 = vmatprep.subr.bf16.mxu0 0
      %3556 = vmatpush1.bf16.msra.mxu0 0
      %3557 = vmatprep.subr.bf16.mxu0 0
      %3558 = vmatpush1.bf16.msra.mxu0 0
      %3559 = vmatprep.subr.bf16.mxu0 0
      %3560 = vmatpush1.bf16.msra.mxu0 0
      %3561 = vmatprep.subr.bf16.mxu0 0
      %3562 = vmatpush1.bf16.msra.mxu0 0
      %3563 = vmatprep.mubr.bf16.mxu0 0
      %3564 = vmatmul.mubr.bf16.gmra.mrb[0].mxu0 %v3353
      %v3565 = vpop.f32.mrb[0].mxu0
      %v3566 = vadd.f32 %v3391, %v3565
      %v3567 = vpop.f32.mrb[0].mxu0
      %v3568 = vadd.f32 %v3395, %v3567
      %v3569 = vpop.f32.mrb[0].mxu0
      %v3570 = vpop.f32.mrb[0].mxu0
      %3571 = vdwg.mxu0
      %3572 = vmatprep.subr.bf16.mxu0 0
      %3573 = vmatpush1.bf16.msra.mxu0 %v3485
      %3574 = vmatprep.subr.bf16.mxu0 0
      %3575 = vmatpush1.bf16.msra.mxu0 %v3488
      %3576 = vmatprep.subr.bf16.mxu0 0
      %3577 = vmatpush1.bf16.msra.mxu0 %v3491
      %3578 = vmatprep.subr.bf16.mxu0 0
      %3579 = vmatpush1.bf16.msra.mxu0 %v3494
      %3580 = vmatprep.subr.bf16.mxu0 0
      %3581 = vmatpush1.bf16.msra.mxu0 %v3497
      %3582 = vmatprep.subr.bf16.mxu0 0
      %3583 = vmatpush1.bf16.msra.mxu0 %v3500
      %3584 = vmatprep.subr.bf16.mxu0 0
      %3585 = vmatpush1.bf16.msra.mxu0 %v3503
      %3586 = vmatprep.subr.bf16.mxu0 0
      %3587 = vmatpush1.bf16.msra.mxu0 %v3506
      %3588 = vmatprep.subr.bf16.mxu0 0
      %3589 = vmatpush1.bf16.msra.mxu0 0
      %3590 = vmatprep.subr.bf16.mxu0 0
      %3591 = vmatpush1.bf16.msra.mxu0 0
      %3592 = vmatprep.subr.bf16.mxu0 0
      %3593 = vmatpush1.bf16.msra.mxu0 0
      %3594 = vmatprep.subr.bf16.mxu0 0
      %3595 = vmatpush1.bf16.msra.mxu0 0
      %3596 = vmatprep.subr.bf16.mxu0 0
      %3597 = vmatpush1.bf16.msra.mxu0 0
      %3598 = vmatprep.subr.bf16.mxu0 0
      %3599 = vmatpush1.bf16.msra.mxu0 0
      %3600 = vmatprep.subr.bf16.mxu0 0
      %3601 = vmatpush1.bf16.msra.mxu0 0
      %3602 = vmatprep.subr.bf16.mxu0 0
      %3603 = vmatpush1.bf16.msra.mxu0 0
      %3604 = vmatprep.mubr.bf16.mxu0 0
      %3605 = vmatmul.mubr.bf16.gmra.mrb[0].mxu0 %v3353
      %v3606 = vpop.f32.mrb[0].mxu0
      %v3607 = vadd.f32 %v3399, %v3606
      %v3608 = vpop.f32.mrb[0].mxu0
      %v3609 = vpop.f32.mrb[0].mxu0
      %v3610 = vpop.f32.mrb[0].mxu0
      %3611 = vdwg.mxu0
      %v3612 = vadd.f32 %v2137, %v3566
      %v3613 = vxor.u32 %v3612, 2147483648
      %v3614 = vmul.f32 %v3613, 1.442695
      %v3615 = vpow.pop %v3614
      %v3616 = vadd.f32 %v3615, 1.0
      %v3617 = vrcp.pop %v3616
      %v3618 = vmul.f32 1.0, %v3617
      %v3619 = vadd.f32 %v2139, %v3568
      %v3620 = vxor.u32 %v3619, 2147483648
      %v3621 = vmul.f32 %v3620, 1.442695
      %v3622 = vpow.pop %v3621
      %v3623 = vadd.f32 %v3622, 1.0
      %v3624 = vrcp.pop %v3623
      %v3625 = vmul.f32 1.0, %v3624
      %v3626 = vmul.f32 %v3618, %v3607
      %v3627 = vadd.f32 %v2206, %v3626
      %v3628 = vtanh.pop %v3627
      %v3629 = vsub.f32 1.0, %v3625
      %v3630 = vmul.f32 %v3629, %v3628
      %v3631 = vmul.f32 %v3625, %v3352
      %v3632 = vadd.f32 %v3630, %v3631
      %3633 = vst [vmem:[#allocation2] sm:$0xff] %v3632
      %3634 = vst [vmem:[%s364 + $0x20] sm:$0xff] %v3632
      %v3635 = vld [vmem:[#allocation2] sm:$0xff]
      %v3636 = vpack.c.bf16 %v3635, %v3635
      %v3637 = vld [vmem:[%s6] sm:$0xff]
      %v3638 = vld [vmem:[%s6 + $0x8] sm:$0xf]
      %v3639 = vld [vmem:[%s6 + $0xc] sm:$0xff]
      %v3640 = vld [vmem:[%s6 + $0x14] sm:$0xf]
      %v3641 = vld [vmem:[%s6 + $0x18] sm:$0xff]
      %v3642 = vld [vmem:[%s6 + $0x20] sm:$0xf]
      %v3643 = vld [vmem:[%s6 + $0x24] sm:$0xff]
      %v3644 = vld [vmem:[%s6 + $0x2c] sm:$0xf]
      %v3645 = vld [vmem:[%s6 + $0x30] sm:$0xff]
      %v3646 = vld [vmem:[%s6 + $0x38] sm:$0xf]
      %v3647 = vld [vmem:[%s6 + $0x3c] sm:$0xff]
      %v3648 = vld [vmem:[%s6 + $0x44] sm:$0xf]
      %v3649 = vld [vmem:[%s6 + $0x48] sm:$0xff]
      %v3650 = vld [vmem:[%s6 + $0x50] sm:$0xf]
      %v3651 = vld [vmem:[%s6 + $0x54] sm:$0xff]
      %v3652 = vld [vmem:[%s6 + $0x5c] sm:$0xf]
      %v3653 = vld [vmem:[%s6 + $0x60] sm:$0xff]
      %v3654 = vld [vmem:[%s6 + $0x68] sm:$0xf]
      %v3655 = vld [vmem:[%s6 + $0x6c] sm:$0xff]
      %v3656 = vld [vmem:[%s6 + $0x74] sm:$0xf]
      %v3657 = vld [vmem:[%s6 + $0x78] sm:$0xff]
      %v3658 = vld [vmem:[%s6 + $0x80] sm:$0xf]
      %v3659 = vld [vmem:[%s6 + $0x84] sm:$0xff]
      %v3660 = vld [vmem:[%s6 + $0x8c] sm:$0xf]
      %v3661 = vld [vmem:[%s6 + $0x90] sm:$0xff]
      %v3662 = vld [vmem:[%s6 + $0x98] sm:$0xf]
      %v3663 = vld [vmem:[%s6 + $0x9c] sm:$0xff]
      %v3664 = vld [vmem:[%s6 + $0xa4] sm:$0xf]
      %v3665 = vld [vmem:[%s6 + $0xa8] sm:$0xff]
      %v3666 = vld [vmem:[%s6 + $0xb0] sm:$0xf]
      %v3667 = vld [vmem:[%s6 + $0xb4] sm:$0xff]
      %v3668 = vld [vmem:[%s6 + $0xbc] sm:$0xf]
      %v3669 = vld [vmem:[%s8] sm:$0x7]
      %v3671 = vlaneseq
      %v3672 = vshrl.u32 %v3671, 7
      %v3673 = vsub.s32 0, %v3672
      %v3674 = vrot.slane %v3669, %v3673
      %v3675 = vlaneseq
      %v3676 = vshrl.u32 %v3675, 7
      %v3677 = vsub.s32 1, %v3676
      %v3678 = vrot.slane %v3669, %v3677
      %v3679 = vlaneseq
      %v3680 = vshrl.u32 %v3679, 7
      %v3681 = vsub.s32 2, %v3680
      %v3682 = vrot.slane %v3669, %v3681
      %v3718 = vunpack.c.l.b16 %v3637
      %v3719 = vunpack.c.h.b16 %v3637
      %v3720 = vunpack.c.l.b16 %v3638
      %v3721 = vunpack.c.l.b16 %v3639
      %v3722 = vunpack.c.h.b16 %v3639
      %v3723 = vunpack.c.l.b16 %v3640
      %v3724 = vunpack.c.l.b16 %v3641
      %v3725 = vunpack.c.h.b16 %v3641
      %v3726 = vunpack.c.l.b16 %v3642
      %v3727 = vunpack.c.l.b16 %v3643
      %v3728 = vunpack.c.h.b16 %v3643
      %v3729 = vunpack.c.l.b16 %v3644
      %v3730 = vunpack.c.l.b16 %v3645
      %v3731 = vunpack.c.h.b16 %v3645
      %v3732 = vunpack.c.l.b16 %v3646
      %v3733 = vunpack.c.l.b16 %v3647
      %v3734 = vunpack.c.h.b16 %v3647
      %v3735 = vunpack.c.l.b16 %v3648
      %v3736 = vunpack.c.l.b16 %v3649
      %v3737 = vunpack.c.h.b16 %v3649
      %v3738 = vunpack.c.l.b16 %v3650
      %v3739 = vunpack.c.l.b16 %v3651
      %v3740 = vunpack.c.h.b16 %v3651
      %v3741 = vunpack.c.l.b16 %v3652
      %v3742 = vunpack.c.l.b16 %v3653
      %v3743 = vunpack.c.h.b16 %v3653
      %v3744 = vunpack.c.l.b16 %v3654
      %v3745 = vunpack.c.l.b16 %v3655
      %v3746 = vunpack.c.h.b16 %v3655
      %v3747 = vunpack.c.l.b16 %v3656
      %v3748 = vunpack.c.l.b16 %v3657
      %v3749 = vunpack.c.h.b16 %v3657
      %v3750 = vunpack.c.l.b16 %v3658
      %v3751 = vunpack.c.l.b16 %v3659
      %v3752 = vunpack.c.h.b16 %v3659
      %v3753 = vunpack.c.l.b16 %v3660
      %v3754 = vunpack.c.l.b16 %v3661
      %v3755 = vunpack.c.h.b16 %v3661
      %v3756 = vunpack.c.l.b16 %v3662
      %v3757 = vunpack.c.l.b16 %v3663
      %v3758 = vunpack.c.h.b16 %v3663
      %v3759 = vunpack.c.l.b16 %v3664
      %v3760 = vunpack.c.l.b16 %v3665
      %v3761 = vunpack.c.h.b16 %v3665
      %v3762 = vunpack.c.l.b16 %v3666
      %v3763 = vunpack.c.l.b16 %v3667
      %v3764 = vunpack.c.h.b16 %v3667
      %v3765 = vunpack.c.l.b16 %v3668
      %v3766 = vpack.c.b16 %v3721, %v3718
      %v3767 = vpack.c.b16 %v3722, %v3719
      %v3768 = vpack.c.b16 %v3723, %v3720
      %v3769 = vpack.c.b16 %v3727, %v3724
      %v3770 = vpack.c.b16 %v3728, %v3725
      %v3771 = vpack.c.b16 %v3729, %v3726
      %v3772 = vpack.c.b16 %v3733, %v3730
      %v3773 = vpack.c.b16 %v3734, %v3731
      %v3774 = vpack.c.b16 %v3735, %v3732
      %v3775 = vpack.c.b16 %v3739, %v3736
      %v3776 = vpack.c.b16 %v3740, %v3737
      %v3777 = vpack.c.b16 %v3741, %v3738
      %v3778 = vpack.c.b16 %v3745, %v3742
      %v3779 = vpack.c.b16 %v3746, %v3743
      %v3780 = vpack.c.b16 %v3747, %v3744
      %v3781 = vpack.c.b16 %v3751, %v3748
      %v3782 = vpack.c.b16 %v3752, %v3749
      %v3783 = vpack.c.b16 %v3753, %v3750
      %v3784 = vpack.c.b16 %v3757, %v3754
      %v3785 = vpack.c.b16 %v3758, %v3755
      %v3786 = vpack.c.b16 %v3759, %v3756
      %v3787 = vpack.c.b16 %v3763, %v3760
      %v3788 = vpack.c.b16 %v3764, %v3761
      %v3789 = vpack.c.b16 %v3765, %v3762
      %3814 = vmatprep.subr.bf16.mxu0 %v3767
      %3815 = vmatpush1.bf16.msra.mxu0 %v3766
      %3816 = vmatprep.subr.bf16.mxu0 %v3770
      %3817 = vmatpush1.bf16.msra.mxu0 %v3769
      %3818 = vmatprep.subr.bf16.mxu0 %v3773
      %3819 = vmatpush1.bf16.msra.mxu0 %v3772
      %3820 = vmatprep.subr.bf16.mxu0 %v3776
      %3821 = vmatpush1.bf16.msra.mxu0 %v3775
      %3822 = vmatprep.subr.bf16.mxu0 %v3779
      %3823 = vmatpush1.bf16.msra.mxu0 %v3778
      %3824 = vmatprep.subr.bf16.mxu0 %v3782
      %3825 = vmatpush1.bf16.msra.mxu0 %v3781
      %3826 = vmatprep.subr.bf16.mxu0 %v3785
      %3827 = vmatpush1.bf16.msra.mxu0 %v3784
      %3828 = vmatprep.subr.bf16.mxu0 %v3788
      %3829 = vmatpush1.bf16.msra.mxu0 %v3787
      %3830 = vmatprep.subr.bf16.mxu0 0
      %3831 = vmatpush1.bf16.msra.mxu0 0
      %3832 = vmatprep.subr.bf16.mxu0 0
      %3833 = vmatpush1.bf16.msra.mxu0 0
      %3834 = vmatprep.subr.bf16.mxu0 0
      %3835 = vmatpush1.bf16.msra.mxu0 0
      %3836 = vmatprep.subr.bf16.mxu0 0
      %3837 = vmatpush1.bf16.msra.mxu0 0
      %3838 = vmatprep.subr.bf16.mxu0 0
      %3839 = vmatpush1.bf16.msra.mxu0 0
      %3840 = vmatprep.subr.bf16.mxu0 0
      %3841 = vmatpush1.bf16.msra.mxu0 0
      %3842 = vmatprep.subr.bf16.mxu0 0
      %3843 = vmatpush1.bf16.msra.mxu0 0
      %3844 = vmatprep.subr.bf16.mxu0 0
      %3845 = vmatpush1.bf16.msra.mxu0 0
      %3846 = vmatprep.mubr.bf16.mxu0 0
      %3847 = vmatmul.mubr.bf16.gmra.mrb[0].mxu0 %v3636
      %v3848 = vpop.f32.mrb[0].mxu0
      %v3849 = vadd.f32 %v3674, %v3848
      %v3850 = vpop.f32.mrb[0].mxu0
      %v3851 = vadd.f32 %v3678, %v3850
      %v3852 = vpop.f32.mrb[0].mxu0
      %v3853 = vpop.f32.mrb[0].mxu0
      %3854 = vdwg.mxu0
      %3855 = vmatprep.subr.bf16.mxu0 0
      %3856 = vmatpush1.bf16.msra.mxu0 %v3768
      %3857 = vmatprep.subr.bf16.mxu0 0
      %3858 = vmatpush1.bf16.msra.mxu0 %v3771
      %3859 = vmatprep.subr.bf16.mxu0 0
      %3860 = vmatpush1.bf16.msra.mxu0 %v3774
      %3861 = vmatprep.subr.bf16.mxu0 0
      %3862 = vmatpush1.bf16.msra.mxu0 %v3777
      %3863 = vmatprep.subr.bf16.mxu0 0
      %3864 = vmatpush1.bf16.msra.mxu0 %v3780
      %3865 = vmatprep.subr.bf16.mxu0 0
      %3866 = vmatpush1.bf16.msra.mxu0 %v3783
      %3867 = vmatprep.subr.bf16.mxu0 0
      %3868 = vmatpush1.bf16.msra.mxu0 %v3786
      %3869 = vmatprep.subr.bf16.mxu0 0
      %3870 = vmatpush1.bf16.msra.mxu0 %v3789
      %3871 = vmatprep.subr.bf16.mxu0 0
      %3872 = vmatpush1.bf16.msra.mxu0 0
      %3873 = vmatprep.subr.bf16.mxu0 0
      %3874 = vmatpush1.bf16.msra.mxu0 0
      %3875 = vmatprep.subr.bf16.mxu0 0
      %3876 = vmatpush1.bf16.msra.mxu0 0
      %3877 = vmatprep.subr.bf16.mxu0 0
      %3878 = vmatpush1.bf16.msra.mxu0 0
      %3879 = vmatprep.subr.bf16.mxu0 0
      %3880 = vmatpush1.bf16.msra.mxu0 0
      %3881 = vmatprep.subr.bf16.mxu0 0
      %3882 = vmatpush1.bf16.msra.mxu0 0
      %3883 = vmatprep.subr.bf16.mxu0 0
      %3884 = vmatpush1.bf16.msra.mxu0 0
      %3885 = vmatprep.subr.bf16.mxu0 0
      %3886 = vmatpush1.bf16.msra.mxu0 0
      %3887 = vmatprep.mubr.bf16.mxu0 0
      %3888 = vmatmul.mubr.bf16.gmra.mrb[0].mxu0 %v3636
      %v3889 = vpop.f32.mrb[0].mxu0
      %v3890 = vadd.f32 %v3682, %v3889
      %v3891 = vpop.f32.mrb[0].mxu0
      %v3892 = vpop.f32.mrb[0].mxu0
      %v3893 = vpop.f32.mrb[0].mxu0
      %3894 = vdwg.mxu0
      %v3895 = vadd.f32 %v2141, %v3849
      %v3896 = vxor.u32 %v3895, 2147483648
      %v3897 = vmul.f32 %v3896, 1.442695
      %v3898 = vpow.pop %v3897
      %v3899 = vadd.f32 %v3898, 1.0
      %v3900 = vrcp.pop %v3899
      %v3901 = vmul.f32 1.0, %v3900
      %v3902 = vadd.f32 %v2143, %v3851
      %v3903 = vxor.u32 %v3902, 2147483648
      %v3904 = vmul.f32 %v3903, 1.442695
      %v3905 = vpow.pop %v3904
      %v3906 = vadd.f32 %v3905, 1.0
      %v3907 = vrcp.pop %v3906
      %v3908 = vmul.f32 1.0, %v3907
      %v3909 = vmul.f32 %v3901, %v3890
      %v3910 = vadd.f32 %v2209, %v3909
      %v3911 = vtanh.pop %v3910
      %v3912 = vsub.f32 1.0, %v3908
      %v3913 = vmul.f32 %v3912, %v3911
      %v3914 = vmul.f32 %v3908, %v3635
      %v3915 = vadd.f32 %v3913, %v3914
      %3916 = vst [vmem:[#allocation2] sm:$0xff] %v3915
      %3917 = vst [vmem:[%s364 + $0x28] sm:$0xff] %v3915
      %v3918 = vld [vmem:[#allocation2] sm:$0xff]
      %v3919 = vpack.c.bf16 %v3918, %v3918
      %v3920 = vld [vmem:[%s6] sm:$0xff]
      %v3921 = vld [vmem:[%s6 + $0x8] sm:$0xf]
      %v3922 = vld [vmem:[%s6 + $0xc] sm:$0xff]
      %v3923 = vld [vmem:[%s6 + $0x14] sm:$0xf]
      %v3924 = vld [vmem:[%s6 + $0x18] sm:$0xff]
      %v3925 = vld [vmem:[%s6 + $0x20] sm:$0xf]
      %v3926 = vld [vmem:[%s6 + $0x24] sm:$0xff]
      %v3927 = vld [vmem:[%s6 + $0x2c] sm:$0xf]
      %v3928 = vld [vmem:[%s6 + $0x30] sm:$0xff]
      %v3929 = vld [vmem:[%s6 + $0x38] sm:$0xf]
      %v3930 = vld [vmem:[%s6 + $0x3c] sm:$0xff]
      %v3931 = vld [vmem:[%s6 + $0x44] sm:$0xf]
      %v3932 = vld [vmem:[%s6 + $0x48] sm:$0xff]
      %v3933 = vld [vmem:[%s6 + $0x50] sm:$0xf]
      %v3934 = vld [vmem:[%s6 + $0x54] sm:$0xff]
      %v3935 = vld [vmem:[%s6 + $0x5c] sm:$0xf]
      %v3936 = vld [vmem:[%s6 + $0x60] sm:$0xff]
      %v3937 = vld [vmem:[%s6 + $0x68] sm:$0xf]
      %v3938 = vld [vmem:[%s6 + $0x6c] sm:$0xff]
      %v3939 = vld [vmem:[%s6 + $0x74] sm:$0xf]
      %v3940 = vld [vmem:[%s6 + $0x78] sm:$0xff]
      %v3941 = vld [vmem:[%s6 + $0x80] sm:$0xf]
      %v3942 = vld [vmem:[%s6 + $0x84] sm:$0xff]
      %v3943 = vld [vmem:[%s6 + $0x8c] sm:$0xf]
      %v3944 = vld [vmem:[%s6 + $0x90] sm:$0xff]
      %v3945 = vld [vmem:[%s6 + $0x98] sm:$0xf]
      %v3946 = vld [vmem:[%s6 + $0x9c] sm:$0xff]
      %v3947 = vld [vmem:[%s6 + $0xa4] sm:$0xf]
      %v3948 = vld [vmem:[%s6 + $0xa8] sm:$0xff]
      %v3949 = vld [vmem:[%s6 + $0xb0] sm:$0xf]
      %v3950 = vld [vmem:[%s6 + $0xb4] sm:$0xff]
      %v3951 = vld [vmem:[%s6 + $0xbc] sm:$0xf]
      %v3952 = vld [vmem:[%s8] sm:$0x7]
      %v3954 = vlaneseq
      %v3955 = vshrl.u32 %v3954, 7
      %v3956 = vsub.s32 0, %v3955
      %v3957 = vrot.slane %v3952, %v3956
      %v3958 = vlaneseq
      %v3959 = vshrl.u32 %v3958, 7
      %v3960 = vsub.s32 1, %v3959
      %v3961 = vrot.slane %v3952, %v3960
      %v3962 = vlaneseq
      %v3963 = vshrl.u32 %v3962, 7
      %v3964 = vsub.s32 2, %v3963
      %v3965 = vrot.slane %v3952, %v3964
      %v4001 = vunpack.c.l.b16 %v3920
      %v4002 = vunpack.c.h.b16 %v3920
      %v4003 = vunpack.c.l.b16 %v3921
      %v4004 = vunpack.c.l.b16 %v3922
      %v4005 = vunpack.c.h.b16 %v3922
      %v4006 = vunpack.c.l.b16 %v3923
      %v4007 = vunpack.c.l.b16 %v3924
      %v4008 = vunpack.c.h.b16 %v3924
      %v4009 = vunpack.c.l.b16 %v3925
      %v4010 = vunpack.c.l.b16 %v3926
      %v4011 = vunpack.c.h.b16 %v3926
      %v4012 = vunpack.c.l.b16 %v3927
      %v4013 = vunpack.c.l.b16 %v3928
      %v4014 = vunpack.c.h.b16 %v3928
      %v4015 = vunpack.c.l.b16 %v3929
      %v4016 = vunpack.c.l.b16 %v3930
      %v4017 = vunpack.c.h.b16 %v3930
      %v4018 = vunpack.c.l.b16 %v3931
      %v4019 = vunpack.c.l.b16 %v3932
      %v4020 = vunpack.c.h.b16 %v3932
      %v4021 = vunpack.c.l.b16 %v3933
      %v4022 = vunpack.c.l.b16 %v3934
      %v4023 = vunpack.c.h.b16 %v3934
      %v4024 = vunpack.c.l.b16 %v3935
      %v4025 = vunpack.c.l.b16 %v3936
      %v4026 = vunpack.c.h.b16 %v3936
      %v4027 = vunpack.c.l.b16 %v3937
      %v4028 = vunpack.c.l.b16 %v3938
      %v4029 = vunpack.c.h.b16 %v3938
      %v4030 = vunpack.c.l.b16 %v3939
      %v4031 = vunpack.c.l.b16 %v3940
      %v4032 = vunpack.c.h.b16 %v3940
      %v4033 = vunpack.c.l.b16 %v3941
      %v4034 = vunpack.c.l.b16 %v3942
      %v4035 = vunpack.c.h.b16 %v3942
      %v4036 = vunpack.c.l.b16 %v3943
      %v4037 = vunpack.c.l.b16 %v3944
      %v4038 = vunpack.c.h.b16 %v3944
      %v4039 = vunpack.c.l.b16 %v3945
      %v4040 = vunpack.c.l.b16 %v3946
      %v4041 = vunpack.c.h.b16 %v3946
      %v4042 = vunpack.c.l.b16 %v3947
      %v4043 = vunpack.c.l.b16 %v3948
      %v4044 = vunpack.c.h.b16 %v3948
      %v4045 = vunpack.c.l.b16 %v3949
      %v4046 = vunpack.c.l.b16 %v3950
      %v4047 = vunpack.c.h.b16 %v3950
      %v4048 = vunpack.c.l.b16 %v3951
      %v4049 = vpack.c.b16 %v4004, %v4001
      %v4050 = vpack.c.b16 %v4005, %v4002
      %v4051 = vpack.c.b16 %v4006, %v4003
      %v4052 = vpack.c.b16 %v4010, %v4007
      %v4053 = vpack.c.b16 %v4011, %v4008
      %v4054 = vpack.c.b16 %v4012, %v4009
      %v4055 = vpack.c.b16 %v4016, %v4013
      %v4056 = vpack.c.b16 %v4017, %v4014
      %v4057 = vpack.c.b16 %v4018, %v4015
      %v4058 = vpack.c.b16 %v4022, %v4019
      %v4059 = vpack.c.b16 %v4023, %v4020
      %v4060 = vpack.c.b16 %v4024, %v4021
      %v4061 = vpack.c.b16 %v4028, %v4025
      %v4062 = vpack.c.b16 %v4029, %v4026
      %v4063 = vpack.c.b16 %v4030, %v4027
      %v4064 = vpack.c.b16 %v4034, %v4031
      %v4065 = vpack.c.b16 %v4035, %v4032
      %v4066 = vpack.c.b16 %v4036, %v4033
      %v4067 = vpack.c.b16 %v4040, %v4037
      %v4068 = vpack.c.b16 %v4041, %v4038
      %v4069 = vpack.c.b16 %v4042, %v4039
      %v4070 = vpack.c.b16 %v4046, %v4043
      %v4071 = vpack.c.b16 %v4047, %v4044
      %v4072 = vpack.c.b16 %v4048, %v4045
      %4097 = vmatprep.subr.bf16.mxu0 %v4050
      %4098 = vmatpush1.bf16.msra.mxu0 %v4049
      %4099 = vmatprep.subr.bf16.mxu0 %v4053
      %4100 = vmatpush1.bf16.msra.mxu0 %v4052
      %4101 = vmatprep.subr.bf16.mxu0 %v4056
      %4102 = vmatpush1.bf16.msra.mxu0 %v4055
      %4103 = vmatprep.subr.bf16.mxu0 %v4059
      %4104 = vmatpush1.bf16.msra.mxu0 %v4058
      %4105 = vmatprep.subr.bf16.mxu0 %v4062
      %4106 = vmatpush1.bf16.msra.mxu0 %v4061
      %4107 = vmatprep.subr.bf16.mxu0 %v4065
      %4108 = vmatpush1.bf16.msra.mxu0 %v4064
      %4109 = vmatprep.subr.bf16.mxu0 %v4068
      %4110 = vmatpush1.bf16.msra.mxu0 %v4067
      %4111 = vmatprep.subr.bf16.mxu0 %v4071
      %4112 = vmatpush1.bf16.msra.mxu0 %v4070
      %4113 = vmatprep.subr.bf16.mxu0 0
      %4114 = vmatpush1.bf16.msra.mxu0 0
      %4115 = vmatprep.subr.bf16.mxu0 0
      %4116 = vmatpush1.bf16.msra.mxu0 0
      %4117 = vmatprep.subr.bf16.mxu0 0
      %4118 = vmatpush1.bf16.msra.mxu0 0
      %4119 = vmatprep.subr.bf16.mxu0 0
      %4120 = vmatpush1.bf16.msra.mxu0 0
      %4121 = vmatprep.subr.bf16.mxu0 0
      %4122 = vmatpush1.bf16.msra.mxu0 0
      %4123 = vmatprep.subr.bf16.mxu0 0
      %4124 = vmatpush1.bf16.msra.mxu0 0
      %4125 = vmatprep.subr.bf16.mxu0 0
      %4126 = vmatpush1.bf16.msra.mxu0 0
      %4127 = vmatprep.subr.bf16.mxu0 0
      %4128 = vmatpush1.bf16.msra.mxu0 0
      %4129 = vmatprep.mubr.bf16.mxu0 0
      %4130 = vmatmul.mubr.bf16.gmra.mrb[0].mxu0 %v3919
      %v4131 = vpop.f32.mrb[0].mxu0
      %v4132 = vadd.f32 %v3957, %v4131
      %v4133 = vpop.f32.mrb[0].mxu0
      %v4134 = vadd.f32 %v3961, %v4133
      %v4135 = vpop.f32.mrb[0].mxu0
      %v4136 = vpop.f32.mrb[0].mxu0
      %4137 = vdwg.mxu0
      %4138 = vmatprep.subr.bf16.mxu0 0
      %4139 = vmatpush1.bf16.msra.mxu0 %v4051
      %4140 = vmatprep.subr.bf16.mxu0 0
      %4141 = vmatpush1.bf16.msra.mxu0 %v4054
      %4142 = vmatprep.subr.bf16.mxu0 0
      %4143 = vmatpush1.bf16.msra.mxu0 %v4057
      %4144 = vmatprep.subr.bf16.mxu0 0
      %4145 = vmatpush1.bf16.msra.mxu0 %v4060
      %4146 = vmatprep.subr.bf16.mxu0 0
      %4147 = vmatpush1.bf16.msra.mxu0 %v4063
      %4148 = vmatprep.subr.bf16.mxu0 0
      %4149 = vmatpush1.bf16.msra.mxu0 %v4066
      %4150 = vmatprep.subr.bf16.mxu0 0
      %4151 = vmatpush1.bf16.msra.mxu0 %v4069
      %4152 = vmatprep.subr.bf16.mxu0 0
      %4153 = vmatpush1.bf16.msra.mxu0 %v4072
      %4154 = vmatprep.subr.bf16.mxu0 0
      %4155 = vmatpush1.bf16.msra.mxu0 0
      %4156 = vmatprep.subr.bf16.mxu0 0
      %4157 = vmatpush1.bf16.msra.mxu0 0
      %4158 = vmatprep.subr.bf16.mxu0 0
      %4159 = vmatpush1.bf16.msra.mxu0 0
      %4160 = vmatprep.subr.bf16.mxu0 0
      %4161 = vmatpush1.bf16.msra.mxu0 0
      %4162 = vmatprep.subr.bf16.mxu0 0
      %4163 = vmatpush1.bf16.msra.mxu0 0
      %4164 = vmatprep.subr.bf16.mxu0 0
      %4165 = vmatpush1.bf16.msra.mxu0 0
      %4166 = vmatprep.subr.bf16.mxu0 0
      %4167 = vmatpush1.bf16.msra.mxu0 0
      %4168 = vmatprep.subr.bf16.mxu0 0
      %4169 = vmatpush1.bf16.msra.mxu0 0
      %4170 = vmatprep.mubr.bf16.mxu0 0
      %4171 = vmatmul.mubr.bf16.gmra.mrb[0].mxu0 %v3919
      %v4172 = vpop.f32.mrb[0].mxu0
      %v4173 = vadd.f32 %v3965, %v4172
      %v4174 = vpop.f32.mrb[0].mxu0
      %v4175 = vpop.f32.mrb[0].mxu0
      %v4176 = vpop.f32.mrb[0].mxu0
      %4177 = vdwg.mxu0
      %v4178 = vadd.f32 %v2147, %v4132
      %v4179 = vxor.u32 %v4178, 2147483648
      %v4180 = vmul.f32 %v4179, 1.442695
      %v4181 = vpow.pop %v4180
      %v4182 = vadd.f32 %v4181, 1.0
      %v4183 = vrcp.pop %v4182
      %v4184 = vmul.f32 1.0, %v4183
      %v4185 = vadd.f32 %v2149, %v4134
      %v4186 = vxor.u32 %v4185, 2147483648
      %v4187 = vmul.f32 %v4186, 1.442695
      %v4188 = vpow.pop %v4187
      %v4189 = vadd.f32 %v4188, 1.0
      %v4190 = vrcp.pop %v4189
      %v4191 = vmul.f32 1.0, %v4190
      %v4192 = vmul.f32 %v4184, %v4173
      %v4193 = vadd.f32 %v2214, %v4192
      %v4194 = vtanh.pop %v4193
      %v4195 = vsub.f32 1.0, %v4191
      %v4196 = vmul.f32 %v4195, %v4194
      %v4197 = vmul.f32 %v4191, %v3918
      %v4198 = vadd.f32 %v4196, %v4197
      %4199 = vst [vmem:[#allocation2] sm:$0xff] %v4198
      %4200 = vst [vmem:[%s364 + $0x30] sm:$0xff] %v4198
      %v4201 = vld [vmem:[#allocation2] sm:$0xff]
      %v4202 = vpack.c.bf16 %v4201, %v4201
      %v4203 = vld [vmem:[%s6] sm:$0xff]
      %v4204 = vld [vmem:[%s6 + $0x8] sm:$0xf]
      %v4205 = vld [vmem:[%s6 + $0xc] sm:$0xff]
      %v4206 = vld [vmem:[%s6 + $0x14] sm:$0xf]
      %v4207 = vld [vmem:[%s6 + $0x18] sm:$0xff]
      %v4208 = vld [vmem:[%s6 + $0x20] sm:$0xf]
      %v4209 = vld [vmem:[%s6 + $0x24] sm:$0xff]
      %v4210 = vld [vmem:[%s6 + $0x2c] sm:$0xf]
      %v4211 = vld [vmem:[%s6 + $0x30] sm:$0xff]
      %v4212 = vld [vmem:[%s6 + $0x38] sm:$0xf]
      %v4213 = vld [vmem:[%s6 + $0x3c] sm:$0xff]
      %v4214 = vld [vmem:[%s6 + $0x44] sm:$0xf]
      %v4215 = vld [vmem:[%s6 + $0x48] sm:$0xff]
      %v4216 = vld [vmem:[%s6 + $0x50] sm:$0xf]
      %v4217 = vld [vmem:[%s6 + $0x54] sm:$0xff]
      %v4218 = vld [vmem:[%s6 + $0x5c] sm:$0xf]
      %v4219 = vld [vmem:[%s6 + $0x60] sm:$0xff]
      %v4220 = vld [vmem:[%s6 + $0x68] sm:$0xf]
      %v4221 = vld [vmem:[%s6 + $0x6c] sm:$0xff]
      %v4222 = vld [vmem:[%s6 + $0x74] sm:$0xf]
      %v4223 = vld [vmem:[%s6 + $0x78] sm:$0xff]
      %v4224 = vld [vmem:[%s6 + $0x80] sm:$0xf]
      %v4225 = vld [vmem:[%s6 + $0x84] sm:$0xff]
      %v4226 = vld [vmem:[%s6 + $0x8c] sm:$0xf]
      %v4227 = vld [vmem:[%s6 + $0x90] sm:$0xff]
      %v4228 = vld [vmem:[%s6 + $0x98] sm:$0xf]
      %v4229 = vld [vmem:[%s6 + $0x9c] sm:$0xff]
      %v4230 = vld [vmem:[%s6 + $0xa4] sm:$0xf]
      %v4231 = vld [vmem:[%s6 + $0xa8] sm:$0xff]
      %v4232 = vld [vmem:[%s6 + $0xb0] sm:$0xf]
      %v4233 = vld [vmem:[%s6 + $0xb4] sm:$0xff]
      %v4234 = vld [vmem:[%s6 + $0xbc] sm:$0xf]
      %v4235 = vld [vmem:[%s8] sm:$0x7]
      %v4237 = vlaneseq
      %v4238 = vshrl.u32 %v4237, 7
      %v4239 = vsub.s32 0, %v4238
      %v4240 = vrot.slane %v4235, %v4239
      %v4241 = vlaneseq
      %v4242 = vshrl.u32 %v4241, 7
      %v4243 = vsub.s32 1, %v4242
      %v4244 = vrot.slane %v4235, %v4243
      %v4245 = vlaneseq
      %v4246 = vshrl.u32 %v4245, 7
      %v4247 = vsub.s32 2, %v4246
      %v4248 = vrot.slane %v4235, %v4247
      %v4284 = vunpack.c.l.b16 %v4203
      %v4285 = vunpack.c.h.b16 %v4203
      %v4286 = vunpack.c.l.b16 %v4204
      %v4287 = vunpack.c.l.b16 %v4205
      %v4288 = vunpack.c.h.b16 %v4205
      %v4289 = vunpack.c.l.b16 %v4206
      %v4290 = vunpack.c.l.b16 %v4207
      %v4291 = vunpack.c.h.b16 %v4207
      %v4292 = vunpack.c.l.b16 %v4208
      %v4293 = vunpack.c.l.b16 %v4209
      %v4294 = vunpack.c.h.b16 %v4209
      %v4295 = vunpack.c.l.b16 %v4210
      %v4296 = vunpack.c.l.b16 %v4211
      %v4297 = vunpack.c.h.b16 %v4211
      %v4298 = vunpack.c.l.b16 %v4212
      %v4299 = vunpack.c.l.b16 %v4213
      %v4300 = vunpack.c.h.b16 %v4213
      %v4301 = vunpack.c.l.b16 %v4214
      %v4302 = vunpack.c.l.b16 %v4215
      %v4303 = vunpack.c.h.b16 %v4215
      %v4304 = vunpack.c.l.b16 %v4216
      %v4305 = vunpack.c.l.b16 %v4217
      %v4306 = vunpack.c.h.b16 %v4217
      %v4307 = vunpack.c.l.b16 %v4218
      %v4308 = vunpack.c.l.b16 %v4219
      %v4309 = vunpack.c.h.b16 %v4219
      %v4310 = vunpack.c.l.b16 %v4220
      %v4311 = vunpack.c.l.b16 %v4221
      %v4312 = vunpack.c.h.b16 %v4221
      %v4313 = vunpack.c.l.b16 %v4222
      %v4314 = vunpack.c.l.b16 %v4223
      %v4315 = vunpack.c.h.b16 %v4223
      %v4316 = vunpack.c.l.b16 %v4224
      %v4317 = vunpack.c.l.b16 %v4225
      %v4318 = vunpack.c.h.b16 %v4225
      %v4319 = vunpack.c.l.b16 %v4226
      %v4320 = vunpack.c.l.b16 %v4227
      %v4321 = vunpack.c.h.b16 %v4227
      %v4322 = vunpack.c.l.b16 %v4228
      %v4323 = vunpack.c.l.b16 %v4229
      %v4324 = vunpack.c.h.b16 %v4229
      %v4325 = vunpack.c.l.b16 %v4230
      %v4326 = vunpack.c.l.b16 %v4231
      %v4327 = vunpack.c.h.b16 %v4231
      %v4328 = vunpack.c.l.b16 %v4232
      %v4329 = vunpack.c.l.b16 %v4233
      %v4330 = vunpack.c.h.b16 %v4233
      %v4331 = vunpack.c.l.b16 %v4234
      %v4332 = vpack.c.b16 %v4287, %v4284
      %v4333 = vpack.c.b16 %v4288, %v4285
      %v4334 = vpack.c.b16 %v4289, %v4286
      %v4335 = vpack.c.b16 %v4293, %v4290
      %v4336 = vpack.c.b16 %v4294, %v4291
      %v4337 = vpack.c.b16 %v4295, %v4292
      %v4338 = vpack.c.b16 %v4299, %v4296
      %v4339 = vpack.c.b16 %v4300, %v4297
      %v4340 = vpack.c.b16 %v4301, %v4298
      %v4341 = vpack.c.b16 %v4305, %v4302
      %v4342 = vpack.c.b16 %v4306, %v4303
      %v4343 = vpack.c.b16 %v4307, %v4304
      %v4344 = vpack.c.b16 %v4311, %v4308
      %v4345 = vpack.c.b16 %v4312, %v4309
      %v4346 = vpack.c.b16 %v4313, %v4310
      %v4347 = vpack.c.b16 %v4317, %v4314
      %v4348 = vpack.c.b16 %v4318, %v4315
      %v4349 = vpack.c.b16 %v4319, %v4316
      %v4350 = vpack.c.b16 %v4323, %v4320
      %v4351 = vpack.c.b16 %v4324, %v4321
      %v4352 = vpack.c.b16 %v4325, %v4322
      %v4353 = vpack.c.b16 %v4329, %v4326
      %v4354 = vpack.c.b16 %v4330, %v4327
      %v4355 = vpack.c.b16 %v4331, %v4328
      %4380 = vmatprep.subr.bf16.mxu0 %v4333
      %4381 = vmatpush1.bf16.msra.mxu0 %v4332
      %4382 = vmatprep.subr.bf16.mxu0 %v4336
      %4383 = vmatpush1.bf16.msra.mxu0 %v4335
      %4384 = vmatprep.subr.bf16.mxu0 %v4339
      %4385 = vmatpush1.bf16.msra.mxu0 %v4338
      %4386 = vmatprep.subr.bf16.mxu0 %v4342
      %4387 = vmatpush1.bf16.msra.mxu0 %v4341
      %4388 = vmatprep.subr.bf16.mxu0 %v4345
      %4389 = vmatpush1.bf16.msra.mxu0 %v4344
      %4390 = vmatprep.subr.bf16.mxu0 %v4348
      %4391 = vmatpush1.bf16.msra.mxu0 %v4347
      %4392 = vmatprep.subr.bf16.mxu0 %v4351
      %4393 = vmatpush1.bf16.msra.mxu0 %v4350
      %4394 = vmatprep.subr.bf16.mxu0 %v4354
      %4395 = vmatpush1.bf16.msra.mxu0 %v4353
      %4396 = vmatprep.subr.bf16.mxu0 0
      %4397 = vmatpush1.bf16.msra.mxu0 0
      %4398 = vmatprep.subr.bf16.mxu0 0
      %4399 = vmatpush1.bf16.msra.mxu0 0
      %4400 = vmatprep.subr.bf16.mxu0 0
      %4401 = vmatpush1.bf16.msra.mxu0 0
      %4402 = vmatprep.subr.bf16.mxu0 0
      %4403 = vmatpush1.bf16.msra.mxu0 0
      %4404 = vmatprep.subr.bf16.mxu0 0
      %4405 = vmatpush1.bf16.msra.mxu0 0
      %4406 = vmatprep.subr.bf16.mxu0 0
      %4407 = vmatpush1.bf16.msra.mxu0 0
      %4408 = vmatprep.subr.bf16.mxu0 0
      %4409 = vmatpush1.bf16.msra.mxu0 0
      %4410 = vmatprep.subr.bf16.mxu0 0
      %4411 = vmatpush1.bf16.msra.mxu0 0
      %4412 = vmatprep.mubr.bf16.mxu0 0
      %4413 = vmatmul.mubr.bf16.gmra.mrb[0].mxu0 %v4202
      %v4414 = vpop.f32.mrb[0].mxu0
      %v4415 = vadd.f32 %v4240, %v4414
      %v4416 = vpop.f32.mrb[0].mxu0
      %v4417 = vadd.f32 %v4244, %v4416
      %v4418 = vpop.f32.mrb[0].mxu0
      %v4419 = vpop.f32.mrb[0].mxu0
      %4420 = vdwg.mxu0
      %4421 = vmatprep.subr.bf16.mxu0 0
      %4422 = vmatpush1.bf16.msra.mxu0 %v4334
      %4423 = vmatprep.subr.bf16.mxu0 0
      %4424 = vmatpush1.bf16.msra.mxu0 %v4337
      %4425 = vmatprep.subr.bf16.mxu0 0
      %4426 = vmatpush1.bf16.msra.mxu0 %v4340
      %4427 = vmatprep.subr.bf16.mxu0 0
      %4428 = vmatpush1.bf16.msra.mxu0 %v4343
      %4429 = vmatprep.subr.bf16.mxu0 0
      %4430 = vmatpush1.bf16.msra.mxu0 %v4346
      %4431 = vmatprep.subr.bf16.mxu0 0
      %4432 = vmatpush1.bf16.msra.mxu0 %v4349
      %4433 = vmatprep.subr.bf16.mxu0 0
      %4434 = vmatpush1.bf16.msra.mxu0 %v4352
      %4435 = vmatprep.subr.bf16.mxu0 0
      %4436 = vmatpush1.bf16.msra.mxu0 %v4355
      %4437 = vmatprep.subr.bf16.mxu0 0
      %4438 = vmatpush1.bf16.msra.mxu0 0
      %4439 = vmatprep.subr.bf16.mxu0 0
      %4440 = vmatpush1.bf16.msra.mxu0 0
      %4441 = vmatprep.subr.bf16.mxu0 0
      %4442 = vmatpush1.bf16.msra.mxu0 0
      %4443 = vmatprep.subr.bf16.mxu0 0
      %4444 = vmatpush1.bf16.msra.mxu0 0
      %4445 = vmatprep.subr.bf16.mxu0 0
      %4446 = vmatpush1.bf16.msra.mxu0 0
      %4447 = vmatprep.subr.bf16.mxu0 0
      %4448 = vmatpush1.bf16.msra.mxu0 0
      %4449 = vmatprep.subr.bf16.mxu0 0
      %4450 = vmatpush1.bf16.msra.mxu0 0
      %4451 = vmatprep.subr.bf16.mxu0 0
      %4452 = vmatpush1.bf16.msra.mxu0 0
      %4453 = vmatprep.mubr.bf16.mxu0 0
      %4454 = vmatmul.mubr.bf16.gmra.mrb[0].mxu0 %v4202
      %v4455 = vpop.f32.mrb[0].mxu0
      %v4456 = vadd.f32 %v4248, %v4455
      %v4457 = vpop.f32.mrb[0].mxu0
      %v4458 = vpop.f32.mrb[0].mxu0
      %v4459 = vpop.f32.mrb[0].mxu0
      %4460 = vdwg.mxu0
      %v4461 = vadd.f32 %v2151, %v4415
      %v4462 = vxor.u32 %v4461, 2147483648
      %v4463 = vmul.f32 %v4462, 1.442695
      %v4464 = vpow.pop %v4463
      %v4465 = vadd.f32 %v4464, 1.0
      %v4466 = vrcp.pop %v4465
      %v4467 = vmul.f32 1.0, %v4466
      %v4468 = vadd.f32 %v2153, %v4417
      %v4469 = vxor.u32 %v4468, 2147483648
      %v4470 = vmul.f32 %v4469, 1.442695
      %v4471 = vpow.pop %v4470
      %v4472 = vadd.f32 %v4471, 1.0
      %v4473 = vrcp.pop %v4472
      %v4474 = vmul.f32 1.0, %v4473
      %v4475 = vmul.f32 %v4467, %v4456
      %v4476 = vadd.f32 %v2217, %v4475
      %v4477 = vtanh.pop %v4476
      %v4478 = vsub.f32 1.0, %v4474
      %v4479 = vmul.f32 %v4478, %v4477
      %v4480 = vmul.f32 %v4474, %v4201
      %v4481 = vadd.f32 %v4479, %v4480
      %4482 = vst [vmem:[#allocation2] sm:$0xff] %v4481
      %4483 = vst [vmem:[%s364 + $0x38] sm:$0xff] %v4481
      %s4484 = smul.u32 8, %s21
      %p4485 = scmp.lt.s32.totalorder %s4484, 15
      %s4486 = scalar_select %p4485, %s4484, 15
      %s4487 = smul.addr %s4486, 8
      %s4488 = scalar_lea.vmem %s10, %s4487
      // Predicated region
      $region65: #{sampling_world_model_rollout.1} parent=59 // pred_check
        %p4489 = pneg %p254
      $region66: #{sampling_world_model_rollout.1} parent=59 // pred_check_branch
        %4491 = sbr.rel (%p4489) target = $region68
      $region67: #{sampling_world_model_rollout.1} parent=59 // pred_region
        %s4492 = smul.u32 8, %s21
      $region68: #{sampling_world_model_rollout.1} parent=59 // pred_fallthru
        _
    $region60: #{sampling_world_model_rollout.1} parent=5 // pred_fallthru
      _
    %p4493 = scmp.le.s32.totalorder 2, %s16
    // Predicated region
    $region69: #{sampling_world_model_rollout.1} parent=5 // pred_check
      %p4494 = pneg %p4493
    $region70: #{sampling_world_model_rollout.1} parent=5 // pred_check_branch
      %4496 = sbr.rel (%p4494) target = $region72
    $region71: #{sampling_world_model_rollout.1} parent=5 // pred_region
      %s4497 = ssub.s32 %s16, 2
      // Predicated region
      $region73: #{sampling_world_model_rollout.1} parent=71 // pred_check
        %p4498 = pneg %p260
      $region74: #{sampling_world_model_rollout.1} parent=71 // pred_check_branch
        %4500 = sbr.rel (%p4498) target = $region76
      $region75: #{sampling_world_model_rollout.1} parent=71 // pred_region
        %s4501 = smul.u32 8, %s22
        %p4502 = scmp.lt.s32.totalorder %s4501, 15
        %s4503 = scalar_select %p4502, %s4501, 15
        %s4504 = smul.addr %s4503, 8
        %s4505 = scalar_lea.vmem %s10, %s4504
      $region76: #{sampling_world_model_rollout.1} parent=71 // pred_fallthru
        _
    $region72: #{sampling_world_model_rollout.1} parent=5 // pred_fallthru
      _
  $region6: #{sampling_world_model_rollout.1} parent=0 // loop_footer
    %s20 = sadd.s32 1, %s16
  $region7: #{sampling_world_model_rollout.1} parent=0 // loop_footer_branch
    %15 = sbr.rel target = $region3
  $region8: #{sampling_world_model_rollout.1} parent=0 // loop_exit
    _

</llo_original>
